<compile_context>
chip_gen: v7x
topology: tpu7x:2x2x1
jax: 0.10.0
libtpu: 0.0.40
codegen_flags: <defaults>
</compile_context>

<pallas_src>
import math

import jax
import jax.numpy as jnp
from jax.experimental import pallas as pl
from jax.experimental.pallas import tpu as pltpu

# ----------------------------- small config ---------------------------------
B = 2            # batch
S = 8            # sequence length
H = 32           # hidden_size
NH = 4           # num_attention_heads
HD = H // NH     # attention head dim
I = 64           # mamba intermediate_size (expand = 2)
N = 8            # ssm state_size
K = 4            # conv_kernel
R = 2            # time_step_rank = ceil(H / 16)
BS = B * S
LN_EPS = 1e-12         # Bert LayerNorm eps
RMS_EPS_BLOCK = 1e-5   # MambaBlock inner RMSNorm eps (layer_norm_epsilon)
RMS_EPS_OUT = 1e-6     # outer MambaRMSNorm default eps


def _sigmoid(x):
    return 1.0 / (1.0 + jnp.exp(-x))


def _softplus(x):
    # numerically-stable softplus, only basic ops (Mosaic-friendly)
    return jnp.maximum(x, 0.0) + jnp.log(1.0 + jnp.exp(-jnp.abs(x)))


# --------------------------- single fused kernel -----------------------------
def _fused_kernel(x_ref, mask_add_ref, mask_mul_ref,
                  wq_ref, bq_ref, wk_ref, bk_ref, wv_ref, bv_ref,
                  wo_ref, bo_ref, ln_g_ref, ln_b_ref,
                  nw_ref, wi_ref, cw_ref, cb_ref,
                  wx_ref, wdt_ref, bdt_ref, alog_ref, d_ref, wom_ref,
                  fnw_ref,
                  o_ref,
                  ctx_ref, scan_ref):
    x = x_ref[...]                         # (BS, H) batch folded into rows
    mask_add = mask_add_ref[...]           # (B, S) raw 0/1 additive mask (as in module)
    mask_mul = mask_mul_ref[...]           # (BS, 1) multiplicative mask for mixer

    # ---------------- BertSelfAttention: QKV on all B*S rows ----------------
    q = jnp.dot(x, wq_ref[...], preferred_element_type=jnp.float32) + bq_ref[...]
    k = jnp.dot(x, wk_ref[...], preferred_element_type=jnp.float32) + bk_ref[...]
    v = jnp.dot(x, wv_ref[...], preferred_element_type=jnp.float32) + bv_ref[...]

    scale = 1.0 / math.sqrt(HD)
    for b in range(B):                      # B=2, unrolled
        rows = slice(b * S, (b + 1) * S)
        mrow = mask_add[b:b + 1, :]         # (1, S), broadcast over query rows / heads
        for h in range(NH):                 # NH=4, unrolled
            cols = slice(h * HD, (h + 1) * HD)
            qh = q[rows, cols]
            kh = k[rows, cols]
            vh = v[rows, cols]
            scores = jax.lax.dot_general(
                qh, kh, (((1,), (1,)), ((), ())),
                preferred_element_type=jnp.float32) * scale
            scores = scores + mrow
            m = jnp.max(scores, axis=-1, keepdims=True)
            e = jnp.exp(scores - m)
            denom = jnp.sum(e, axis=-1, keepdims=True)
            probs = e * pl.reciprocal(denom, approx=True)   # EUP divide
            # write head context directly into its lane slice (no concatenate)
            ctx_ref[rows, cols] = jnp.dot(probs, vh,
                                          preferred_element_type=jnp.float32)

    ctx = ctx_ref[...]                                       # (BS, H)

    # BertSelfOutput: dense -> (dropout eval noop) -> LayerNorm(dense + input)
    dense = jnp.dot(ctx, wo_ref[...], preferred_element_type=jnp.float32) + bo_ref[...]
    pre_ln = dense + x
    mean = jnp.mean(pre_ln, axis=-1, keepdims=True)
    var = jnp.mean((pre_ln - mean) ** 2, axis=-1, keepdims=True)
    attn_out = (pre_ln - mean) * jax.lax.rsqrt(var + LN_EPS) * ln_g_ref[...] + ln_b_ref[...]

    # outer residual of AttentionMambaBlock
    h1 = attn_out + x                                        # (BS, H)

    # ---------------- MambaBlock: inner RMSNorm + mixer ----------------------
    var_m = jnp.mean(h1 * h1, axis=-1, keepdims=True)
    xs = h1 * jax.lax.rsqrt(var_m + RMS_EPS_BLOCK) * nw_ref[...]

    # in_proj (no bias): (BS, 2I) -> hidden / gate
    proj = jnp.dot(xs, wi_ref[...], preferred_element_type=jnp.float32)
    hs = proj[:, :I]                                         # (BS, I)
    gate = proj[:, I:]                                       # (BS, I)
    hs = hs * mask_mul

    # causal depthwise conv over the sequence of each batch segment.
    # taps realized with sublane rolls of the whole (BS, I) block; rows that
    # would pull from a previous batch (or before t=0) are masked via row % S.
    pos = jax.lax.broadcasted_iota(jnp.int32, (BS, I), 0) % S
    conv = hs * cw_ref[K - 1:K, :]                           # tap aligned with t
    for d in range(1, K):                                    # shifted taps
        shifted = jnp.where(pos >= d, pltpu.roll(hs, d, 0), 0.0)
        conv = conv + shifted * cw_ref[K - 1 - d:K - d, :]
    conv = conv + cb_ref[...]
    hs = conv * _sigmoid(conv)                               # SiLU
    hs = hs * mask_mul

    # x_proj -> (time_step | B | C)
    ssm_p = jnp.dot(hs, wx_ref[...], preferred_element_type=jnp.float32)  # (BS, R+2N)
    ts = ssm_p[:, :R]
    Bm = ssm_p[:, R:R + N]                                   # (BS, N)
    Cm = ssm_p[:, R + N:]                                    # (BS, N)

    dt = jnp.dot(ts, wdt_ref[...], preferred_element_type=jnp.float32) + bdt_ref[...]
    dt = _softplus(dt)                                       # (BS, I)

    # selective scan with channels (I=64) in the lane dim: state/A are (N, I)
    A_lane = -jnp.exp(alog_ref[...])                         # (N, I)
    Bm_T = jnp.transpose(Bm)                                 # (N, BS)
    Cm_T = jnp.transpose(Cm)                                 # (N, BS)
    dths = dt * hs                                           # (BS, I)

    for b in range(B):                                       # unrolled
        rows = slice(b * S, (b + 1) * S)
        # all S steps' dA in one batched exp (EUP), before the time loop
        dA_b = jnp.exp(dt[rows][:, None, :] * A_lane[None, :, :])   # (S, N, I)
        state = jnp.zeros((N, I), jnp.float32)
        for t in range(S):                                   # unrolled recurrence
            r = b * S + t
            dBu = Bm_T[:, r:r + 1] * dths[r:r + 1, :]        # (N, I)
            state = dA_b[t] * state + dBu
            scan_ref[r:r + 1, :] = jnp.sum(state * Cm_T[:, r:r + 1],
                                           axis=0, keepdims=True)

    scan_out = scan_ref[...]                                 # (BS, I)
    scan_out = scan_out + hs * d_ref[...]                    # D skip
    scan_out = scan_out * (gate * _sigmoid(gate))            # gate (SiLU)

    mix_out = jnp.dot(scan_out, wom_ref[...], preferred_element_type=jnp.float32)  # (BS, H)
    h2 = h1 + mix_out                                        # MambaBlock residual

    # ---------------- final MambaRMSNorm (fused epilogue) --------------------
    var_f = jnp.mean(h2 * h2, axis=-1, keepdims=True)
    o_ref[...] = h2 * jax.lax.rsqrt(var_f + RMS_EPS_OUT) * fnw_ref[...]


# ------------------------------- wrapper -------------------------------------
def attention_mamba_block(x, attention_mask, params):
    b, s, hdim = x.shape
    x2d = x.reshape(b * s, hdim).astype(jnp.float32)
    mask_f = attention_mask.astype(jnp.float32)
    mask_add = mask_f                          # (B, S) additive (module adds it raw)
    mask_mul = mask_f.reshape(b * s, 1)        # (BS, 1) multiplicative for mixer

    def fullspec(shape):
        nd = len(shape)
        return pl.BlockSpec(shape, lambda i, nd=nd: (0,) * nd)

    out2d = pl.pallas_call(
        _fused_kernel,
        out_shape=jax.ShapeDtypeStruct((b * s, hdim), jnp.float32),
        grid=(1,),
        in_specs=[
            fullspec((b * s, hdim)),            # x
            fullspec((b, s)),                   # additive mask
            fullspec((b * s, 1)),               # multiplicative mask
            fullspec((hdim, hdim)), fullspec((1, hdim)),   # wq, bq
            fullspec((hdim, hdim)), fullspec((1, hdim)),   # wk, bk
            fullspec((hdim, hdim)), fullspec((1, hdim)),   # wv, bv
            fullspec((hdim, hdim)), fullspec((1, hdim)),   # wo, bo
            fullspec((1, hdim)), fullspec((1, hdim)),      # LayerNorm g, b
            fullspec((1, hdim)),                           # inner RMSNorm weight
            fullspec((hdim, 2 * I)),                       # in_proj
            fullspec((K, I)), fullspec((1, I)),            # conv weight / bias
            fullspec((I, R + 2 * N)),                      # x_proj
            fullspec((R, I)), fullspec((1, I)),            # dt_proj W / b
            fullspec((N, I)),                              # A_log (state in sublanes)
            fullspec((1, I)),                              # D
            fullspec((I, hdim)),                           # out_proj
            fullspec((1, hdim)),                           # final RMSNorm weight
        ],
        out_specs=fullspec((b * s, hdim)),
        scratch_shapes=[
            pltpu.VMEM((b * s, hdim), jnp.float32),        # attention context
            pltpu.VMEM((b * s, I), jnp.float32),           # scan output rows
        ],
    )(x2d, mask_add, mask_mul,
      params["wq"], params["bq"], params["wk"], params["bk"],
      params["wv"], params["bv"], params["wo"], params["bo"],
      params["ln_g"], params["ln_b"],
      params["mamba_norm_w"], params["in_proj_w"],
      params["conv_w"], params["conv_b"],
      params["x_proj_w"], params["dt_proj_w"], params["dt_proj_b"],
      params["A_log"], params["D"], params["out_proj_w"],
      params["final_norm_w"])

    return out2d.reshape(b, s, hdim)


# --------------------------- deterministic params ----------------------------
def init_params(key):
    keys = jax.random.split(key, 16)

    def dense(k, shape, scale=0.02):
        return (scale * jax.random.normal(k, shape)).astype(jnp.float32)

    return {
        # BertSelfAttention (weights stored as (in, out); y = x @ W + b)
        "wq": dense(keys[0], (H, H)), "bq": dense(keys[1], (1, H)),
        "wk": dense(keys[2], (H, H)), "bk": dense(keys[3], (1, H)),
        "wv": dense(keys[4], (H, H)), "bv": dense(keys[5], (1, H)),
        # BertSelfOutput
        "wo": dense(keys[6], (H, H)), "bo": dense(keys[7], (1, H)),
        "ln_g": jnp.ones((1, H), jnp.float32),
        "ln_b": jnp.zeros((1, H), jnp.float32),
        # MambaBlock inner RMSNorm
        "mamba_norm_w": jnp.ones((1, H), jnp.float32),
        # MambaMixer
        "in_proj_w": dense(keys[8], (H, 2 * I)),
        "conv_w": dense(keys[9], (K, I), scale=0.1),   # depthwise conv, (taps, channels)
        "conv_b": dense(keys[10], (1, I), scale=0.1),
        "x_proj_w": dense(keys[11], (I, R + 2 * N)),
        "dt_proj_w": dense(keys[12], (R, I)),
        "dt_proj_b": dense(keys[13], (1, I), scale=0.1),
        # stored as (N, I) so the scan keeps channels in the lane dim;
        # A_log[n, i] = log(n + 1), equivalent to torch's (I, N) layout transposed
        "A_log": jnp.log(jnp.broadcast_to(
            jnp.arange(1, N + 1, dtype=jnp.float32)[:, None], (N, I))).astype(jnp.float32),
        "D": jnp.ones((1, I), jnp.float32),
        "out_proj_w": dense(keys[14], (I, H)),
        # outer MambaRMSNorm
        "final_norm_w": jnp.ones((1, H), jnp.float32),
    }


if __name__ == "__main__":
    key = jax.random.PRNGKey(0)
    kx, kp = jax.random.split(key)
    x = jax.random.normal(kx, (B, S, H), dtype=jnp.float32)
    # attention_mask: (B, S) 0/1 LongTensor analogue
    attention_mask = jnp.array([[1] * S, [1] * (S - 3) + [0] * 3], dtype=jnp.int32)
    params = init_params(kp)

    out = attention_mamba_block(x, attention_mask, params)
    out = jax.block_until_ready(out)
    assert out.shape == (B, S, H) and out.dtype == jnp.float32
    # TODO(synk): dropout layers are eval-mode no-ops and are intentionally omitted.
    print("KERNEL_OK")
</pallas_src>

<mosaic_0001>
module attributes {stable_mosaic.version = 11 : i64} {
  func.func @_fused_kernel(%arg0: i32, %arg1: memref<16x32xf32, #tpu.memory_space<vmem>>, %arg2: memref<2x8xf32, #tpu.memory_space<vmem>>, %arg3: memref<16x1xf32, #tpu.memory_space<vmem>>, %arg4: memref<32x32xf32, #tpu.memory_space<vmem>>, %arg5: memref<1x32xf32, #tpu.memory_space<vmem>>, %arg6: memref<32x32xf32, #tpu.memory_space<vmem>>, %arg7: memref<1x32xf32, #tpu.memory_space<vmem>>, %arg8: memref<32x32xf32, #tpu.memory_space<vmem>>, %arg9: memref<1x32xf32, #tpu.memory_space<vmem>>, %arg10: memref<32x32xf32, #tpu.memory_space<vmem>>, %arg11: memref<1x32xf32, #tpu.memory_space<vmem>>, %arg12: memref<1x32xf32, #tpu.memory_space<vmem>>, %arg13: memref<1x32xf32, #tpu.memory_space<vmem>>, %arg14: memref<1x32xf32, #tpu.memory_space<vmem>>, %arg15: memref<32x128xf32, #tpu.memory_space<vmem>>, %arg16: memref<4x64xf32, #tpu.memory_space<vmem>>, %arg17: memref<1x64xf32, #tpu.memory_space<vmem>>, %arg18: memref<64x18xf32, #tpu.memory_space<vmem>>, %arg19: memref<2x64xf32, #tpu.memory_space<vmem>>, %arg20: memref<1x64xf32, #tpu.memory_space<vmem>>, %arg21: memref<8x64xf32, #tpu.memory_space<vmem>>, %arg22: memref<1x64xf32, #tpu.memory_space<vmem>>, %arg23: memref<64x32xf32, #tpu.memory_space<vmem>>, %arg24: memref<1x32xf32, #tpu.memory_space<vmem>>, %arg25: memref<16x32xf32, #tpu.memory_space<vmem>>, %arg26: memref<16x32xf32, #tpu.memory_space<vmem>>, %arg27: memref<16x64xf32, #tpu.memory_space<vmem>>) attributes {dimension_semantics = [#tpu.dimension_semantics<arbitrary>], iteration_bounds = array<i64: 1>, scalar_prefetch = 0 : i64, scratch_operands = 2 : i64, tpu.core_type = #tpu.core_type<tc>, window_params = [{pipeline_mode = #tpu.pipeline_mode<synchronous>, transform_indices = @transform_0, window_bounds = array<i64: 16, 32>}, {pipeline_mode = #tpu.pipeline_mode<synchronous>, transform_indices = @transform_1, window_bounds = array<i64: 2, 8>}, {pipeline_mode = #tpu.pipeline_mode<synchronous>, transform_indices = @transform_2, window_bounds = array<i64: 16, 1>}, {pipeline_mode = #tpu.pipeline_mode<synchronous>, transform_indices = @transform_3, window_bounds = array<i64: 32, 32>}, {pipeline_mode = #tpu.pipeline_mode<synchronous>, transform_indices = @transform_4, window_bounds = array<i64: 1, 32>}, {pipeline_mode = #tpu.pipeline_mode<synchronous>, transform_indices = @transform_5, window_bounds = array<i64: 32, 32>}, {pipeline_mode = #tpu.pipeline_mode<synchronous>, transform_indices = @transform_6, window_bounds = array<i64: 1, 32>}, {pipeline_mode = #tpu.pipeline_mode<synchronous>, transform_indices = @transform_7, window_bounds = array<i64: 32, 32>}, {pipeline_mode = #tpu.pipeline_mode<synchronous>, transform_indices = @transform_8, window_bounds = array<i64: 1, 32>}, {pipeline_mode = #tpu.pipeline_mode<synchronous>, transform_indices = @transform_9, window_bounds = array<i64: 32, 32>}, {pipeline_mode = #tpu.pipeline_mode<synchronous>, transform_indices = @transform_10, window_bounds = array<i64: 1, 32>}, {pipeline_mode = #tpu.pipeline_mode<synchronous>, transform_indices = @transform_11, window_bounds = array<i64: 1, 32>}, {pipeline_mode = #tpu.pipeline_mode<synchronous>, transform_indices = @transform_12, window_bounds = array<i64: 1, 32>}, {pipeline_mode = #tpu.pipeline_mode<synchronous>, transform_indices = @transform_13, window_bounds = array<i64: 1, 32>}, {pipeline_mode = #tpu.pipeline_mode<synchronous>, transform_indices = @transform_14, window_bounds = array<i64: 32, 128>}, {pipeline_mode = #tpu.pipeline_mode<synchronous>, transform_indices = @transform_15, window_bounds = array<i64: 4, 64>}, {pipeline_mode = #tpu.pipeline_mode<synchronous>, transform_indices = @transform_16, window_bounds = array<i64: 1, 64>}, {pipeline_mode = #tpu.pipeline_mode<synchronous>, transform_indices = @transform_17, window_bounds = array<i64: 64, 18>}, {pipeline_mode = #tpu.pipeline_mode<synchronous>, transform_indices = @transform_18, window_bounds = array<i64: 2, 64>}, {pipeline_mode = #tpu.pipeline_mode<synchronous>, transform_indices = @transform_19, window_bounds = array<i64: 1, 64>}, {pipeline_mode = #tpu.pipeline_mode<synchronous>, transform_indices = @transform_20, window_bounds = array<i64: 8, 64>}, {pipeline_mode = #tpu.pipeline_mode<synchronous>, transform_indices = @transform_21, window_bounds = array<i64: 1, 64>}, {pipeline_mode = #tpu.pipeline_mode<synchronous>, transform_indices = @transform_22, window_bounds = array<i64: 64, 32>}, {pipeline_mode = #tpu.pipeline_mode<synchronous>, transform_indices = @transform_23, window_bounds = array<i64: 1, 32>}, {pipeline_mode = #tpu.pipeline_mode<synchronous>, transform_indices = @transform_24, window_bounds = array<i64: 16, 32>}]} {
    %c0 = arith.constant 0 : index
    %c0_0 = arith.constant 0 : index
    %0 = vector.load %arg1[%c0, %c0_0] : memref<16x32xf32, #tpu.memory_space<vmem>>, vector<16x32xf32>
    %c0_1 = arith.constant 0 : index
    %c0_2 = arith.constant 0 : index
    %1 = vector.load %arg2[%c0_1, %c0_2] : memref<2x8xf32, #tpu.memory_space<vmem>>, vector<2x8xf32>
    %c0_3 = arith.constant 0 : index
    %c0_4 = arith.constant 0 : index
    %2 = vector.load %arg3[%c0_3, %c0_4] : memref<16x1xf32, #tpu.memory_space<vmem>>, vector<16x1xf32>
    %c0_5 = arith.constant 0 : index
    %c0_6 = arith.constant 0 : index
    %3 = vector.load %arg4[%c0_5, %c0_6] : memref<32x32xf32, #tpu.memory_space<vmem>>, vector<32x32xf32>
    %cst = arith.constant dense<0.000000e+00> : vector<16x32xf32>
    %4 = tpu.matmul %0, %3, %cst {dimension_numbers = #tpu.dot_dimension_numbers<[1], [0], [0], [1], [0, 0, 1, 1], [], []>} : vector<16x32xf32>, vector<32x32xf32>, vector<16x32xf32> -> vector<16x32xf32>
    %c0_7 = arith.constant 0 : index
    %c0_8 = arith.constant 0 : index
    %5 = vector.load %arg5[%c0_7, %c0_8] : memref<1x32xf32, #tpu.memory_space<vmem>>, vector<1x32xf32>
    %6 = vector.broadcast %5 : vector<1x32xf32> to vector<16x32xf32>
    %7 = arith.addf %4, %6 : vector<16x32xf32>
    %c0_9 = arith.constant 0 : index
    %c0_10 = arith.constant 0 : index
    %8 = vector.load %arg6[%c0_9, %c0_10] : memref<32x32xf32, #tpu.memory_space<vmem>>, vector<32x32xf32>
    %cst_11 = arith.constant dense<0.000000e+00> : vector<16x32xf32>
    %9 = tpu.matmul %0, %8, %cst_11 {dimension_numbers = #tpu.dot_dimension_numbers<[1], [0], [0], [1], [0, 0, 1, 1], [], []>} : vector<16x32xf32>, vector<32x32xf32>, vector<16x32xf32> -> vector<16x32xf32>
    %c0_12 = arith.constant 0 : index
    %c0_13 = arith.constant 0 : index
    %10 = vector.load %arg7[%c0_12, %c0_13] : memref<1x32xf32, #tpu.memory_space<vmem>>, vector<1x32xf32>
    %11 = vector.broadcast %10 : vector<1x32xf32> to vector<16x32xf32>
    %12 = arith.addf %9, %11 : vector<16x32xf32>
    %c0_14 = arith.constant 0 : index
    %c0_15 = arith.constant 0 : index
    %13 = vector.load %arg8[%c0_14, %c0_15] : memref<32x32xf32, #tpu.memory_space<vmem>>, vector<32x32xf32>
    %cst_16 = arith.constant dense<0.000000e+00> : vector<16x32xf32>
    %14 = tpu.matmul %0, %13, %cst_16 {dimension_numbers = #tpu.dot_dimension_numbers<[1], [0], [0], [1], [0, 0, 1, 1], [], []>} : vector<16x32xf32>, vector<32x32xf32>, vector<16x32xf32> -> vector<16x32xf32>
    %c0_17 = arith.constant 0 : index
    %c0_18 = arith.constant 0 : index
    %15 = vector.load %arg9[%c0_17, %c0_18] : memref<1x32xf32, #tpu.memory_space<vmem>>, vector<1x32xf32>
    %16 = vector.broadcast %15 : vector<1x32xf32> to vector<16x32xf32>
    %17 = arith.addf %14, %16 : vector<16x32xf32>
    %18 = vector.extract_strided_slice %1 {offsets = [0, 0], sizes = [1, 8], strides = [1, 1]} : vector<2x8xf32> to vector<1x8xf32>
    %19 = vector.extract_strided_slice %7 {offsets = [0, 0], sizes = [8, 8], strides = [1, 1]} : vector<16x32xf32> to vector<8x8xf32>
    %20 = vector.extract_strided_slice %12 {offsets = [0, 0], sizes = [8, 8], strides = [1, 1]} : vector<16x32xf32> to vector<8x8xf32>
    %21 = vector.extract_strided_slice %17 {offsets = [0, 0], sizes = [8, 8], strides = [1, 1]} : vector<16x32xf32> to vector<8x8xf32>
    %cst_19 = arith.constant dense<0.000000e+00> : vector<8x8xf32>
    %22 = tpu.matmul %19, %20, %cst_19 {dimension_numbers = #tpu.dot_dimension_numbers<[1], [1], [0], [0], [0, 0, 1, 0], [], []>} : vector<8x8xf32>, vector<8x8xf32>, vector<8x8xf32> -> vector<8x8xf32>
    %cst_20 = arith.constant 0.353553385 : f32
    %23 = vector.broadcast %cst_20 : f32 to vector<8x8xf32>
    %24 = arith.mulf %22, %23 : vector<8x8xf32>
    %25 = vector.broadcast %18 : vector<1x8xf32> to vector<8x8xf32>
    %26 = arith.addf %24, %25 : vector<8x8xf32>
    %cst_21 = arith.constant dense<0xFF800000> : vector<8xf32>
    %27 = vector.multi_reduction <maximumf>, %26, %cst_21 [1] : vector<8x8xf32> to vector<8xf32>
    %28 = vector.shape_cast %27 : vector<8xf32> to vector<8x1xf32>
    %29 = vector.broadcast %28 : vector<8x1xf32> to vector<8x8xf32>
    %30 = arith.subf %26, %29 : vector<8x8xf32>
    %31 = math.exp %30 : vector<8x8xf32>
    %cst_22 = arith.constant dense<0.000000e+00> : vector<8xf32>
    %32 = vector.multi_reduction <add>, %31, %cst_22 [1] : vector<8x8xf32> to vector<8xf32>
    %33 = vector.shape_cast %32 : vector<8xf32> to vector<8x1xf32>
    %34 = tpu.reciprocal %33 {approx = true} : vector<8x1xf32> -> vector<8x1xf32>
    %35 = vector.broadcast %34 : vector<8x1xf32> to vector<8x8xf32>
    %36 = arith.mulf %31, %35 : vector<8x8xf32>
    %cst_23 = arith.constant dense<0.000000e+00> : vector<8x8xf32>
    %37 = tpu.matmul %36, %21, %cst_23 {dimension_numbers = #tpu.dot_dimension_numbers<[1], [0], [0], [1], [0, 0, 1, 1], [], []>} : vector<8x8xf32>, vector<8x8xf32>, vector<8x8xf32> -> vector<8x8xf32>
    %c0_24 = arith.constant 0 : index
    %c0_25 = arith.constant 0 : index
    %38 = vector.load %arg26[%c0_24, %c0_25] : memref<16x32xf32, #tpu.memory_space<vmem>>, vector<8x8xf32>
    tpu.vector_store %arg26[%c0_24, %c0_25], %37 {strides = array<i32>} : memref<16x32xf32, #tpu.memory_space<vmem>>, vector<8x8xf32>,
    %39 = vector.extract_strided_slice %7 {offsets = [0, 8], sizes = [8, 8], strides = [1, 1]} : vector<16x32xf32> to vector<8x8xf32>
    %40 = vector.extract_strided_slice %12 {offsets = [0, 8], sizes = [8, 8], strides = [1, 1]} : vector<16x32xf32> to vector<8x8xf32>
    %41 = vector.extract_strided_slice %17 {offsets = [0, 8], sizes = [8, 8], strides = [1, 1]} : vector<16x32xf32> to vector<8x8xf32>
    %cst_26 = arith.constant dense<0.000000e+00> : vector<8x8xf32>
    %42 = tpu.matmul %39, %40, %cst_26 {dimension_numbers = #tpu.dot_dimension_numbers<[1], [1], [0], [0], [0, 0, 1, 0], [], []>} : vector<8x8xf32>, vector<8x8xf32>, vector<8x8xf32> -> vector<8x8xf32>
    %cst_27 = arith.constant 0.353553385 : f32
    %43 = vector.broadcast %cst_27 : f32 to vector<8x8xf32>
    %44 = arith.mulf %42, %43 : vector<8x8xf32>
    %45 = vector.broadcast %18 : vector<1x8xf32> to vector<8x8xf32>
    %46 = arith.addf %44, %45 : vector<8x8xf32>
    %cst_28 = arith.constant dense<0xFF800000> : vector<8xf32>
    %47 = vector.multi_reduction <maximumf>, %46, %cst_28 [1] : vector<8x8xf32> to vector<8xf32>
    %48 = vector.shape_cast %47 : vector<8xf32> to vector<8x1xf32>
    %49 = vector.broadcast %48 : vector<8x1xf32> to vector<8x8xf32>
    %50 = arith.subf %46, %49 : vector<8x8xf32>
    %51 = math.exp %50 : vector<8x8xf32>
    %cst_29 = arith.constant dense<0.000000e+00> : vector<8xf32>
    %52 = vector.multi_reduction <add>, %51, %cst_29 [1] : vector<8x8xf32> to vector<8xf32>
    %53 = vector.shape_cast %52 : vector<8xf32> to vector<8x1xf32>
    %54 = tpu.reciprocal %53 {approx = true} : vector<8x1xf32> -> vector<8x1xf32>
    %55 = vector.broadcast %54 : vector<8x1xf32> to vector<8x8xf32>
    %56 = arith.mulf %51, %55 : vector<8x8xf32>
    %cst_30 = arith.constant dense<0.000000e+00> : vector<8x8xf32>
    %57 = tpu.matmul %56, %41, %cst_30 {dimension_numbers = #tpu.dot_dimension_numbers<[1], [0], [0], [1], [0, 0, 1, 1], [], []>} : vector<8x8xf32>, vector<8x8xf32>, vector<8x8xf32> -> vector<8x8xf32>
    %c0_31 = arith.constant 0 : index
    %c8 = arith.constant 8 : index
    %58 = vector.load %arg26[%c0_31, %c8] : memref<16x32xf32, #tpu.memory_space<vmem>>, vector<8x8xf32>
    tpu.vector_store %arg26[%c0_31, %c8], %57 {strides = array<i32>} : memref<16x32xf32, #tpu.memory_space<vmem>>, vector<8x8xf32>,
    %59 = vector.extract_strided_slice %7 {offsets = [0, 16], sizes = [8, 8], strides = [1, 1]} : vector<16x32xf32> to vector<8x8xf32>
    %60 = vector.extract_strided_slice %12 {offsets = [0, 16], sizes = [8, 8], strides = [1, 1]} : vector<16x32xf32> to vector<8x8xf32>
    %61 = vector.extract_strided_slice %17 {offsets = [0, 16], sizes = [8, 8], strides = [1, 1]} : vector<16x32xf32> to vector<8x8xf32>
    %cst_32 = arith.constant dense<0.000000e+00> : vector<8x8xf32>
    %62 = tpu.matmul %59, %60, %cst_32 {dimension_numbers = #tpu.dot_dimension_numbers<[1], [1], [0], [0], [0, 0, 1, 0], [], []>} : vector<8x8xf32>, vector<8x8xf32>, vector<8x8xf32> -> vector<8x8xf32>
    %cst_33 = arith.constant 0.353553385 : f32
    %63 = vector.broadcast %cst_33 : f32 to vector<8x8xf32>
    %64 = arith.mulf %62, %63 : vector<8x8xf32>
    %65 = vector.broadcast %18 : vector<1x8xf32> to vector<8x8xf32>
    %66 = arith.addf %64, %65 : vector<8x8xf32>
    %cst_34 = arith.constant dense<0xFF800000> : vector<8xf32>
    %67 = vector.multi_reduction <maximumf>, %66, %cst_34 [1] : vector<8x8xf32> to vector<8xf32>
    %68 = vector.shape_cast %67 : vector<8xf32> to vector<8x1xf32>
    %69 = vector.broadcast %68 : vector<8x1xf32> to vector<8x8xf32>
    %70 = arith.subf %66, %69 : vector<8x8xf32>
    %71 = math.exp %70 : vector<8x8xf32>
    %cst_35 = arith.constant dense<0.000000e+00> : vector<8xf32>
    %72 = vector.multi_reduction <add>, %71, %cst_35 [1] : vector<8x8xf32> to vector<8xf32>
    %73 = vector.shape_cast %72 : vector<8xf32> to vector<8x1xf32>
    %74 = tpu.reciprocal %73 {approx = true} : vector<8x1xf32> -> vector<8x1xf32>
    %75 = vector.broadcast %74 : vector<8x1xf32> to vector<8x8xf32>
    %76 = arith.mulf %71, %75 : vector<8x8xf32>
    %cst_36 = arith.constant dense<0.000000e+00> : vector<8x8xf32>
    %77 = tpu.matmul %76, %61, %cst_36 {dimension_numbers = #tpu.dot_dimension_numbers<[1], [0], [0], [1], [0, 0, 1, 1], [], []>} : vector<8x8xf32>, vector<8x8xf32>, vector<8x8xf32> -> vector<8x8xf32>
    %c0_37 = arith.constant 0 : index
    %c16 = arith.constant 16 : index
    %78 = vector.load %arg26[%c0_37, %c16] : memref<16x32xf32, #tpu.memory_space<vmem>>, vector<8x8xf32>
    tpu.vector_store %arg26[%c0_37, %c16], %77 {strides = array<i32>} : memref<16x32xf32, #tpu.memory_space<vmem>>, vector<8x8xf32>,
    %79 = vector.extract_strided_slice %7 {offsets = [0, 24], sizes = [8, 8], strides = [1, 1]} : vector<16x32xf32> to vector<8x8xf32>
    %80 = vector.extract_strided_slice %12 {offsets = [0, 24], sizes = [8, 8], strides = [1, 1]} : vector<16x32xf32> to vector<8x8xf32>
    %81 = vector.extract_strided_slice %17 {offsets = [0, 24], sizes = [8, 8], strides = [1, 1]} : vector<16x32xf32> to vector<8x8xf32>
    %cst_38 = arith.constant dense<0.000000e+00> : vector<8x8xf32>
    %82 = tpu.matmul %79, %80, %cst_38 {dimension_numbers = #tpu.dot_dimension_numbers<[1], [1], [0], [0], [0, 0, 1, 0], [], []>} : vector<8x8xf32>, vector<8x8xf32>, vector<8x8xf32> -> vector<8x8xf32>
    %cst_39 = arith.constant 0.353553385 : f32
    %83 = vector.broadcast %cst_39 : f32 to vector<8x8xf32>
    %84 = arith.mulf %82, %83 : vector<8x8xf32>
    %85 = vector.broadcast %18 : vector<1x8xf32> to vector<8x8xf32>
    %86 = arith.addf %84, %85 : vector<8x8xf32>
    %cst_40 = arith.constant dense<0xFF800000> : vector<8xf32>
    %87 = vector.multi_reduction <maximumf>, %86, %cst_40 [1] : vector<8x8xf32> to vector<8xf32>
    %88 = vector.shape_cast %87 : vector<8xf32> to vector<8x1xf32>
    %89 = vector.broadcast %88 : vector<8x1xf32> to vector<8x8xf32>
    %90 = arith.subf %86, %89 : vector<8x8xf32>
    %91 = math.exp %90 : vector<8x8xf32>
    %cst_41 = arith.constant dense<0.000000e+00> : vector<8xf32>
    %92 = vector.multi_reduction <add>, %91, %cst_41 [1] : vector<8x8xf32> to vector<8xf32>
    %93 = vector.shape_cast %92 : vector<8xf32> to vector<8x1xf32>
    %94 = tpu.reciprocal %93 {approx = true} : vector<8x1xf32> -> vector<8x1xf32>
    %95 = vector.broadcast %94 : vector<8x1xf32> to vector<8x8xf32>
    %96 = arith.mulf %91, %95 : vector<8x8xf32>
    %cst_42 = arith.constant dense<0.000000e+00> : vector<8x8xf32>
    %97 = tpu.matmul %96, %81, %cst_42 {dimension_numbers = #tpu.dot_dimension_numbers<[1], [0], [0], [1], [0, 0, 1, 1], [], []>} : vector<8x8xf32>, vector<8x8xf32>, vector<8x8xf32> -> vector<8x8xf32>
    %c0_43 = arith.constant 0 : index
    %c24 = arith.constant 24 : index
    %98 = vector.load %arg26[%c0_43, %c24] : memref<16x32xf32, #tpu.memory_space<vmem>>, vector<8x8xf32>
    tpu.vector_store %arg26[%c0_43, %c24], %97 {strides = array<i32>} : memref<16x32xf32, #tpu.memory_space<vmem>>, vector<8x8xf32>,
    %99 = vector.extract_strided_slice %1 {offsets = [1, 0], sizes = [1, 8], strides = [1, 1]} : vector<2x8xf32> to vector<1x8xf32>
    %100 = vector.extract_strided_slice %7 {offsets = [8, 0], sizes = [8, 8], strides = [1, 1]} : vector<16x32xf32> to vector<8x8xf32>
    %101 = vector.extract_strided_slice %12 {offsets = [8, 0], sizes = [8, 8], strides = [1, 1]} : vector<16x32xf32> to vector<8x8xf32>
    %102 = vector.extract_strided_slice %17 {offsets = [8, 0], sizes = [8, 8], strides = [1, 1]} : vector<16x32xf32> to vector<8x8xf32>
    %cst_44 = arith.constant dense<0.000000e+00> : vector<8x8xf32>
    %103 = tpu.matmul %100, %101, %cst_44 {dimension_numbers = #tpu.dot_dimension_numbers<[1], [1], [0], [0], [0, 0, 1, 0], [], []>} : vector<8x8xf32>, vector<8x8xf32>, vector<8x8xf32> -> vector<8x8xf32>
    %cst_45 = arith.constant 0.353553385 : f32
    %104 = vector.broadcast %cst_45 : f32 to vector<8x8xf32>
    %105 = arith.mulf %103, %104 : vector<8x8xf32>
    %106 = vector.broadcast %99 : vector<1x8xf32> to vector<8x8xf32>
    %107 = arith.addf %105, %106 : vector<8x8xf32>
    %cst_46 = arith.constant dense<0xFF800000> : vector<8xf32>
    %108 = vector.multi_reduction <maximumf>, %107, %cst_46 [1] : vector<8x8xf32> to vector<8xf32>
    %109 = vector.shape_cast %108 : vector<8xf32> to vector<8x1xf32>
    %110 = vector.broadcast %109 : vector<8x1xf32> to vector<8x8xf32>
    %111 = arith.subf %107, %110 : vector<8x8xf32>
    %112 = math.exp %111 : vector<8x8xf32>
    %cst_47 = arith.constant dense<0.000000e+00> : vector<8xf32>
    %113 = vector.multi_reduction <add>, %112, %cst_47 [1] : vector<8x8xf32> to vector<8xf32>
    %114 = vector.shape_cast %113 : vector<8xf32> to vector<8x1xf32>
    %115 = tpu.reciprocal %114 {approx = true} : vector<8x1xf32> -> vector<8x1xf32>
    %116 = vector.broadcast %115 : vector<8x1xf32> to vector<8x8xf32>
    %117 = arith.mulf %112, %116 : vector<8x8xf32>
    %cst_48 = arith.constant dense<0.000000e+00> : vector<8x8xf32>
    %118 = tpu.matmul %117, %102, %cst_48 {dimension_numbers = #tpu.dot_dimension_numbers<[1], [0], [0], [1], [0, 0, 1, 1], [], []>} : vector<8x8xf32>, vector<8x8xf32>, vector<8x8xf32> -> vector<8x8xf32>
    %c8_49 = arith.constant 8 : index
    %c0_50 = arith.constant 0 : index
    %119 = vector.load %arg26[%c8_49, %c0_50] : memref<16x32xf32, #tpu.memory_space<vmem>>, vector<8x8xf32>
    tpu.vector_store %arg26[%c8_49, %c0_50], %118 {strides = array<i32>} : memref<16x32xf32, #tpu.memory_space<vmem>>, vector<8x8xf32>,
    %120 = vector.extract_strided_slice %7 {offsets = [8, 8], sizes = [8, 8], strides = [1, 1]} : vector<16x32xf32> to vector<8x8xf32>
    %121 = vector.extract_strided_slice %12 {offsets = [8, 8], sizes = [8, 8], strides = [1, 1]} : vector<16x32xf32> to vector<8x8xf32>
    %122 = vector.extract_strided_slice %17 {offsets = [8, 8], sizes = [8, 8], strides = [1, 1]} : vector<16x32xf32> to vector<8x8xf32>
    %cst_51 = arith.constant dense<0.000000e+00> : vector<8x8xf32>
    %123 = tpu.matmul %120, %121, %cst_51 {dimension_numbers = #tpu.dot_dimension_numbers<[1], [1], [0], [0], [0, 0, 1, 0], [], []>} : vector<8x8xf32>, vector<8x8xf32>, vector<8x8xf32> -> vector<8x8xf32>
    %cst_52 = arith.constant 0.353553385 : f32
    %124 = vector.broadcast %cst_52 : f32 to vector<8x8xf32>
    %125 = arith.mulf %123, %124 : vector<8x8xf32>
    %126 = vector.broadcast %99 : vector<1x8xf32> to vector<8x8xf32>
    %127 = arith.addf %125, %126 : vector<8x8xf32>
    %cst_53 = arith.constant dense<0xFF800000> : vector<8xf32>
    %128 = vector.multi_reduction <maximumf>, %127, %cst_53 [1] : vector<8x8xf32> to vector<8xf32>
    %129 = vector.shape_cast %128 : vector<8xf32> to vector<8x1xf32>
    %130 = vector.broadcast %129 : vector<8x1xf32> to vector<8x8xf32>
    %131 = arith.subf %127, %130 : vector<8x8xf32>
    %132 = math.exp %131 : vector<8x8xf32>
    %cst_54 = arith.constant dense<0.000000e+00> : vector<8xf32>
    %133 = vector.multi_reduction <add>, %132, %cst_54 [1] : vector<8x8xf32> to vector<8xf32>
    %134 = vector.shape_cast %133 : vector<8xf32> to vector<8x1xf32>
    %135 = tpu.reciprocal %134 {approx = true} : vector<8x1xf32> -> vector<8x1xf32>
    %136 = vector.broadcast %135 : vector<8x1xf32> to vector<8x8xf32>
    %137 = arith.mulf %132, %136 : vector<8x8xf32>
    %cst_55 = arith.constant dense<0.000000e+00> : vector<8x8xf32>
    %138 = tpu.matmul %137, %122, %cst_55 {dimension_numbers = #tpu.dot_dimension_numbers<[1], [0], [0], [1], [0, 0, 1, 1], [], []>} : vector<8x8xf32>, vector<8x8xf32>, vector<8x8xf32> -> vector<8x8xf32>
    %c8_56 = arith.constant 8 : index
    %c8_57 = arith.constant 8 : index
    %139 = vector.load %arg26[%c8_56, %c8_57] : memref<16x32xf32, #tpu.memory_space<vmem>>, vector<8x8xf32>
    tpu.vector_store %arg26[%c8_56, %c8_57], %138 {strides = array<i32>} : memref<16x32xf32, #tpu.memory_space<vmem>>, vector<8x8xf32>,
    %140 = vector.extract_strided_slice %7 {offsets = [8, 16], sizes = [8, 8], strides = [1, 1]} : vector<16x32xf32> to vector<8x8xf32>
    %141 = vector.extract_strided_slice %12 {offsets = [8, 16], sizes = [8, 8], strides = [1, 1]} : vector<16x32xf32> to vector<8x8xf32>
    %142 = vector.extract_strided_slice %17 {offsets = [8, 16], sizes = [8, 8], strides = [1, 1]} : vector<16x32xf32> to vector<8x8xf32>
    %cst_58 = arith.constant dense<0.000000e+00> : vector<8x8xf32>
    %143 = tpu.matmul %140, %141, %cst_58 {dimension_numbers = #tpu.dot_dimension_numbers<[1], [1], [0], [0], [0, 0, 1, 0], [], []>} : vector<8x8xf32>, vector<8x8xf32>, vector<8x8xf32> -> vector<8x8xf32>
    %cst_59 = arith.constant 0.353553385 : f32
    %144 = vector.broadcast %cst_59 : f32 to vector<8x8xf32>
    %145 = arith.mulf %143, %144 : vector<8x8xf32>
    %146 = vector.broadcast %99 : vector<1x8xf32> to vector<8x8xf32>
    %147 = arith.addf %145, %146 : vector<8x8xf32>
    %cst_60 = arith.constant dense<0xFF800000> : vector<8xf32>
    %148 = vector.multi_reduction <maximumf>, %147, %cst_60 [1] : vector<8x8xf32> to vector<8xf32>
    %149 = vector.shape_cast %148 : vector<8xf32> to vector<8x1xf32>
    %150 = vector.broadcast %149 : vector<8x1xf32> to vector<8x8xf32>
    %151 = arith.subf %147, %150 : vector<8x8xf32>
    %152 = math.exp %151 : vector<8x8xf32>
    %cst_61 = arith.constant dense<0.000000e+00> : vector<8xf32>
    %153 = vector.multi_reduction <add>, %152, %cst_61 [1] : vector<8x8xf32> to vector<8xf32>
    %154 = vector.shape_cast %153 : vector<8xf32> to vector<8x1xf32>
    %155 = tpu.reciprocal %154 {approx = true} : vector<8x1xf32> -> vector<8x1xf32>
    %156 = vector.broadcast %155 : vector<8x1xf32> to vector<8x8xf32>
    %157 = arith.mulf %152, %156 : vector<8x8xf32>
    %cst_62 = arith.constant dense<0.000000e+00> : vector<8x8xf32>
    %158 = tpu.matmul %157, %142, %cst_62 {dimension_numbers = #tpu.dot_dimension_numbers<[1], [0], [0], [1], [0, 0, 1, 1], [], []>} : vector<8x8xf32>, vector<8x8xf32>, vector<8x8xf32> -> vector<8x8xf32>
    %c8_63 = arith.constant 8 : index
    %c16_64 = arith.constant 16 : index
    %159 = vector.load %arg26[%c8_63, %c16_64] : memref<16x32xf32, #tpu.memory_space<vmem>>, vector<8x8xf32>
    tpu.vector_store %arg26[%c8_63, %c16_64], %158 {strides = array<i32>} : memref<16x32xf32, #tpu.memory_space<vmem>>, vector<8x8xf32>,
    %160 = vector.extract_strided_slice %7 {offsets = [8, 24], sizes = [8, 8], strides = [1, 1]} : vector<16x32xf32> to vector<8x8xf32>
    %161 = vector.extract_strided_slice %12 {offsets = [8, 24], sizes = [8, 8], strides = [1, 1]} : vector<16x32xf32> to vector<8x8xf32>
    %162 = vector.extract_strided_slice %17 {offsets = [8, 24], sizes = [8, 8], strides = [1, 1]} : vector<16x32xf32> to vector<8x8xf32>
    %cst_65 = arith.constant dense<0.000000e+00> : vector<8x8xf32>
    %163 = tpu.matmul %160, %161, %cst_65 {dimension_numbers = #tpu.dot_dimension_numbers<[1], [1], [0], [0], [0, 0, 1, 0], [], []>} : vector<8x8xf32>, vector<8x8xf32>, vector<8x8xf32> -> vector<8x8xf32>
    %cst_66 = arith.constant 0.353553385 : f32
    %164 = vector.broadcast %cst_66 : f32 to vector<8x8xf32>
    %165 = arith.mulf %163, %164 : vector<8x8xf32>
    %166 = vector.broadcast %99 : vector<1x8xf32> to vector<8x8xf32>
    %167 = arith.addf %165, %166 : vector<8x8xf32>
    %cst_67 = arith.constant dense<0xFF800000> : vector<8xf32>
    %168 = vector.multi_reduction <maximumf>, %167, %cst_67 [1] : vector<8x8xf32> to vector<8xf32>
    %169 = vector.shape_cast %168 : vector<8xf32> to vector<8x1xf32>
    %170 = vector.broadcast %169 : vector<8x1xf32> to vector<8x8xf32>
    %171 = arith.subf %167, %170 : vector<8x8xf32>
    %172 = math.exp %171 : vector<8x8xf32>
    %cst_68 = arith.constant dense<0.000000e+00> : vector<8xf32>
    %173 = vector.multi_reduction <add>, %172, %cst_68 [1] : vector<8x8xf32> to vector<8xf32>
    %174 = vector.shape_cast %173 : vector<8xf32> to vector<8x1xf32>
    %175 = tpu.reciprocal %174 {approx = true} : vector<8x1xf32> -> vector<8x1xf32>
    %176 = vector.broadcast %175 : vector<8x1xf32> to vector<8x8xf32>
    %177 = arith.mulf %172, %176 : vector<8x8xf32>
    %cst_69 = arith.constant dense<0.000000e+00> : vector<8x8xf32>
    %178 = tpu.matmul %177, %162, %cst_69 {dimension_numbers = #tpu.dot_dimension_numbers<[1], [0], [0], [1], [0, 0, 1, 1], [], []>} : vector<8x8xf32>, vector<8x8xf32>, vector<8x8xf32> -> vector<8x8xf32>
    %c8_70 = arith.constant 8 : index
    %c24_71 = arith.constant 24 : index
    %179 = vector.load %arg26[%c8_70, %c24_71] : memref<16x32xf32, #tpu.memory_space<vmem>>, vector<8x8xf32>
    tpu.vector_store %arg26[%c8_70, %c24_71], %178 {strides = array<i32>} : memref<16x32xf32, #tpu.memory_space<vmem>>, vector<8x8xf32>,
    %c0_72 = arith.constant 0 : index
    %c0_73 = arith.constant 0 : index
    %180 = vector.load %arg26[%c0_72, %c0_73] : memref<16x32xf32, #tpu.memory_space<vmem>>, vector<16x32xf32>
    %c0_74 = arith.constant 0 : index
    %c0_75 = arith.constant 0 : index
    %181 = vector.load %arg10[%c0_74, %c0_75] : memref<32x32xf32, #tpu.memory_space<vmem>>, vector<32x32xf32>
    %cst_76 = arith.constant dense<0.000000e+00> : vector<16x32xf32>
    %182 = tpu.matmul %180, %181, %cst_76 {dimension_numbers = #tpu.dot_dimension_numbers<[1], [0], [0], [1], [0, 0, 1, 1], [], []>} : vector<16x32xf32>, vector<32x32xf32>, vector<16x32xf32> -> vector<16x32xf32>
    %c0_77 = arith.constant 0 : index
    %c0_78 = arith.constant 0 : index
    %183 = vector.load %arg11[%c0_77, %c0_78] : memref<1x32xf32, #tpu.memory_space<vmem>>, vector<1x32xf32>
    %184 = vector.broadcast %183 : vector<1x32xf32> to vector<16x32xf32>
    %185 = arith.addf %182, %184 : vector<16x32xf32>
    %186 = arith.addf %185, %0 : vector<16x32xf32>
    %cst_79 = arith.constant dense<0.000000e+00> : vector<16xf32>
    %187 = vector.multi_reduction <add>, %186, %cst_79 [1] : vector<16x32xf32> to vector<16xf32>
    %188 = vector.shape_cast %187 : vector<16xf32> to vector<16x1xf32>
    %cst_80 = arith.constant 3.200000e+01 : f32
    %189 = vector.broadcast %cst_80 : f32 to vector<16x1xf32>
    %190 = arith.divf %188, %189 : vector<16x1xf32>
    %191 = vector.broadcast %190 : vector<16x1xf32> to vector<16x32xf32>
    %192 = arith.subf %186, %191 : vector<16x32xf32>
    %193 = arith.mulf %192, %192 : vector<16x32xf32>
    %cst_81 = arith.constant dense<0.000000e+00> : vector<16xf32>
    %194 = vector.multi_reduction <add>, %193, %cst_81 [1] : vector<16x32xf32> to vector<16xf32>
    %195 = vector.shape_cast %194 : vector<16xf32> to vector<16x1xf32>
    %cst_82 = arith.constant 3.200000e+01 : f32
    %196 = vector.broadcast %cst_82 : f32 to vector<16x1xf32>
    %197 = arith.divf %195, %196 : vector<16x1xf32>
    %198 = vector.broadcast %190 : vector<16x1xf32> to vector<16x32xf32>
    %199 = arith.subf %186, %198 : vector<16x32xf32>
    %cst_83 = arith.constant 9.99999996E-13 : f32
    %200 = vector.broadcast %cst_83 : f32 to vector<16x1xf32>
    %201 = arith.addf %197, %200 : vector<16x1xf32>
    %202 = math.rsqrt %201 : vector<16x1xf32>
    %203 = vector.broadcast %202 : vector<16x1xf32> to vector<16x32xf32>
    %204 = arith.mulf %199, %203 : vector<16x32xf32>
    %c0_84 = arith.constant 0 : index
    %c0_85 = arith.constant 0 : index
    %205 = vector.load %arg12[%c0_84, %c0_85] : memref<1x32xf32, #tpu.memory_space<vmem>>, vector<1x32xf32>
    %206 = vector.broadcast %205 : vector<1x32xf32> to vector<16x32xf32>
    %207 = arith.mulf %204, %206 : vector<16x32xf32>
    %c0_86 = arith.constant 0 : index
    %c0_87 = arith.constant 0 : index
    %208 = vector.load %arg13[%c0_86, %c0_87] : memref<1x32xf32, #tpu.memory_space<vmem>>, vector<1x32xf32>
    %209 = vector.broadcast %208 : vector<1x32xf32> to vector<16x32xf32>
    %210 = arith.addf %207, %209 : vector<16x32xf32>
    %211 = arith.addf %210, %0 : vector<16x32xf32>
    %212 = arith.mulf %211, %211 : vector<16x32xf32>
    %cst_88 = arith.constant dense<0.000000e+00> : vector<16xf32>
    %213 = vector.multi_reduction <add>, %212, %cst_88 [1] : vector<16x32xf32> to vector<16xf32>
    %214 = vector.shape_cast %213 : vector<16xf32> to vector<16x1xf32>
    %cst_89 = arith.constant 3.200000e+01 : f32
    %215 = vector.broadcast %cst_89 : f32 to vector<16x1xf32>
    %216 = arith.divf %214, %215 : vector<16x1xf32>
    %cst_90 = arith.constant 9.99999974E-6 : f32
    %217 = vector.broadcast %cst_90 : f32 to vector<16x1xf32>
    %218 = arith.addf %216, %217 : vector<16x1xf32>
    %219 = math.rsqrt %218 : vector<16x1xf32>
    %220 = vector.broadcast %219 : vector<16x1xf32> to vector<16x32xf32>
    %221 = arith.mulf %211, %220 : vector<16x32xf32>
    %c0_91 = arith.constant 0 : index
    %c0_92 = arith.constant 0 : index
    %222 = vector.load %arg14[%c0_91, %c0_92] : memref<1x32xf32, #tpu.memory_space<vmem>>, vector<1x32xf32>
    %223 = vector.broadcast %222 : vector<1x32xf32> to vector<16x32xf32>
    %224 = arith.mulf %221, %223 : vector<16x32xf32>
    %c0_93 = arith.constant 0 : index
    %c0_94 = arith.constant 0 : index
    %225 = vector.load %arg15[%c0_93, %c0_94] : memref<32x128xf32, #tpu.memory_space<vmem>>, vector<32x128xf32>
    %cst_95 = arith.constant dense<0.000000e+00> : vector<16x128xf32>
    %226 = tpu.matmul %224, %225, %cst_95 {dimension_numbers = #tpu.dot_dimension_numbers<[1], [0], [0], [1], [0, 0, 1, 1], [], []>} : vector<16x32xf32>, vector<32x128xf32>, vector<16x128xf32> -> vector<16x128xf32>
    %227 = vector.extract_strided_slice %226 {offsets = [0, 0], sizes = [16, 64], strides = [1, 1]} : vector<16x128xf32> to vector<16x64xf32>
    %228 = vector.extract_strided_slice %226 {offsets = [0, 64], sizes = [16, 64], strides = [1, 1]} : vector<16x128xf32> to vector<16x64xf32>
    %229 = vector.broadcast %2 : vector<16x1xf32> to vector<16x64xf32>
    %230 = arith.mulf %227, %229 : vector<16x64xf32>
    %231 = tpu.iota {dimensions = array<i32: 0>} : vector<16x64xi32>
    %c8_i32 = arith.constant 8 : i32
    %c0_i32 = arith.constant 0 : i32
    %232 = arith.cmpi eq, %c8_i32, %c0_i32 : i32
    %c1_i32 = arith.constant 1 : i32
    %233 = arith.select %232, %c1_i32, %c8_i32 : i32
    %234 = vector.broadcast %233 : i32 to vector<16x64xi32>
    %235 = arith.remsi %231, %234 : vector<16x64xi32>
    %c0_i32_96 = arith.constant 0 : i32
    %236 = vector.broadcast %c0_i32_96 : i32 to vector<16x64xi32>
    %237 = arith.cmpi ne, %235, %236 : vector<16x64xi32>
    %c0_i32_97 = arith.constant 0 : i32
    %238 = vector.broadcast %c0_i32_97 : i32 to vector<16x64xi32>
    %239 = arith.cmpi slt, %235, %238 : vector<16x64xi32>
    %c0_i32_98 = arith.constant 0 : i32
    %240 = arith.cmpi slt, %233, %c0_i32_98 : i32
    %241 = vector.broadcast %240 : i1 to vector<16x64xi1>
    %242 = vector.broadcast %241 : vector<16x64xi1> to vector<16x64xi1>
    %243 = arith.xori %239, %242 : vector<16x64xi1>
    %244 = arith.andi %243, %237 : vector<16x64xi1>
    %245 = vector.broadcast %233 : i32 to vector<16x64xi32>
    %246 = arith.addi %235, %245 : vector<16x64xi32>
    %247 = arith.select %244, %246, %235 : vector<16x64xi1>, vector<16x64xi32>
    %c3 = arith.constant 3 : index
    %c0_99 = arith.constant 0 : index
    %248 = vector.load %arg16[%c3, %c0_99] : memref<4x64xf32, #tpu.memory_space<vmem>>, vector<1x64xf32>
    %249 = vector.broadcast %248 : vector<1x64xf32> to vector<16x64xf32>
    %250 = arith.mulf %230, %249 : vector<16x64xf32>
    %c1_i32_100 = arith.constant 1 : i32
    %251 = vector.broadcast %c1_i32_100 : i32 to vector<16x64xi32>
    %252 = arith.cmpi sge, %247, %251 : vector<16x64xi32>
    %c1_i32_101 = arith.constant 1 : i32
    %253 = tpu.dynamic_rotate %230 by %c1_i32_101 dim 0 : vector<16x64xf32>, i32 -> vector<16x64xf32>
    %cst_102 = arith.constant 0.000000e+00 : f32
    %254 = vector.broadcast %cst_102 : f32 to vector<16x64xf32>
    %255 = arith.select %252, %253, %254 : vector<16x64xi1>, vector<16x64xf32>
    %c2 = arith.constant 2 : index
    %c0_103 = arith.constant 0 : index
    %256 = vector.load %arg16[%c2, %c0_103] : memref<4x64xf32, #tpu.memory_space<vmem>>, vector<1x64xf32>
    %257 = vector.broadcast %256 : vector<1x64xf32> to vector<16x64xf32>
    %258 = arith.mulf %255, %257 : vector<16x64xf32>
    %259 = arith.addf %250, %258 : vector<16x64xf32>
    %c2_i32 = arith.constant 2 : i32
    %260 = vector.broadcast %c2_i32 : i32 to vector<16x64xi32>
    %261 = arith.cmpi sge, %247, %260 : vector<16x64xi32>
    %c2_i32_104 = arith.constant 2 : i32
    %262 = tpu.dynamic_rotate %230 by %c2_i32_104 dim 0 : vector<16x64xf32>, i32 -> vector<16x64xf32>
    %cst_105 = arith.constant 0.000000e+00 : f32
    %263 = vector.broadcast %cst_105 : f32 to vector<16x64xf32>
    %264 = arith.select %261, %262, %263 : vector<16x64xi1>, vector<16x64xf32>
    %c1 = arith.constant 1 : index
    %c0_106 = arith.constant 0 : index
    %265 = vector.load %arg16[%c1, %c0_106] : memref<4x64xf32, #tpu.memory_space<vmem>>, vector<1x64xf32>
    %266 = vector.broadcast %265 : vector<1x64xf32> to vector<16x64xf32>
    %267 = arith.mulf %264, %266 : vector<16x64xf32>
    %268 = arith.addf %259, %267 : vector<16x64xf32>
    %c3_i32 = arith.constant 3 : i32
    %269 = vector.broadcast %c3_i32 : i32 to vector<16x64xi32>
    %270 = arith.cmpi sge, %247, %269 : vector<16x64xi32>
    %c3_i32_107 = arith.constant 3 : i32
    %271 = tpu.dynamic_rotate %230 by %c3_i32_107 dim 0 : vector<16x64xf32>, i32 -> vector<16x64xf32>
    %cst_108 = arith.constant 0.000000e+00 : f32
    %272 = vector.broadcast %cst_108 : f32 to vector<16x64xf32>
    %273 = arith.select %270, %271, %272 : vector<16x64xi1>, vector<16x64xf32>
    %c0_109 = arith.constant 0 : index
    %c0_110 = arith.constant 0 : index
    %274 = vector.load %arg16[%c0_109, %c0_110] : memref<4x64xf32, #tpu.memory_space<vmem>>, vector<1x64xf32>
    %275 = vector.broadcast %274 : vector<1x64xf32> to vector<16x64xf32>
    %276 = arith.mulf %273, %275 : vector<16x64xf32>
    %277 = arith.addf %268, %276 : vector<16x64xf32>
    %c0_111 = arith.constant 0 : index
    %c0_112 = arith.constant 0 : index
    %278 = vector.load %arg17[%c0_111, %c0_112] : memref<1x64xf32, #tpu.memory_space<vmem>>, vector<1x64xf32>
    %279 = vector.broadcast %278 : vector<1x64xf32> to vector<16x64xf32>
    %280 = arith.addf %277, %279 : vector<16x64xf32>
    %cst_113 = arith.constant 0.000000e+00 : f32
    %281 = vector.broadcast %cst_113 : f32 to vector<16x64xf32>
    %282 = arith.subf %281, %280 : vector<16x64xf32>
    %283 = math.exp %282 : vector<16x64xf32>
    %cst_114 = arith.constant 1.000000e+00 : f32
    %284 = vector.broadcast %cst_114 : f32 to vector<16x64xf32>
    %285 = arith.addf %284, %283 : vector<16x64xf32>
    %cst_115 = arith.constant 1.000000e+00 : f32
    %286 = vector.broadcast %cst_115 : f32 to vector<16x64xf32>
    %287 = arith.divf %286, %285 : vector<16x64xf32>
    %288 = arith.mulf %280, %287 : vector<16x64xf32>
    %289 = vector.broadcast %2 : vector<16x1xf32> to vector<16x64xf32>
    %290 = arith.mulf %288, %289 : vector<16x64xf32>
    %c0_116 = arith.constant 0 : index
    %c0_117 = arith.constant 0 : index
    %291 = vector.load %arg18[%c0_116, %c0_117] : memref<64x18xf32, #tpu.memory_space<vmem>>, vector<64x18xf32>
    %cst_118 = arith.constant dense<0.000000e+00> : vector<16x18xf32>
    %292 = tpu.matmul %290, %291, %cst_118 {dimension_numbers = #tpu.dot_dimension_numbers<[1], [0], [0], [1], [0, 0, 1, 1], [], []>} : vector<16x64xf32>, vector<64x18xf32>, vector<16x18xf32> -> vector<16x18xf32>
    %293 = vector.extract_strided_slice %292 {offsets = [0, 0], sizes = [16, 2], strides = [1, 1]} : vector<16x18xf32> to vector<16x2xf32>
    %294 = vector.extract_strided_slice %292 {offsets = [0, 2], sizes = [16, 8], strides = [1, 1]} : vector<16x18xf32> to vector<16x8xf32>
    %295 = vector.extract_strided_slice %292 {offsets = [0, 10], sizes = [16, 8], strides = [1, 1]} : vector<16x18xf32> to vector<16x8xf32>
    %c0_119 = arith.constant 0 : index
    %c0_120 = arith.constant 0 : index
    %296 = vector.load %arg19[%c0_119, %c0_120] : memref<2x64xf32, #tpu.memory_space<vmem>>, vector<2x64xf32>
    %cst_121 = arith.constant dense<0.000000e+00> : vector<16x64xf32>
    %297 = tpu.matmul %293, %296, %cst_121 {dimension_numbers = #tpu.dot_dimension_numbers<[1], [0], [0], [1], [0, 0, 1, 1], [], []>} : vector<16x2xf32>, vector<2x64xf32>, vector<16x64xf32> -> vector<16x64xf32>
    %c0_122 = arith.constant 0 : index
    %c0_123 = arith.constant 0 : index
    %298 = vector.load %arg20[%c0_122, %c0_123] : memref<1x64xf32, #tpu.memory_space<vmem>>, vector<1x64xf32>
    %299 = vector.broadcast %298 : vector<1x64xf32> to vector<16x64xf32>
    %300 = arith.addf %297, %299 : vector<16x64xf32>
    %cst_124 = arith.constant 0.000000e+00 : f32
    %301 = vector.broadcast %cst_124 : f32 to vector<16x64xf32>
    %302 = arith.maximumf %300, %301 : vector<16x64xf32>
    %303 = math.absf %300 : vector<16x64xf32>
    %cst_125 = arith.constant 0.000000e+00 : f32
    %304 = vector.broadcast %cst_125 : f32 to vector<16x64xf32>
    %305 = arith.subf %304, %303 : vector<16x64xf32>
    %306 = math.exp %305 : vector<16x64xf32>
    %cst_126 = arith.constant 1.000000e+00 : f32
    %307 = vector.broadcast %cst_126 : f32 to vector<16x64xf32>
    %308 = arith.addf %307, %306 : vector<16x64xf32>
    %309 = math.log %308 : vector<16x64xf32>
    %310 = arith.addf %302, %309 : vector<16x64xf32>
    %c0_127 = arith.constant 0 : index
    %c0_128 = arith.constant 0 : index
    %311 = vector.load %arg21[%c0_127, %c0_128] : memref<8x64xf32, #tpu.memory_space<vmem>>, vector<8x64xf32>
    %312 = math.exp %311 : vector<8x64xf32>
    %cst_129 = arith.constant 0.000000e+00 : f32
    %313 = vector.broadcast %cst_129 : f32 to vector<8x64xf32>
    %314 = arith.subf %313, %312 : vector<8x64xf32>
    %315 = tpu.transpose %294, [1, 0] : vector<16x8xf32> -> vector<8x16xf32>
    %316 = tpu.transpose %295, [1, 0] : vector<16x8xf32> -> vector<8x16xf32>
    %317 = arith.mulf %310, %290 : vector<16x64xf32>
    %318 = vector.extract_strided_slice %310 {offsets = [0, 0], sizes = [8, 64], strides = [1, 1]} : vector<16x64xf32> to vector<8x64xf32>
    %319 = vector.shape_cast %318 : vector<8x64xf32> to vector<8x1x64xf32>
    %320 = vector.shape_cast %314 : vector<8x64xf32> to vector<1x8x64xf32>
    %321 = vector.broadcast %319 : vector<8x1x64xf32> to vector<8x8x64xf32>
    %322 = vector.broadcast %320 : vector<1x8x64xf32> to vector<8x8x64xf32>
    %323 = arith.mulf %321, %322 : vector<8x8x64xf32>
    %324 = math.exp %323 : vector<8x8x64xf32>
    %cst_130 = arith.constant 0.000000e+00 : f32
    %325 = vector.broadcast %cst_130 : f32 to vector<8x64xf32>
    %326 = vector.extract_strided_slice %315 {offsets = [0, 0], sizes = [8, 1], strides = [1, 1]} : vector<8x16xf32> to vector<8x1xf32>
    %327 = vector.extract_strided_slice %317 {offsets = [0, 0], sizes = [1, 64], strides = [1, 1]} : vector<16x64xf32> to vector<1x64xf32>
    %328 = vector.broadcast %326 : vector<8x1xf32> to vector<8x64xf32>
    %329 = vector.broadcast %327 : vector<1x64xf32> to vector<8x64xf32>
    %330 = arith.mulf %328, %329 : vector<8x64xf32>
    %331 = vector.extract_strided_slice %324 {offsets = [0, 0, 0], sizes = [1, 8, 64], strides = [1, 1, 1]} : vector<8x8x64xf32> to vector<1x8x64xf32>
    %332 = vector.shape_cast %331 : vector<1x8x64xf32> to vector<8x64xf32>
    %333 = arith.mulf %332, %325 : vector<8x64xf32>
    %334 = arith.addf %333, %330 : vector<8x64xf32>
    %335 = vector.extract_strided_slice %316 {offsets = [0, 0], sizes = [8, 1], strides = [1, 1]} : vector<8x16xf32> to vector<8x1xf32>
    %336 = vector.broadcast %335 : vector<8x1xf32> to vector<8x64xf32>
    %337 = arith.mulf %334, %336 : vector<8x64xf32>
    %cst_131 = arith.constant dense<0.000000e+00> : vector<64xf32>
    %338 = vector.multi_reduction <add>, %337, %cst_131 [0] : vector<8x64xf32> to vector<64xf32>
    %339 = vector.shape_cast %338 : vector<64xf32> to vector<1x64xf32>
    %c0_132 = arith.constant 0 : index
    %c0_133 = arith.constant 0 : index
    %340 = vector.load %arg27[%c0_132, %c0_133] : memref<16x64xf32, #tpu.memory_space<vmem>>, vector<1x64xf32>
    tpu.vector_store %arg27[%c0_132, %c0_133], %339 {strides = array<i32>} : memref<16x64xf32, #tpu.memory_space<vmem>>, vector<1x64xf32>,
    %341 = vector.extract_strided_slice %315 {offsets = [0, 1], sizes = [8, 1], strides = [1, 1]} : vector<8x16xf32> to vector<8x1xf32>
    %342 = vector.extract_strided_slice %317 {offsets = [1, 0], sizes = [1, 64], strides = [1, 1]} : vector<16x64xf32> to vector<1x64xf32>
    %343 = vector.broadcast %341 : vector<8x1xf32> to vector<8x64xf32>
    %344 = vector.broadcast %342 : vector<1x64xf32> to vector<8x64xf32>
    %345 = arith.mulf %343, %344 : vector<8x64xf32>
    %346 = vector.extract_strided_slice %324 {offsets = [1, 0, 0], sizes = [1, 8, 64], strides = [1, 1, 1]} : vector<8x8x64xf32> to vector<1x8x64xf32>
    %347 = vector.shape_cast %346 : vector<1x8x64xf32> to vector<8x64xf32>
    %348 = arith.mulf %347, %334 : vector<8x64xf32>
    %349 = arith.addf %348, %345 : vector<8x64xf32>
    %350 = vector.extract_strided_slice %316 {offsets = [0, 1], sizes = [8, 1], strides = [1, 1]} : vector<8x16xf32> to vector<8x1xf32>
    %351 = vector.broadcast %350 : vector<8x1xf32> to vector<8x64xf32>
    %352 = arith.mulf %349, %351 : vector<8x64xf32>
    %cst_134 = arith.constant dense<0.000000e+00> : vector<64xf32>
    %353 = vector.multi_reduction <add>, %352, %cst_134 [0] : vector<8x64xf32> to vector<64xf32>
    %354 = vector.shape_cast %353 : vector<64xf32> to vector<1x64xf32>
    %c1_135 = arith.constant 1 : index
    %c0_136 = arith.constant 0 : index
    %355 = vector.load %arg27[%c1_135, %c0_136] : memref<16x64xf32, #tpu.memory_space<vmem>>, vector<1x64xf32>
    tpu.vector_store %arg27[%c1_135, %c0_136], %354 {strides = array<i32>} : memref<16x64xf32, #tpu.memory_space<vmem>>, vector<1x64xf32>,
    %356 = vector.extract_strided_slice %315 {offsets = [0, 2], sizes = [8, 1], strides = [1, 1]} : vector<8x16xf32> to vector<8x1xf32>
    %357 = vector.extract_strided_slice %317 {offsets = [2, 0], sizes = [1, 64], strides = [1, 1]} : vector<16x64xf32> to vector<1x64xf32>
    %358 = vector.broadcast %356 : vector<8x1xf32> to vector<8x64xf32>
    %359 = vector.broadcast %357 : vector<1x64xf32> to vector<8x64xf32>
    %360 = arith.mulf %358, %359 : vector<8x64xf32>
    %361 = vector.extract_strided_slice %324 {offsets = [2, 0, 0], sizes = [1, 8, 64], strides = [1, 1, 1]} : vector<8x8x64xf32> to vector<1x8x64xf32>
    %362 = vector.shape_cast %361 : vector<1x8x64xf32> to vector<8x64xf32>
    %363 = arith.mulf %362, %349 : vector<8x64xf32>
    %364 = arith.addf %363, %360 : vector<8x64xf32>
    %365 = vector.extract_strided_slice %316 {offsets = [0, 2], sizes = [8, 1], strides = [1, 1]} : vector<8x16xf32> to vector<8x1xf32>
    %366 = vector.broadcast %365 : vector<8x1xf32> to vector<8x64xf32>
    %367 = arith.mulf %364, %366 : vector<8x64xf32>
    %cst_137 = arith.constant dense<0.000000e+00> : vector<64xf32>
    %368 = vector.multi_reduction <add>, %367, %cst_137 [0] : vector<8x64xf32> to vector<64xf32>
    %369 = vector.shape_cast %368 : vector<64xf32> to vector<1x64xf32>
    %c2_138 = arith.constant 2 : index
    %c0_139 = arith.constant 0 : index
    %370 = vector.load %arg27[%c2_138, %c0_139] : memref<16x64xf32, #tpu.memory_space<vmem>>, vector<1x64xf32>
    tpu.vector_store %arg27[%c2_138, %c0_139], %369 {strides = array<i32>} : memref<16x64xf32, #tpu.memory_space<vmem>>, vector<1x64xf32>,
    %371 = vector.extract_strided_slice %315 {offsets = [0, 3], sizes = [8, 1], strides = [1, 1]} : vector<8x16xf32> to vector<8x1xf32>
    %372 = vector.extract_strided_slice %317 {offsets = [3, 0], sizes = [1, 64], strides = [1, 1]} : vector<16x64xf32> to vector<1x64xf32>
    %373 = vector.broadcast %371 : vector<8x1xf32> to vector<8x64xf32>
    %374 = vector.broadcast %372 : vector<1x64xf32> to vector<8x64xf32>
    %375 = arith.mulf %373, %374 : vector<8x64xf32>
    %376 = vector.extract_strided_slice %324 {offsets = [3, 0, 0], sizes = [1, 8, 64], strides = [1, 1, 1]} : vector<8x8x64xf32> to vector<1x8x64xf32>
    %377 = vector.shape_cast %376 : vector<1x8x64xf32> to vector<8x64xf32>
    %378 = arith.mulf %377, %364 : vector<8x64xf32>
    %379 = arith.addf %378, %375 : vector<8x64xf32>
    %380 = vector.extract_strided_slice %316 {offsets = [0, 3], sizes = [8, 1], strides = [1, 1]} : vector<8x16xf32> to vector<8x1xf32>
    %381 = vector.broadcast %380 : vector<8x1xf32> to vector<8x64xf32>
    %382 = arith.mulf %379, %381 : vector<8x64xf32>
    %cst_140 = arith.constant dense<0.000000e+00> : vector<64xf32>
    %383 = vector.multi_reduction <add>, %382, %cst_140 [0] : vector<8x64xf32> to vector<64xf32>
    %384 = vector.shape_cast %383 : vector<64xf32> to vector<1x64xf32>
    %c3_141 = arith.constant 3 : index
    %c0_142 = arith.constant 0 : index
    %385 = vector.load %arg27[%c3_141, %c0_142] : memref<16x64xf32, #tpu.memory_space<vmem>>, vector<1x64xf32>
    tpu.vector_store %arg27[%c3_141, %c0_142], %384 {strides = array<i32>} : memref<16x64xf32, #tpu.memory_space<vmem>>, vector<1x64xf32>,
    %386 = vector.extract_strided_slice %315 {offsets = [0, 4], sizes = [8, 1], strides = [1, 1]} : vector<8x16xf32> to vector<8x1xf32>
    %387 = vector.extract_strided_slice %317 {offsets = [4, 0], sizes = [1, 64], strides = [1, 1]} : vector<16x64xf32> to vector<1x64xf32>
    %388 = vector.broadcast %386 : vector<8x1xf32> to vector<8x64xf32>
    %389 = vector.broadcast %387 : vector<1x64xf32> to vector<8x64xf32>
    %390 = arith.mulf %388, %389 : vector<8x64xf32>
    %391 = vector.extract_strided_slice %324 {offsets = [4, 0, 0], sizes = [1, 8, 64], strides = [1, 1, 1]} : vector<8x8x64xf32> to vector<1x8x64xf32>
    %392 = vector.shape_cast %391 : vector<1x8x64xf32> to vector<8x64xf32>
    %393 = arith.mulf %392, %379 : vector<8x64xf32>
    %394 = arith.addf %393, %390 : vector<8x64xf32>
    %395 = vector.extract_strided_slice %316 {offsets = [0, 4], sizes = [8, 1], strides = [1, 1]} : vector<8x16xf32> to vector<8x1xf32>
    %396 = vector.broadcast %395 : vector<8x1xf32> to vector<8x64xf32>
    %397 = arith.mulf %394, %396 : vector<8x64xf32>
    %cst_143 = arith.constant dense<0.000000e+00> : vector<64xf32>
    %398 = vector.multi_reduction <add>, %397, %cst_143 [0] : vector<8x64xf32> to vector<64xf32>
    %399 = vector.shape_cast %398 : vector<64xf32> to vector<1x64xf32>
    %c4 = arith.constant 4 : index
    %c0_144 = arith.constant 0 : index
    %400 = vector.load %arg27[%c4, %c0_144] : memref<16x64xf32, #tpu.memory_space<vmem>>, vector<1x64xf32>
    tpu.vector_store %arg27[%c4, %c0_144], %399 {strides = array<i32>} : memref<16x64xf32, #tpu.memory_space<vmem>>, vector<1x64xf32>,
    %401 = vector.extract_strided_slice %315 {offsets = [0, 5], sizes = [8, 1], strides = [1, 1]} : vector<8x16xf32> to vector<8x1xf32>
    %402 = vector.extract_strided_slice %317 {offsets = [5, 0], sizes = [1, 64], strides = [1, 1]} : vector<16x64xf32> to vector<1x64xf32>
    %403 = vector.broadcast %401 : vector<8x1xf32> to vector<8x64xf32>
    %404 = vector.broadcast %402 : vector<1x64xf32> to vector<8x64xf32>
    %405 = arith.mulf %403, %404 : vector<8x64xf32>
    %406 = vector.extract_strided_slice %324 {offsets = [5, 0, 0], sizes = [1, 8, 64], strides = [1, 1, 1]} : vector<8x8x64xf32> to vector<1x8x64xf32>
    %407 = vector.shape_cast %406 : vector<1x8x64xf32> to vector<8x64xf32>
    %408 = arith.mulf %407, %394 : vector<8x64xf32>
    %409 = arith.addf %408, %405 : vector<8x64xf32>
    %410 = vector.extract_strided_slice %316 {offsets = [0, 5], sizes = [8, 1], strides = [1, 1]} : vector<8x16xf32> to vector<8x1xf32>
    %411 = vector.broadcast %410 : vector<8x1xf32> to vector<8x64xf32>
    %412 = arith.mulf %409, %411 : vector<8x64xf32>
    %cst_145 = arith.constant dense<0.000000e+00> : vector<64xf32>
    %413 = vector.multi_reduction <add>, %412, %cst_145 [0] : vector<8x64xf32> to vector<64xf32>
    %414 = vector.shape_cast %413 : vector<64xf32> to vector<1x64xf32>
    %c5 = arith.constant 5 : index
    %c0_146 = arith.constant 0 : index
    %415 = vector.load %arg27[%c5, %c0_146] : memref<16x64xf32, #tpu.memory_space<vmem>>, vector<1x64xf32>
    tpu.vector_store %arg27[%c5, %c0_146], %414 {strides = array<i32>} : memref<16x64xf32, #tpu.memory_space<vmem>>, vector<1x64xf32>,
    %416 = vector.extract_strided_slice %315 {offsets = [0, 6], sizes = [8, 1], strides = [1, 1]} : vector<8x16xf32> to vector<8x1xf32>
    %417 = vector.extract_strided_slice %317 {offsets = [6, 0], sizes = [1, 64], strides = [1, 1]} : vector<16x64xf32> to vector<1x64xf32>
    %418 = vector.broadcast %416 : vector<8x1xf32> to vector<8x64xf32>
    %419 = vector.broadcast %417 : vector<1x64xf32> to vector<8x64xf32>
    %420 = arith.mulf %418, %419 : vector<8x64xf32>
    %421 = vector.extract_strided_slice %324 {offsets = [6, 0, 0], sizes = [1, 8, 64], strides = [1, 1, 1]} : vector<8x8x64xf32> to vector<1x8x64xf32>
    %422 = vector.shape_cast %421 : vector<1x8x64xf32> to vector<8x64xf32>
    %423 = arith.mulf %422, %409 : vector<8x64xf32>
    %424 = arith.addf %423, %420 : vector<8x64xf32>
    %425 = vector.extract_strided_slice %316 {offsets = [0, 6], sizes = [8, 1], strides = [1, 1]} : vector<8x16xf32> to vector<8x1xf32>
    %426 = vector.broadcast %425 : vector<8x1xf32> to vector<8x64xf32>
    %427 = arith.mulf %424, %426 : vector<8x64xf32>
    %cst_147 = arith.constant dense<0.000000e+00> : vector<64xf32>
    %428 = vector.multi_reduction <add>, %427, %cst_147 [0] : vector<8x64xf32> to vector<64xf32>
    %429 = vector.shape_cast %428 : vector<64xf32> to vector<1x64xf32>
    %c6 = arith.constant 6 : index
    %c0_148 = arith.constant 0 : index
    %430 = vector.load %arg27[%c6, %c0_148] : memref<16x64xf32, #tpu.memory_space<vmem>>, vector<1x64xf32>
    tpu.vector_store %arg27[%c6, %c0_148], %429 {strides = array<i32>} : memref<16x64xf32, #tpu.memory_space<vmem>>, vector<1x64xf32>,
    %431 = vector.extract_strided_slice %315 {offsets = [0, 7], sizes = [8, 1], strides = [1, 1]} : vector<8x16xf32> to vector<8x1xf32>
    %432 = vector.extract_strided_slice %317 {offsets = [7, 0], sizes = [1, 64], strides = [1, 1]} : vector<16x64xf32> to vector<1x64xf32>
    %433 = vector.broadcast %431 : vector<8x1xf32> to vector<8x64xf32>
    %434 = vector.broadcast %432 : vector<1x64xf32> to vector<8x64xf32>
    %435 = arith.mulf %433, %434 : vector<8x64xf32>
    %436 = vector.extract_strided_slice %324 {offsets = [7, 0, 0], sizes = [1, 8, 64], strides = [1, 1, 1]} : vector<8x8x64xf32> to vector<1x8x64xf32>
    %437 = vector.shape_cast %436 : vector<1x8x64xf32> to vector<8x64xf32>
    %438 = arith.mulf %437, %424 : vector<8x64xf32>
    %439 = arith.addf %438, %435 : vector<8x64xf32>
    %440 = vector.extract_strided_slice %316 {offsets = [0, 7], sizes = [8, 1], strides = [1, 1]} : vector<8x16xf32> to vector<8x1xf32>
    %441 = vector.broadcast %440 : vector<8x1xf32> to vector<8x64xf32>
    %442 = arith.mulf %439, %441 : vector<8x64xf32>
    %cst_149 = arith.constant dense<0.000000e+00> : vector<64xf32>
    %443 = vector.multi_reduction <add>, %442, %cst_149 [0] : vector<8x64xf32> to vector<64xf32>
    %444 = vector.shape_cast %443 : vector<64xf32> to vector<1x64xf32>
    %c7 = arith.constant 7 : index
    %c0_150 = arith.constant 0 : index
    %445 = vector.load %arg27[%c7, %c0_150] : memref<16x64xf32, #tpu.memory_space<vmem>>, vector<1x64xf32>
    tpu.vector_store %arg27[%c7, %c0_150], %444 {strides = array<i32>} : memref<16x64xf32, #tpu.memory_space<vmem>>, vector<1x64xf32>,
    %446 = vector.extract_strided_slice %310 {offsets = [8, 0], sizes = [8, 64], strides = [1, 1]} : vector<16x64xf32> to vector<8x64xf32>
    %447 = vector.shape_cast %446 : vector<8x64xf32> to vector<8x1x64xf32>
    %448 = vector.shape_cast %314 : vector<8x64xf32> to vector<1x8x64xf32>
    %449 = vector.broadcast %447 : vector<8x1x64xf32> to vector<8x8x64xf32>
    %450 = vector.broadcast %448 : vector<1x8x64xf32> to vector<8x8x64xf32>
    %451 = arith.mulf %449, %450 : vector<8x8x64xf32>
    %452 = math.exp %451 : vector<8x8x64xf32>
    %cst_151 = arith.constant 0.000000e+00 : f32
    %453 = vector.broadcast %cst_151 : f32 to vector<8x64xf32>
    %454 = vector.extract_strided_slice %315 {offsets = [0, 8], sizes = [8, 1], strides = [1, 1]} : vector<8x16xf32> to vector<8x1xf32>
    %455 = vector.extract_strided_slice %317 {offsets = [8, 0], sizes = [1, 64], strides = [1, 1]} : vector<16x64xf32> to vector<1x64xf32>
    %456 = vector.broadcast %454 : vector<8x1xf32> to vector<8x64xf32>
    %457 = vector.broadcast %455 : vector<1x64xf32> to vector<8x64xf32>
    %458 = arith.mulf %456, %457 : vector<8x64xf32>
    %459 = vector.extract_strided_slice %452 {offsets = [0, 0, 0], sizes = [1, 8, 64], strides = [1, 1, 1]} : vector<8x8x64xf32> to vector<1x8x64xf32>
    %460 = vector.shape_cast %459 : vector<1x8x64xf32> to vector<8x64xf32>
    %461 = arith.mulf %460, %453 : vector<8x64xf32>
    %462 = arith.addf %461, %458 : vector<8x64xf32>
    %463 = vector.extract_strided_slice %316 {offsets = [0, 8], sizes = [8, 1], strides = [1, 1]} : vector<8x16xf32> to vector<8x1xf32>
    %464 = vector.broadcast %463 : vector<8x1xf32> to vector<8x64xf32>
    %465 = arith.mulf %462, %464 : vector<8x64xf32>
    %cst_152 = arith.constant dense<0.000000e+00> : vector<64xf32>
    %466 = vector.multi_reduction <add>, %465, %cst_152 [0] : vector<8x64xf32> to vector<64xf32>
    %467 = vector.shape_cast %466 : vector<64xf32> to vector<1x64xf32>
    %c8_153 = arith.constant 8 : index
    %c0_154 = arith.constant 0 : index
    %468 = vector.load %arg27[%c8_153, %c0_154] : memref<16x64xf32, #tpu.memory_space<vmem>>, vector<1x64xf32>
    tpu.vector_store %arg27[%c8_153, %c0_154], %467 {strides = array<i32>} : memref<16x64xf32, #tpu.memory_space<vmem>>, vector<1x64xf32>,
    %469 = vector.extract_strided_slice %315 {offsets = [0, 9], sizes = [8, 1], strides = [1, 1]} : vector<8x16xf32> to vector<8x1xf32>
    %470 = vector.extract_strided_slice %317 {offsets = [9, 0], sizes = [1, 64], strides = [1, 1]} : vector<16x64xf32> to vector<1x64xf32>
    %471 = vector.broadcast %469 : vector<8x1xf32> to vector<8x64xf32>
    %472 = vector.broadcast %470 : vector<1x64xf32> to vector<8x64xf32>
    %473 = arith.mulf %471, %472 : vector<8x64xf32>
    %474 = vector.extract_strided_slice %452 {offsets = [1, 0, 0], sizes = [1, 8, 64], strides = [1, 1, 1]} : vector<8x8x64xf32> to vector<1x8x64xf32>
    %475 = vector.shape_cast %474 : vector<1x8x64xf32> to vector<8x64xf32>
    %476 = arith.mulf %475, %462 : vector<8x64xf32>
    %477 = arith.addf %476, %473 : vector<8x64xf32>
    %478 = vector.extract_strided_slice %316 {offsets = [0, 9], sizes = [8, 1], strides = [1, 1]} : vector<8x16xf32> to vector<8x1xf32>
    %479 = vector.broadcast %478 : vector<8x1xf32> to vector<8x64xf32>
    %480 = arith.mulf %477, %479 : vector<8x64xf32>
    %cst_155 = arith.constant dense<0.000000e+00> : vector<64xf32>
    %481 = vector.multi_reduction <add>, %480, %cst_155 [0] : vector<8x64xf32> to vector<64xf32>
    %482 = vector.shape_cast %481 : vector<64xf32> to vector<1x64xf32>
    %c9 = arith.constant 9 : index
    %c0_156 = arith.constant 0 : index
    %483 = vector.load %arg27[%c9, %c0_156] : memref<16x64xf32, #tpu.memory_space<vmem>>, vector<1x64xf32>
    tpu.vector_store %arg27[%c9, %c0_156], %482 {strides = array<i32>} : memref<16x64xf32, #tpu.memory_space<vmem>>, vector<1x64xf32>,
    %484 = vector.extract_strided_slice %315 {offsets = [0, 10], sizes = [8, 1], strides = [1, 1]} : vector<8x16xf32> to vector<8x1xf32>
    %485 = vector.extract_strided_slice %317 {offsets = [10, 0], sizes = [1, 64], strides = [1, 1]} : vector<16x64xf32> to vector<1x64xf32>
    %486 = vector.broadcast %484 : vector<8x1xf32> to vector<8x64xf32>
    %487 = vector.broadcast %485 : vector<1x64xf32> to vector<8x64xf32>
    %488 = arith.mulf %486, %487 : vector<8x64xf32>
    %489 = vector.extract_strided_slice %452 {offsets = [2, 0, 0], sizes = [1, 8, 64], strides = [1, 1, 1]} : vector<8x8x64xf32> to vector<1x8x64xf32>
    %490 = vector.shape_cast %489 : vector<1x8x64xf32> to vector<8x64xf32>
    %491 = arith.mulf %490, %477 : vector<8x64xf32>
    %492 = arith.addf %491, %488 : vector<8x64xf32>
    %493 = vector.extract_strided_slice %316 {offsets = [0, 10], sizes = [8, 1], strides = [1, 1]} : vector<8x16xf32> to vector<8x1xf32>
    %494 = vector.broadcast %493 : vector<8x1xf32> to vector<8x64xf32>
    %495 = arith.mulf %492, %494 : vector<8x64xf32>
    %cst_157 = arith.constant dense<0.000000e+00> : vector<64xf32>
    %496 = vector.multi_reduction <add>, %495, %cst_157 [0] : vector<8x64xf32> to vector<64xf32>
    %497 = vector.shape_cast %496 : vector<64xf32> to vector<1x64xf32>
    %c10 = arith.constant 10 : index
    %c0_158 = arith.constant 0 : index
    %498 = vector.load %arg27[%c10, %c0_158] : memref<16x64xf32, #tpu.memory_space<vmem>>, vector<1x64xf32>
    tpu.vector_store %arg27[%c10, %c0_158], %497 {strides = array<i32>} : memref<16x64xf32, #tpu.memory_space<vmem>>, vector<1x64xf32>,
    %499 = vector.extract_strided_slice %315 {offsets = [0, 11], sizes = [8, 1], strides = [1, 1]} : vector<8x16xf32> to vector<8x1xf32>
    %500 = vector.extract_strided_slice %317 {offsets = [11, 0], sizes = [1, 64], strides = [1, 1]} : vector<16x64xf32> to vector<1x64xf32>
    %501 = vector.broadcast %499 : vector<8x1xf32> to vector<8x64xf32>
    %502 = vector.broadcast %500 : vector<1x64xf32> to vector<8x64xf32>
    %503 = arith.mulf %501, %502 : vector<8x64xf32>
    %504 = vector.extract_strided_slice %452 {offsets = [3, 0, 0], sizes = [1, 8, 64], strides = [1, 1, 1]} : vector<8x8x64xf32> to vector<1x8x64xf32>
    %505 = vector.shape_cast %504 : vector<1x8x64xf32> to vector<8x64xf32>
    %506 = arith.mulf %505, %492 : vector<8x64xf32>
    %507 = arith.addf %506, %503 : vector<8x64xf32>
    %508 = vector.extract_strided_slice %316 {offsets = [0, 11], sizes = [8, 1], strides = [1, 1]} : vector<8x16xf32> to vector<8x1xf32>
    %509 = vector.broadcast %508 : vector<8x1xf32> to vector<8x64xf32>
    %510 = arith.mulf %507, %509 : vector<8x64xf32>
    %cst_159 = arith.constant dense<0.000000e+00> : vector<64xf32>
    %511 = vector.multi_reduction <add>, %510, %cst_159 [0] : vector<8x64xf32> to vector<64xf32>
    %512 = vector.shape_cast %511 : vector<64xf32> to vector<1x64xf32>
    %c11 = arith.constant 11 : index
    %c0_160 = arith.constant 0 : index
    %513 = vector.load %arg27[%c11, %c0_160] : memref<16x64xf32, #tpu.memory_space<vmem>>, vector<1x64xf32>
    tpu.vector_store %arg27[%c11, %c0_160], %512 {strides = array<i32>} : memref<16x64xf32, #tpu.memory_space<vmem>>, vector<1x64xf32>,
    %514 = vector.extract_strided_slice %315 {offsets = [0, 12], sizes = [8, 1], strides = [1, 1]} : vector<8x16xf32> to vector<8x1xf32>
    %515 = vector.extract_strided_slice %317 {offsets = [12, 0], sizes = [1, 64], strides = [1, 1]} : vector<16x64xf32> to vector<1x64xf32>
    %516 = vector.broadcast %514 : vector<8x1xf32> to vector<8x64xf32>
    %517 = vector.broadcast %515 : vector<1x64xf32> to vector<8x64xf32>
    %518 = arith.mulf %516, %517 : vector<8x64xf32>
    %519 = vector.extract_strided_slice %452 {offsets = [4, 0, 0], sizes = [1, 8, 64], strides = [1, 1, 1]} : vector<8x8x64xf32> to vector<1x8x64xf32>
    %520 = vector.shape_cast %519 : vector<1x8x64xf32> to vector<8x64xf32>
    %521 = arith.mulf %520, %507 : vector<8x64xf32>
    %522 = arith.addf %521, %518 : vector<8x64xf32>
    %523 = vector.extract_strided_slice %316 {offsets = [0, 12], sizes = [8, 1], strides = [1, 1]} : vector<8x16xf32> to vector<8x1xf32>
    %524 = vector.broadcast %523 : vector<8x1xf32> to vector<8x64xf32>
    %525 = arith.mulf %522, %524 : vector<8x64xf32>
    %cst_161 = arith.constant dense<0.000000e+00> : vector<64xf32>
    %526 = vector.multi_reduction <add>, %525, %cst_161 [0] : vector<8x64xf32> to vector<64xf32>
    %527 = vector.shape_cast %526 : vector<64xf32> to vector<1x64xf32>
    %c12 = arith.constant 12 : index
    %c0_162 = arith.constant 0 : index
    %528 = vector.load %arg27[%c12, %c0_162] : memref<16x64xf32, #tpu.memory_space<vmem>>, vector<1x64xf32>
    tpu.vector_store %arg27[%c12, %c0_162], %527 {strides = array<i32>} : memref<16x64xf32, #tpu.memory_space<vmem>>, vector<1x64xf32>,
    %529 = vector.extract_strided_slice %315 {offsets = [0, 13], sizes = [8, 1], strides = [1, 1]} : vector<8x16xf32> to vector<8x1xf32>
    %530 = vector.extract_strided_slice %317 {offsets = [13, 0], sizes = [1, 64], strides = [1, 1]} : vector<16x64xf32> to vector<1x64xf32>
    %531 = vector.broadcast %529 : vector<8x1xf32> to vector<8x64xf32>
    %532 = vector.broadcast %530 : vector<1x64xf32> to vector<8x64xf32>
    %533 = arith.mulf %531, %532 : vector<8x64xf32>
    %534 = vector.extract_strided_slice %452 {offsets = [5, 0, 0], sizes = [1, 8, 64], strides = [1, 1, 1]} : vector<8x8x64xf32> to vector<1x8x64xf32>
    %535 = vector.shape_cast %534 : vector<1x8x64xf32> to vector<8x64xf32>
    %536 = arith.mulf %535, %522 : vector<8x64xf32>
    %537 = arith.addf %536, %533 : vector<8x64xf32>
    %538 = vector.extract_strided_slice %316 {offsets = [0, 13], sizes = [8, 1], strides = [1, 1]} : vector<8x16xf32> to vector<8x1xf32>
    %539 = vector.broadcast %538 : vector<8x1xf32> to vector<8x64xf32>
    %540 = arith.mulf %537, %539 : vector<8x64xf32>
    %cst_163 = arith.constant dense<0.000000e+00> : vector<64xf32>
    %541 = vector.multi_reduction <add>, %540, %cst_163 [0] : vector<8x64xf32> to vector<64xf32>
    %542 = vector.shape_cast %541 : vector<64xf32> to vector<1x64xf32>
    %c13 = arith.constant 13 : index
    %c0_164 = arith.constant 0 : index
    %543 = vector.load %arg27[%c13, %c0_164] : memref<16x64xf32, #tpu.memory_space<vmem>>, vector<1x64xf32>
    tpu.vector_store %arg27[%c13, %c0_164], %542 {strides = array<i32>} : memref<16x64xf32, #tpu.memory_space<vmem>>, vector<1x64xf32>,
    %544 = vector.extract_strided_slice %315 {offsets = [0, 14], sizes = [8, 1], strides = [1, 1]} : vector<8x16xf32> to vector<8x1xf32>
    %545 = vector.extract_strided_slice %317 {offsets = [14, 0], sizes = [1, 64], strides = [1, 1]} : vector<16x64xf32> to vector<1x64xf32>
    %546 = vector.broadcast %544 : vector<8x1xf32> to vector<8x64xf32>
    %547 = vector.broadcast %545 : vector<1x64xf32> to vector<8x64xf32>
    %548 = arith.mulf %546, %547 : vector<8x64xf32>
    %549 = vector.extract_strided_slice %452 {offsets = [6, 0, 0], sizes = [1, 8, 64], strides = [1, 1, 1]} : vector<8x8x64xf32> to vector<1x8x64xf32>
    %550 = vector.shape_cast %549 : vector<1x8x64xf32> to vector<8x64xf32>
    %551 = arith.mulf %550, %537 : vector<8x64xf32>
    %552 = arith.addf %551, %548 : vector<8x64xf32>
    %553 = vector.extract_strided_slice %316 {offsets = [0, 14], sizes = [8, 1], strides = [1, 1]} : vector<8x16xf32> to vector<8x1xf32>
    %554 = vector.broadcast %553 : vector<8x1xf32> to vector<8x64xf32>
    %555 = arith.mulf %552, %554 : vector<8x64xf32>
    %cst_165 = arith.constant dense<0.000000e+00> : vector<64xf32>
    %556 = vector.multi_reduction <add>, %555, %cst_165 [0] : vector<8x64xf32> to vector<64xf32>
    %557 = vector.shape_cast %556 : vector<64xf32> to vector<1x64xf32>
    %c14 = arith.constant 14 : index
    %c0_166 = arith.constant 0 : index
    %558 = vector.load %arg27[%c14, %c0_166] : memref<16x64xf32, #tpu.memory_space<vmem>>, vector<1x64xf32>
    tpu.vector_store %arg27[%c14, %c0_166], %557 {strides = array<i32>} : memref<16x64xf32, #tpu.memory_space<vmem>>, vector<1x64xf32>,
    %559 = vector.extract_strided_slice %315 {offsets = [0, 15], sizes = [8, 1], strides = [1, 1]} : vector<8x16xf32> to vector<8x1xf32>
    %560 = vector.extract_strided_slice %317 {offsets = [15, 0], sizes = [1, 64], strides = [1, 1]} : vector<16x64xf32> to vector<1x64xf32>
    %561 = vector.broadcast %559 : vector<8x1xf32> to vector<8x64xf32>
    %562 = vector.broadcast %560 : vector<1x64xf32> to vector<8x64xf32>
    %563 = arith.mulf %561, %562 : vector<8x64xf32>
    %564 = vector.extract_strided_slice %452 {offsets = [7, 0, 0], sizes = [1, 8, 64], strides = [1, 1, 1]} : vector<8x8x64xf32> to vector<1x8x64xf32>
    %565 = vector.shape_cast %564 : vector<1x8x64xf32> to vector<8x64xf32>
    %566 = arith.mulf %565, %552 : vector<8x64xf32>
    %567 = arith.addf %566, %563 : vector<8x64xf32>
    %568 = vector.extract_strided_slice %316 {offsets = [0, 15], sizes = [8, 1], strides = [1, 1]} : vector<8x16xf32> to vector<8x1xf32>
    %569 = vector.broadcast %568 : vector<8x1xf32> to vector<8x64xf32>
    %570 = arith.mulf %567, %569 : vector<8x64xf32>
    %cst_167 = arith.constant dense<0.000000e+00> : vector<64xf32>
    %571 = vector.multi_reduction <add>, %570, %cst_167 [0] : vector<8x64xf32> to vector<64xf32>
    %572 = vector.shape_cast %571 : vector<64xf32> to vector<1x64xf32>
    %c15 = arith.constant 15 : index
    %c0_168 = arith.constant 0 : index
    %573 = vector.load %arg27[%c15, %c0_168] : memref<16x64xf32, #tpu.memory_space<vmem>>, vector<1x64xf32>
    tpu.vector_store %arg27[%c15, %c0_168], %572 {strides = array<i32>} : memref<16x64xf32, #tpu.memory_space<vmem>>, vector<1x64xf32>,
    %c0_169 = arith.constant 0 : index
    %c0_170 = arith.constant 0 : index
    %574 = vector.load %arg27[%c0_169, %c0_170] : memref<16x64xf32, #tpu.memory_space<vmem>>, vector<16x64xf32>
    %c0_171 = arith.constant 0 : index
    %c0_172 = arith.constant 0 : index
    %575 = vector.load %arg22[%c0_171, %c0_172] : memref<1x64xf32, #tpu.memory_space<vmem>>, vector<1x64xf32>
    %576 = vector.broadcast %575 : vector<1x64xf32> to vector<16x64xf32>
    %577 = arith.mulf %290, %576 : vector<16x64xf32>
    %578 = arith.addf %574, %577 : vector<16x64xf32>
    %cst_173 = arith.constant 0.000000e+00 : f32
    %579 = vector.broadcast %cst_173 : f32 to vector<16x64xf32>
    %580 = arith.subf %579, %228 : vector<16x64xf32>
    %581 = math.exp %580 : vector<16x64xf32>
    %cst_174 = arith.constant 1.000000e+00 : f32
    %582 = vector.broadcast %cst_174 : f32 to vector<16x64xf32>
    %583 = arith.addf %582, %581 : vector<16x64xf32>
    %cst_175 = arith.constant 1.000000e+00 : f32
    %584 = vector.broadcast %cst_175 : f32 to vector<16x64xf32>
    %585 = arith.divf %584, %583 : vector<16x64xf32>
    %586 = arith.mulf %228, %585 : vector<16x64xf32>
    %587 = arith.mulf %578, %586 : vector<16x64xf32>
    %c0_176 = arith.constant 0 : index
    %c0_177 = arith.constant 0 : index
    %588 = vector.load %arg23[%c0_176, %c0_177] : memref<64x32xf32, #tpu.memory_space<vmem>>, vector<64x32xf32>
    %cst_178 = arith.constant dense<0.000000e+00> : vector<16x32xf32>
    %589 = tpu.matmul %587, %588, %cst_178 {dimension_numbers = #tpu.dot_dimension_numbers<[1], [0], [0], [1], [0, 0, 1, 1], [], []>} : vector<16x64xf32>, vector<64x32xf32>, vector<16x32xf32> -> vector<16x32xf32>
    %590 = arith.addf %211, %589 : vector<16x32xf32>
    %591 = arith.mulf %590, %590 : vector<16x32xf32>
    %cst_179 = arith.constant dense<0.000000e+00> : vector<16xf32>
    %592 = vector.multi_reduction <add>, %591, %cst_179 [1] : vector<16x32xf32> to vector<16xf32>
    %593 = vector.shape_cast %592 : vector<16xf32> to vector<16x1xf32>
    %cst_180 = arith.constant 3.200000e+01 : f32
    %594 = vector.broadcast %cst_180 : f32 to vector<16x1xf32>
    %595 = arith.divf %593, %594 : vector<16x1xf32>
    %cst_181 = arith.constant 9.99999997E-7 : f32
    %596 = vector.broadcast %cst_181 : f32 to vector<16x1xf32>
    %597 = arith.addf %595, %596 : vector<16x1xf32>
    %598 = math.rsqrt %597 : vector<16x1xf32>
    %599 = vector.broadcast %598 : vector<16x1xf32> to vector<16x32xf32>
    %600 = arith.mulf %590, %599 : vector<16x32xf32>
    %c0_182 = arith.constant 0 : index
    %c0_183 = arith.constant 0 : index
    %601 = vector.load %arg24[%c0_182, %c0_183] : memref<1x32xf32, #tpu.memory_space<vmem>>, vector<1x32xf32>
    %602 = vector.broadcast %601 : vector<1x32xf32> to vector<16x32xf32>
    %603 = arith.mulf %600, %602 : vector<16x32xf32>
    %c0_184 = arith.constant 0 : index
    %c0_185 = arith.constant 0 : index
    %604 = vector.load %arg25[%c0_184, %c0_185] : memref<16x32xf32, #tpu.memory_space<vmem>>, vector<16x32xf32>
    tpu.vector_store %arg25[%c0_184, %c0_185], %603 {strides = array<i32>} : memref<16x32xf32, #tpu.memory_space<vmem>>, vector<16x32xf32>,
    return
  }
  func.func @transform_0(%arg0: i32) -> (i32, i32) {
    %c0_i32 = arith.constant 0 : i32
    %c0_i32_0 = arith.constant 0 : i32
    %c0_i32_1 = arith.constant 0 : i32
    return %c0_i32, %c0_i32_0 : i32, i32
  }
  func.func @transform_1(%arg0: i32) -> (i32, i32) {
    %c0_i32 = arith.constant 0 : i32
    %c0_i32_0 = arith.constant 0 : i32
    %c0_i32_1 = arith.constant 0 : i32
    return %c0_i32, %c0_i32_0 : i32, i32
  }
  func.func @transform_2(%arg0: i32) -> (i32, i32) {
    %c0_i32 = arith.constant 0 : i32
    %c0_i32_0 = arith.constant 0 : i32
    %c0_i32_1 = arith.constant 0 : i32
    return %c0_i32, %c0_i32_0 : i32, i32
  }
  func.func @transform_3(%arg0: i32) -> (i32, i32) {
    %c0_i32 = arith.constant 0 : i32
    %c0_i32_0 = arith.constant 0 : i32
    %c0_i32_1 = arith.constant 0 : i32
    return %c0_i32, %c0_i32_0 : i32, i32
  }
  func.func @transform_4(%arg0: i32) -> (i32, i32) {
    %c0_i32 = arith.constant 0 : i32
    %c0_i32_0 = arith.constant 0 : i32
    %c0_i32_1 = arith.constant 0 : i32
    return %c0_i32, %c0_i32_0 : i32, i32
  }
  func.func @transform_5(%arg0: i32) -> (i32, i32) {
    %c0_i32 = arith.constant 0 : i32
    %c0_i32_0 = arith.constant 0 : i32
    %c0_i32_1 = arith.constant 0 : i32
    return %c0_i32, %c0_i32_0 : i32, i32
  }
  func.func @transform_6(%arg0: i32) -> (i32, i32) {
    %c0_i32 = arith.constant 0 : i32
    %c0_i32_0 = arith.constant 0 : i32
    %c0_i32_1 = arith.constant 0 : i32
    return %c0_i32, %c0_i32_0 : i32, i32
  }
  func.func @transform_7(%arg0: i32) -> (i32, i32) {
    %c0_i32 = arith.constant 0 : i32
    %c0_i32_0 = arith.constant 0 : i32
    %c0_i32_1 = arith.constant 0 : i32
    return %c0_i32, %c0_i32_0 : i32, i32
  }
  func.func @transform_8(%arg0: i32) -> (i32, i32) {
    %c0_i32 = arith.constant 0 : i32
    %c0_i32_0 = arith.constant 0 : i32
    %c0_i32_1 = arith.constant 0 : i32
    return %c0_i32, %c0_i32_0 : i32, i32
  }
  func.func @transform_9(%arg0: i32) -> (i32, i32) {
    %c0_i32 = arith.constant 0 : i32
    %c0_i32_0 = arith.constant 0 : i32
    %c0_i32_1 = arith.constant 0 : i32
    return %c0_i32, %c0_i32_0 : i32, i32
  }
  func.func @transform_10(%arg0: i32) -> (i32, i32) {
    %c0_i32 = arith.constant 0 : i32
    %c0_i32_0 = arith.constant 0 : i32
    %c0_i32_1 = arith.constant 0 : i32
    return %c0_i32, %c0_i32_0 : i32, i32
  }
  func.func @transform_11(%arg0: i32) -> (i32, i32) {
    %c0_i32 = arith.constant 0 : i32
    %c0_i32_0 = arith.constant 0 : i32
    %c0_i32_1 = arith.constant 0 : i32
    return %c0_i32, %c0_i32_0 : i32, i32
  }
  func.func @transform_12(%arg0: i32) -> (i32, i32) {
    %c0_i32 = arith.constant 0 : i32
    %c0_i32_0 = arith.constant 0 : i32
    %c0_i32_1 = arith.constant 0 : i32
    return %c0_i32, %c0_i32_0 : i32, i32
  }
  func.func @transform_13(%arg0: i32) -> (i32, i32) {
    %c0_i32 = arith.constant 0 : i32
    %c0_i32_0 = arith.constant 0 : i32
    %c0_i32_1 = arith.constant 0 : i32
    return %c0_i32, %c0_i32_0 : i32, i32
  }
  func.func @transform_14(%arg0: i32) -> (i32, i32) {
    %c0_i32 = arith.constant 0 : i32
    %c0_i32_0 = arith.constant 0 : i32
    %c0_i32_1 = arith.constant 0 : i32
    return %c0_i32, %c0_i32_0 : i32, i32
  }
  func.func @transform_15(%arg0: i32) -> (i32, i32) {
    %c0_i32 = arith.constant 0 : i32
    %c0_i32_0 = arith.constant 0 : i32
    %c0_i32_1 = arith.constant 0 : i32
    return %c0_i32, %c0_i32_0 : i32, i32
  }
  func.func @transform_16(%arg0: i32) -> (i32, i32) {
    %c0_i32 = arith.constant 0 : i32
    %c0_i32_0 = arith.constant 0 : i32
    %c0_i32_1 = arith.constant 0 : i32
    return %c0_i32, %c0_i32_0 : i32, i32
  }
  func.func @transform_17(%arg0: i32) -> (i32, i32) {
    %c0_i32 = arith.constant 0 : i32
    %c0_i32_0 = arith.constant 0 : i32
    %c0_i32_1 = arith.constant 0 : i32
    return %c0_i32, %c0_i32_0 : i32, i32
  }
  func.func @transform_18(%arg0: i32) -> (i32, i32) {
    %c0_i32 = arith.constant 0 : i32
    %c0_i32_0 = arith.constant 0 : i32
    %c0_i32_1 = arith.constant 0 : i32
    return %c0_i32, %c0_i32_0 : i32, i32
  }
  func.func @transform_19(%arg0: i32) -> (i32, i32) {
    %c0_i32 = arith.constant 0 : i32
    %c0_i32_0 = arith.constant 0 : i32
    %c0_i32_1 = arith.constant 0 : i32
    return %c0_i32, %c0_i32_0 : i32, i32
  }
  func.func @transform_20(%arg0: i32) -> (i32, i32) {
    %c0_i32 = arith.constant 0 : i32
    %c0_i32_0 = arith.constant 0 : i32
    %c0_i32_1 = arith.constant 0 : i32
    return %c0_i32, %c0_i32_0 : i32, i32
  }
  func.func @transform_21(%arg0: i32) -> (i32, i32) {
    %c0_i32 = arith.constant 0 : i32
    %c0_i32_0 = arith.constant 0 : i32
    %c0_i32_1 = arith.constant 0 : i32
    return %c0_i32, %c0_i32_0 : i32, i32
  }
  func.func @transform_22(%arg0: i32) -> (i32, i32) {
    %c0_i32 = arith.constant 0 : i32
    %c0_i32_0 = arith.constant 0 : i32
    %c0_i32_1 = arith.constant 0 : i32
    return %c0_i32, %c0_i32_0 : i32, i32
  }
  func.func @transform_23(%arg0: i32) -> (i32, i32) {
    %c0_i32 = arith.constant 0 : i32
    %c0_i32_0 = arith.constant 0 : i32
    %c0_i32_1 = arith.constant 0 : i32
    return %c0_i32, %c0_i32_0 : i32, i32
  }
  func.func @transform_24(%arg0: i32) -> (i32, i32) {
    %c0_i32 = arith.constant 0 : i32
    %c0_i32_0 = arith.constant 0 : i32
    %c0_i32_1 = arith.constant 0 : i32
    return %c0_i32, %c0_i32_0 : i32, i32
  }
}

</mosaic_0001>

<llo_original>
// kernel: tpu_custom_call.1
$region0: #{tpu_custom_call.1}
  #allocation0 [shape = 'u32[]', space=smem, size = 0x4, offset = 0x4, fixed_abs, tag = 'smem constant byte address 0x4 - core index']
  #allocation1 [shape = 'u32[144,128]{1,0:T(1,128)}', space=vmem, size = 0x12000, scoped, tag = 'internal scratch']
  #allocation2 [shape = 'f32[16,32]{1,0:T(8,128)}', space=vmem, size = 0x2000, scoped, tag = 'scratch operand']
  #allocation3 [shape = 'f32[16,64]{1,0:T(8,128)}', space=vmem, size = 0x2000, scoped, tag = 'scratch operand']
  %s0 = inlined_call_operand.hbm [shape: f32[16,32], index: 0, kind: input, shape index: {}]
  %s1 = inlined_call_operand.hbm [shape: f32[2,8], index: 1, kind: input, shape index: {}]
  %s2 = inlined_call_operand.vmem [shape: f32[16,1], index: 2, kind: input, shape index: {}]
  %s3 = inlined_call_operand.vmem [shape: f32[32,32], index: 3, kind: input, shape index: {}]
  %s4 = inlined_call_operand.vmem [shape: f32[1,32], index: 4, kind: input, shape index: {}]
  %s5 = inlined_call_operand.vmem [shape: f32[32,32], index: 5, kind: input, shape index: {}]
  %s6 = inlined_call_operand.hbm [shape: f32[1,32], index: 6, kind: input, shape index: {}]
  %s7 = inlined_call_operand.vmem [shape: f32[32,32], index: 7, kind: input, shape index: {}]
  %s8 = inlined_call_operand.hbm [shape: f32[1,32], index: 8, kind: input, shape index: {}]
  %s9 = inlined_call_operand.vmem [shape: f32[32,32], index: 9, kind: input, shape index: {}]
  %s10 = inlined_call_operand.vmem [shape: f32[1,32], index: 10, kind: input, shape index: {}]
  %s11 = inlined_call_operand.vmem [shape: f32[1,32], index: 11, kind: input, shape index: {}]
  %s12 = inlined_call_operand.vmem [shape: f32[1,32], index: 12, kind: input, shape index: {}]
  %s13 = inlined_call_operand.vmem [shape: f32[1,32], index: 13, kind: input, shape index: {}]
  %s14 = inlined_call_operand.vmem [shape: f32[32,128], index: 14, kind: input, shape index: {}]
  %s15 = inlined_call_operand.vmem [shape: f32[4,64], index: 15, kind: input, shape index: {}]
  %s16 = inlined_call_operand.vmem [shape: f32[1,64], index: 16, kind: input, shape index: {}]
  %s17 = inlined_call_operand.vmem [shape: f32[64,18], index: 17, kind: input, shape index: {}]
  %s18 = inlined_call_operand.vmem [shape: f32[2,64], index: 18, kind: input, shape index: {}]
  %s19 = inlined_call_operand.vmem [shape: f32[1,64], index: 19, kind: input, shape index: {}]
  %s20 = inlined_call_operand.vmem [shape: f32[8,64], index: 20, kind: input, shape index: {}]
  %s21 = inlined_call_operand.vmem [shape: f32[1,64], index: 21, kind: input, shape index: {}]
  %s22 = inlined_call_operand.vmem [shape: f32[64,32], index: 22, kind: input, shape index: {}]
  %s23 = inlined_call_operand.vmem [shape: f32[1,32], index: 23, kind: input, shape index: {}]
  %s24 = inlined_call_operand.hbm [shape: f32[16,32], index: 24, kind: output, shape index: {}]
  %s25 = sld [smem:[#allocation0]]
  $region122: #{tpu_custom_call.1} parent=0
    _
  %s27 = ssub.s32 1, %s25
  %s28 = scalar_select 0, %s27, %s25
  $region1: #{tpu_custom_call.1} parent=0
    #allocation4 [shape = 'u8[8192]{0}', space=vmem, size = 0x2000, scoped, tag = 'input window, operand 0, single buffered']
    #allocation5 [shape = 's32[1]{0}', space=sflag, size = 0x4, scoped, tag = 'scoped memory for tpu_custom_call.1']
    #allocation6 [shape = 's32[1]{0}', space=sflag, size = 0x4, scoped, tag = 'scoped memory for tpu_custom_call.1']
    #allocation7 [shape = 'u8[1024]{0}', space=vmem, size = 0x400, scoped, tag = 'input window, operand 1, single buffered']
    #allocation8 [shape = 's32[1]{0}', space=sflag, size = 0x4, scoped, tag = 'scoped memory for tpu_custom_call.1']
    #allocation9 [shape = 'u8[512]{0}', space=vmem, size = 0x400, scoped, tag = 'input window, operand 6, single buffered']
    #allocation10 [shape = 'u8[512]{0}', space=vmem, size = 0x400, scoped, tag = 'input window, operand 8, single buffered']
    #allocation11 [shape = 's32[1]{0}', space=sflag, size = 0x4, scoped, tag = 'scoped memory for tpu_custom_call.1']
    #allocation12 [shape = 'u8[8192]{0}', space=vmem, size = 0x2000, scoped, tag = 'output window, operand 0, single buffered']
    %29 = vsyncpa [#allocation5], 0
    %30 = vsyncpa [#allocation8], 0
    %31 = vsyncpa [#allocation11], 0
    %32 = vsyncpa [#allocation6], 0
    // Predicated region
    $region2: #{tpu_custom_call.1} parent=1 // pred_check
      _
    $region3: #{tpu_custom_call.1} parent=1 // pred_check_branch
      %34 = sbr.rel (0) target = $region5
    $region4: #{tpu_custom_call.1} parent=1 // pred_region
      %s36 = ssub.s32 256, 256
      %37 = vsyncadd [#allocation5], %s36
      %s38 = sshll.u32 [#allocation4], 4
      %s39 = int_to_ptr.vmem [resolvable:$true] %s38
      %44 = dma.hbm_to_vmem [thread:$0]  %s0, 256, %s39, [#allocation5], 128, 128, 8
    $region5: #{tpu_custom_call.1} parent=1 // pred_fallthru
      _
    // Predicated region
    $region6: #{tpu_custom_call.1} parent=1 // pred_check
      _
    $region7: #{tpu_custom_call.1} parent=1 // pred_check_branch
      %46 = sbr.rel (0) target = $region9
    $region8: #{tpu_custom_call.1} parent=1 // pred_region
      %s48 = ssub.s32 32, 32
      %49 = vsyncadd [#allocation8], %s48
      %s51 = sshll.u32 [#allocation7], 4
      %s52 = int_to_ptr.vmem [resolvable:$true] %s51
      %54 = dma.hbm_to_vmem [thread:$0]  %s1, 32, %s52, [#allocation8]
    $region9: #{tpu_custom_call.1} parent=1 // pred_fallthru
      _
    // Predicated region
    $region10: #{tpu_custom_call.1} parent=1 // pred_check
      _
    $region11: #{tpu_custom_call.1} parent=1 // pred_check_branch
      %56 = sbr.rel (0) target = $region13
    $region12: #{tpu_custom_call.1} parent=1 // pred_region
      _
    $region13: #{tpu_custom_call.1} parent=1 // pred_fallthru
      _
    // Predicated region
    $region14: #{tpu_custom_call.1} parent=1 // pred_check
      _
    $region15: #{tpu_custom_call.1} parent=1 // pred_check_branch
      %58 = sbr.rel (0) target = $region17
    $region16: #{tpu_custom_call.1} parent=1 // pred_region
      _
    $region17: #{tpu_custom_call.1} parent=1 // pred_fallthru
      _
    // Predicated region
    $region18: #{tpu_custom_call.1} parent=1 // pred_check
      _
    $region19: #{tpu_custom_call.1} parent=1 // pred_check_branch
      %60 = sbr.rel (0) target = $region21
    $region20: #{tpu_custom_call.1} parent=1 // pred_region
      _
    $region21: #{tpu_custom_call.1} parent=1 // pred_fallthru
      _
    // Predicated region
    $region22: #{tpu_custom_call.1} parent=1 // pred_check
      _
    $region23: #{tpu_custom_call.1} parent=1 // pred_check_branch
      %62 = sbr.rel (0) target = $region25
    $region24: #{tpu_custom_call.1} parent=1 // pred_region
      _
    $region25: #{tpu_custom_call.1} parent=1 // pred_fallthru
      _
    // Predicated region
    $region26: #{tpu_custom_call.1} parent=1 // pred_check
      _
    $region27: #{tpu_custom_call.1} parent=1 // pred_check_branch
      %64 = sbr.rel (0) target = $region29
    $region28: #{tpu_custom_call.1} parent=1 // pred_region
      %s66 = ssub.s32 16, 16
      %67 = vsyncadd [#allocation8], %s66
      %s69 = sshll.u32 [#allocation9], 4
      %s70 = int_to_ptr.vmem [resolvable:$true] %s69
      %72 = dma.hbm_to_vmem [thread:$0]  %s6, 16, %s70, [#allocation8]
    $region29: #{tpu_custom_call.1} parent=1 // pred_fallthru
      _
    // Predicated region
    $region30: #{tpu_custom_call.1} parent=1 // pred_check
      _
    $region31: #{tpu_custom_call.1} parent=1 // pred_check_branch
      %74 = sbr.rel (0) target = $region33
    $region32: #{tpu_custom_call.1} parent=1 // pred_region
      _
    $region33: #{tpu_custom_call.1} parent=1 // pred_fallthru
      _
    // Predicated region
    $region34: #{tpu_custom_call.1} parent=1 // pred_check
      _
    $region35: #{tpu_custom_call.1} parent=1 // pred_check_branch
      %76 = sbr.rel (0) target = $region37
    $region36: #{tpu_custom_call.1} parent=1 // pred_region
      %s78 = ssub.s32 16, 16
      %79 = vsyncadd [#allocation11], %s78
      %s81 = sshll.u32 [#allocation10], 4
      %s82 = int_to_ptr.vmem [resolvable:$true] %s81
      %84 = dma.hbm_to_vmem [thread:$0]  %s8, 16, %s82, [#allocation11]
    $region37: #{tpu_custom_call.1} parent=1 // pred_fallthru
      _
    // Predicated region
    $region38: #{tpu_custom_call.1} parent=1 // pred_check
      _
    $region39: #{tpu_custom_call.1} parent=1 // pred_check_branch
      %86 = sbr.rel (0) target = $region41
    $region40: #{tpu_custom_call.1} parent=1 // pred_region
      _
    $region41: #{tpu_custom_call.1} parent=1 // pred_fallthru
      _
    // Predicated region
    $region42: #{tpu_custom_call.1} parent=1 // pred_check
      _
    $region43: #{tpu_custom_call.1} parent=1 // pred_check_branch
      %88 = sbr.rel (0) target = $region45
    $region44: #{tpu_custom_call.1} parent=1 // pred_region
      _
    $region45: #{tpu_custom_call.1} parent=1 // pred_fallthru
      _
    // Predicated region
    $region46: #{tpu_custom_call.1} parent=1 // pred_check
      _
    $region47: #{tpu_custom_call.1} parent=1 // pred_check_branch
      %90 = sbr.rel (0) target = $region49
    $region48: #{tpu_custom_call.1} parent=1 // pred_region
      _
    $region49: #{tpu_custom_call.1} parent=1 // pred_fallthru
      _
    // Predicated region
    $region50: #{tpu_custom_call.1} parent=1 // pred_check
      _
    $region51: #{tpu_custom_call.1} parent=1 // pred_check_branch
      %92 = sbr.rel (0) target = $region53
    $region52: #{tpu_custom_call.1} parent=1 // pred_region
      _
    $region53: #{tpu_custom_call.1} parent=1 // pred_fallthru
      _
    // Predicated region
    $region54: #{tpu_custom_call.1} parent=1 // pred_check
      _
    $region55: #{tpu_custom_call.1} parent=1 // pred_check_branch
      %94 = sbr.rel (0) target = $region57
    $region56: #{tpu_custom_call.1} parent=1 // pred_region
      _
    $region57: #{tpu_custom_call.1} parent=1 // pred_fallthru
      _
    // Predicated region
    $region58: #{tpu_custom_call.1} parent=1 // pred_check
      _
    $region59: #{tpu_custom_call.1} parent=1 // pred_check_branch
      %96 = sbr.rel (0) target = $region61
    $region60: #{tpu_custom_call.1} parent=1 // pred_region
      _
    $region61: #{tpu_custom_call.1} parent=1 // pred_fallthru
      _
    // Predicated region
    $region62: #{tpu_custom_call.1} parent=1 // pred_check
      _
    $region63: #{tpu_custom_call.1} parent=1 // pred_check_branch
      %98 = sbr.rel (0) target = $region65
    $region64: #{tpu_custom_call.1} parent=1 // pred_region
      _
    $region65: #{tpu_custom_call.1} parent=1 // pred_fallthru
      _
    // Predicated region
    $region66: #{tpu_custom_call.1} parent=1 // pred_check
      _
    $region67: #{tpu_custom_call.1} parent=1 // pred_check_branch
      %100 = sbr.rel (0) target = $region69
    $region68: #{tpu_custom_call.1} parent=1 // pred_region
      _
    $region69: #{tpu_custom_call.1} parent=1 // pred_fallthru
      _
    // Predicated region
    $region70: #{tpu_custom_call.1} parent=1 // pred_check
      _
    $region71: #{tpu_custom_call.1} parent=1 // pred_check_branch
      %102 = sbr.rel (0) target = $region73
    $region72: #{tpu_custom_call.1} parent=1 // pred_region
      _
    $region73: #{tpu_custom_call.1} parent=1 // pred_fallthru
      _
    // Predicated region
    $region74: #{tpu_custom_call.1} parent=1 // pred_check
      _
    $region75: #{tpu_custom_call.1} parent=1 // pred_check_branch
      %104 = sbr.rel (0) target = $region77
    $region76: #{tpu_custom_call.1} parent=1 // pred_region
      _
    $region77: #{tpu_custom_call.1} parent=1 // pred_fallthru
      _
    // Predicated region
    $region78: #{tpu_custom_call.1} parent=1 // pred_check
      _
    $region79: #{tpu_custom_call.1} parent=1 // pred_check_branch
      %106 = sbr.rel (0) target = $region81
    $region80: #{tpu_custom_call.1} parent=1 // pred_region
      _
    $region81: #{tpu_custom_call.1} parent=1 // pred_fallthru
      _
    // Predicated region
    $region82: #{tpu_custom_call.1} parent=1 // pred_check
      _
    $region83: #{tpu_custom_call.1} parent=1 // pred_check_branch
      %108 = sbr.rel (0) target = $region85
    $region84: #{tpu_custom_call.1} parent=1 // pred_region
      _
    $region85: #{tpu_custom_call.1} parent=1 // pred_fallthru
      _
    // Predicated region
    $region86: #{tpu_custom_call.1} parent=1 // pred_check
      _
    $region87: #{tpu_custom_call.1} parent=1 // pred_check_branch
      %110 = sbr.rel (0) target = $region89
    $region88: #{tpu_custom_call.1} parent=1 // pred_region
      _
    $region89: #{tpu_custom_call.1} parent=1 // pred_fallthru
      _
    // Predicated region
    $region90: #{tpu_custom_call.1} parent=1 // pred_check
      _
    $region91: #{tpu_custom_call.1} parent=1 // pred_check_branch
      %112 = sbr.rel (0) target = $region93
    $region92: #{tpu_custom_call.1} parent=1 // pred_region
      _
    $region93: #{tpu_custom_call.1} parent=1 // pred_fallthru
      _
    // Predicated region
    $region94: #{tpu_custom_call.1} parent=1 // pred_check
      _
    $region95: #{tpu_custom_call.1} parent=1 // pred_check_branch
      %114 = sbr.rel (0) target = $region97
    $region96: #{tpu_custom_call.1} parent=1 // pred_region
      _
    $region97: #{tpu_custom_call.1} parent=1 // pred_fallthru
      _
    // Predicated region
    $region98: #{tpu_custom_call.1} parent=1 // pred_check
      _
    $region99: #{tpu_custom_call.1} parent=1 // pred_check_branch
      %116 = sbr.rel (0) target = $region101
    $region100: #{tpu_custom_call.1} parent=1 // pred_region
      %117 = dma.done [#allocation5], 256
    $region101: #{tpu_custom_call.1} parent=1 // pred_fallthru
      _
    // Predicated region
    $region102: #{tpu_custom_call.1} parent=1 // pred_check
      _
    $region103: #{tpu_custom_call.1} parent=1 // pred_check_branch
      %119 = sbr.rel (0) target = $region105
    $region104: #{tpu_custom_call.1} parent=1 // pred_region
      %120 = dma.done [#allocation8], 32
    $region105: #{tpu_custom_call.1} parent=1 // pred_fallthru
      _
    // Predicated region
    $region106: #{tpu_custom_call.1} parent=1 // pred_check
      _
    $region107: #{tpu_custom_call.1} parent=1 // pred_check_branch
      %122 = sbr.rel (0) target = $region109
    $region108: #{tpu_custom_call.1} parent=1 // pred_region
      %123 = dma.done [#allocation8], 16
    $region109: #{tpu_custom_call.1} parent=1 // pred_fallthru
      _
    // Predicated region
    $region110: #{tpu_custom_call.1} parent=1 // pred_check
      _
    $region111: #{tpu_custom_call.1} parent=1 // pred_check_branch
      %125 = sbr.rel (0) target = $region113
    $region112: #{tpu_custom_call.1} parent=1 // pred_region
      %126 = dma.done [#allocation11], 16
    $region113: #{tpu_custom_call.1} parent=1 // pred_fallthru
      _
    %v127 = vld [vmem:[#allocation4] sm:$0xff]
    %v128 = vld [vmem:[#allocation4 + $0x8] sm:$0xff]
    %v129 = vld [vmem:[#allocation7] sm:$0x3]
    %v130 = vld [vmem:[%s2] sm:$0xff]
    %v131 = vld [vmem:[%s2 + $0x8] sm:$0xff]
    %v132 = vld [vmem:[%s3] sm:$0xff]
    %v133 = vld [vmem:[%s3 + $0x8] sm:$0xff]
    %v134 = vld [vmem:[%s3 + $0x10] sm:$0xff]
    %v135 = vld [vmem:[%s3 + $0x18] sm:$0xff]
    %v136 = vld [vmem:[%s4] sm:$0x1]
    %v138 = vlaneseq
    %v139 = vshrl.u32 %v138, 7
    %v140 = vsub.s32 0, %v139
    %v141 = vrot.slane %v136, %v140
    %vm143 = vcmask 261120
    %v145 = vsel %vm143, %v127, 0
    %v148 = vsel %vm143, %v128, 0
    %150 = vmatprep.subr.mxu0 0.0
    %151 = vmatpush1.msra.mxu0 %v132
    %152 = vmatprep.subr.mxu0 0.0
    %153 = vmatpush1.msra.mxu0 %v133
    %154 = vmatprep.subr.mxu0 0.0
    %155 = vmatpush1.msra.mxu0 %v134
    %156 = vmatprep.subr.mxu0 0.0
    %157 = vmatpush1.msra.mxu0 %v135
    %158 = vmatprep.subr.mxu0 0.0
    %159 = vmatpush1.msra.mxu0 0.0
    %160 = vmatprep.subr.mxu0 0.0
    %161 = vmatpush1.msra.mxu0 0.0
    %162 = vmatprep.subr.mxu0 0.0
    %163 = vmatpush1.msra.mxu0 0.0
    %164 = vmatprep.subr.mxu0 0.0
    %165 = vmatpush1.msra.mxu0 0.0
    %166 = vmatprep.subr.mxu0 0.0
    %167 = vmatpush1.msra.mxu0 0.0
    %168 = vmatprep.subr.mxu0 0.0
    %169 = vmatpush1.msra.mxu0 0.0
    %170 = vmatprep.subr.mxu0 0.0
    %171 = vmatpush1.msra.mxu0 0.0
    %172 = vmatprep.subr.mxu0 0.0
    %173 = vmatpush1.msra.mxu0 0.0
    %174 = vmatprep.subr.mxu0 0.0
    %175 = vmatpush1.msra.mxu0 0.0
    %176 = vmatprep.subr.mxu0 0.0
    %177 = vmatpush1.msra.mxu0 0.0
    %178 = vmatprep.subr.mxu0 0.0
    %179 = vmatpush1.msra.mxu0 0.0
    %180 = vmatprep.subr.mxu0 0.0
    %181 = vmatpush1.msra.mxu0 0.0
    %182 = vmatprep.subr.mxu0 0.0
    %183 = vmatpush1.msra.mxu0 0.0
    %184 = vmatprep.subr.mxu0 0.0
    %185 = vmatpush1.msra.mxu0 0.0
    %186 = vmatprep.subr.mxu0 0.0
    %187 = vmatpush1.msra.mxu0 0.0
    %188 = vmatprep.subr.mxu0 0.0
    %189 = vmatpush1.msra.mxu0 0.0
    %190 = vmatprep.subr.mxu0 0.0
    %191 = vmatpush1.msra.mxu0 0.0
    %192 = vmatprep.subr.mxu0 0.0
    %193 = vmatpush1.msra.mxu0 0.0
    %194 = vmatprep.subr.mxu0 0.0
    %195 = vmatpush1.msra.mxu0 0.0
    %196 = vmatprep.subr.mxu0 0.0
    %197 = vmatpush1.msra.mxu0 0.0
    %198 = vmatprep.subr.mxu0 0.0
    %199 = vmatpush1.msra.mxu0 0.0
    %200 = vmatprep.subr.mxu0 0.0
    %201 = vmatpush1.msra.mxu0 0.0
    %202 = vmatprep.subr.mxu0 0.0
    %203 = vmatpush1.msra.mxu0 0.0
    %204 = vmatprep.subr.mxu0 0.0
    %205 = vmatpush1.msra.mxu0 0.0
    %206 = vmatprep.subr.mxu0 0.0
    %207 = vmatpush1.msra.mxu0 0.0
    %208 = vmatprep.subr.mxu0 0.0
    %209 = vmatpush1.msra.mxu0 0.0
    %210 = vmatprep.subr.mxu0 0.0
    %211 = vmatpush1.msra.mxu0 0.0
    %212 = vmatprep.subr.mxu0 0.0
    %213 = vmatpush1.msra.mxu0 0.0
    %214 = vmatprep.mubr.f32.mxu0 0.0
    %215 = vmatmul.mubr.f32.gmra.mrb[0].mxu0 %v145
    %v216 = vpop.f32.mrb[0].mxu0
    %v217 = vadd.f32 %v141, %v216
    %v218 = vpop.f32.mrb[0].mxu0
    %219 = vmatprep.mubr.f32.mxu0 0.0
    %220 = vmatmul.mubr.f32.gmra.mrb[0].mxu0 %v148
    %v221 = vpop.f32.mrb[0].mxu0
    %v222 = vadd.f32 %v141, %v221
    %v223 = vpop.f32.mrb[0].mxu0
    %224 = vdwg.mxu0
    %v225 = vld [vmem:[%s5] sm:$0xff]
    %v226 = vld [vmem:[%s5 + $0x8] sm:$0xff]
    %v227 = vld [vmem:[%s5 + $0x10] sm:$0xff]
    %v228 = vld [vmem:[%s5 + $0x18] sm:$0xff]
    %v229 = vld [vmem:[#allocation9] sm:$0x1]
    %v231 = vlaneseq
    %v232 = vshrl.u32 %v231, 7
    %v233 = vsub.s32 0, %v232
    %v234 = vrot.slane %v229, %v233
    %236 = vmatprep.subr.mxu0 0.0
    %237 = vmatpush1.msra.mxu0 %v225
    %238 = vmatprep.subr.mxu0 0.0
    %239 = vmatpush1.msra.mxu0 %v226
    %240 = vmatprep.subr.mxu0 0.0
    %241 = vmatpush1.msra.mxu0 %v227
    %242 = vmatprep.subr.mxu0 0.0
    %243 = vmatpush1.msra.mxu0 %v228
    %244 = vmatprep.subr.mxu0 0.0
    %245 = vmatpush1.msra.mxu0 0.0
    %246 = vmatprep.subr.mxu0 0.0
    %247 = vmatpush1.msra.mxu0 0.0
    %248 = vmatprep.subr.mxu0 0.0
    %249 = vmatpush1.msra.mxu0 0.0
    %250 = vmatprep.subr.mxu0 0.0
    %251 = vmatpush1.msra.mxu0 0.0
    %252 = vmatprep.subr.mxu0 0.0
    %253 = vmatpush1.msra.mxu0 0.0
    %254 = vmatprep.subr.mxu0 0.0
    %255 = vmatpush1.msra.mxu0 0.0
    %256 = vmatprep.subr.mxu0 0.0
    %257 = vmatpush1.msra.mxu0 0.0
    %258 = vmatprep.subr.mxu0 0.0
    %259 = vmatpush1.msra.mxu0 0.0
    %260 = vmatprep.subr.mxu0 0.0
    %261 = vmatpush1.msra.mxu0 0.0
    %262 = vmatprep.subr.mxu0 0.0
    %263 = vmatpush1.msra.mxu0 0.0
    %264 = vmatprep.subr.mxu0 0.0
    %265 = vmatpush1.msra.mxu0 0.0
    %266 = vmatprep.subr.mxu0 0.0
    %267 = vmatpush1.msra.mxu0 0.0
    %268 = vmatprep.subr.mxu0 0.0
    %269 = vmatpush1.msra.mxu0 0.0
    %270 = vmatprep.subr.mxu0 0.0
    %271 = vmatpush1.msra.mxu0 0.0
    %272 = vmatprep.subr.mxu0 0.0
    %273 = vmatpush1.msra.mxu0 0.0
    %274 = vmatprep.subr.mxu0 0.0
    %275 = vmatpush1.msra.mxu0 0.0
    %276 = vmatprep.subr.mxu0 0.0
    %277 = vmatpush1.msra.mxu0 0.0
    %278 = vmatprep.subr.mxu0 0.0
    %279 = vmatpush1.msra.mxu0 0.0
    %280 = vmatprep.subr.mxu0 0.0
    %281 = vmatpush1.msra.mxu0 0.0
    %282 = vmatprep.subr.mxu0 0.0
    %283 = vmatpush1.msra.mxu0 0.0
    %284 = vmatprep.subr.mxu0 0.0
    %285 = vmatpush1.msra.mxu0 0.0
    %286 = vmatprep.subr.mxu0 0.0
    %287 = vmatpush1.msra.mxu0 0.0
    %288 = vmatprep.subr.mxu0 0.0
    %289 = vmatpush1.msra.mxu0 0.0
    %290 = vmatprep.subr.mxu0 0.0
    %291 = vmatpush1.msra.mxu0 0.0
    %292 = vmatprep.subr.mxu0 0.0
    %293 = vmatpush1.msra.mxu0 0.0
    %294 = vmatprep.subr.mxu0 0.0
    %295 = vmatpush1.msra.mxu0 0.0
    %296 = vmatprep.subr.mxu0 0.0
    %297 = vmatpush1.msra.mxu0 0.0
    %298 = vmatprep.subr.mxu0 0.0
    %299 = vmatpush1.msra.mxu0 0.0
    %300 = vmatprep.mubr.f32.mxu0 0.0
    %301 = vmatmul.mubr.f32.gmra.mrb[0].mxu0 %v145
    %v302 = vpop.f32.mrb[0].mxu0
    %v303 = vadd.f32 %v234, %v302
    %v304 = vpop.f32.mrb[0].mxu0
    %305 = vmatprep.mubr.f32.mxu0 0.0
    %306 = vmatmul.mubr.f32.gmra.mrb[0].mxu0 %v148
    %v307 = vpop.f32.mrb[0].mxu0
    %v308 = vadd.f32 %v234, %v307
    %v309 = vpop.f32.mrb[0].mxu0
    %310 = vdwg.mxu0
    %v311 = vld [vmem:[%s7] sm:$0xff]
    %v312 = vld [vmem:[%s7 + $0x8] sm:$0xff]
    %v313 = vld [vmem:[%s7 + $0x10] sm:$0xff]
    %v314 = vld [vmem:[%s7 + $0x18] sm:$0xff]
    %v315 = vld [vmem:[#allocation10] sm:$0x1]
    %v317 = vlaneseq
    %v318 = vshrl.u32 %v317, 7
    %v319 = vsub.s32 0, %v318
    %v320 = vrot.slane %v315, %v319
    %322 = vmatprep.subr.mxu0 0.0
    %323 = vmatpush1.msra.mxu0 %v311
    %324 = vmatprep.subr.mxu0 0.0
    %325 = vmatpush1.msra.mxu0 %v312
    %326 = vmatprep.subr.mxu0 0.0
    %327 = vmatpush1.msra.mxu0 %v313
    %328 = vmatprep.subr.mxu0 0.0
    %329 = vmatpush1.msra.mxu0 %v314
    %330 = vmatprep.subr.mxu0 0.0
    %331 = vmatpush1.msra.mxu0 0.0
    %332 = vmatprep.subr.mxu0 0.0
    %333 = vmatpush1.msra.mxu0 0.0
    %334 = vmatprep.subr.mxu0 0.0
    %335 = vmatpush1.msra.mxu0 0.0
    %336 = vmatprep.subr.mxu0 0.0
    %337 = vmatpush1.msra.mxu0 0.0
    %338 = vmatprep.subr.mxu0 0.0
    %339 = vmatpush1.msra.mxu0 0.0
    %340 = vmatprep.subr.mxu0 0.0
    %341 = vmatpush1.msra.mxu0 0.0
    %342 = vmatprep.subr.mxu0 0.0
    %343 = vmatpush1.msra.mxu0 0.0
    %344 = vmatprep.subr.mxu0 0.0
    %345 = vmatpush1.msra.mxu0 0.0
    %346 = vmatprep.subr.mxu0 0.0
    %347 = vmatpush1.msra.mxu0 0.0
    %348 = vmatprep.subr.mxu0 0.0
    %349 = vmatpush1.msra.mxu0 0.0
    %350 = vmatprep.subr.mxu0 0.0
    %351 = vmatpush1.msra.mxu0 0.0
    %352 = vmatprep.subr.mxu0 0.0
    %353 = vmatpush1.msra.mxu0 0.0
    %354 = vmatprep.subr.mxu0 0.0
    %355 = vmatpush1.msra.mxu0 0.0
    %356 = vmatprep.subr.mxu0 0.0
    %357 = vmatpush1.msra.mxu0 0.0
    %358 = vmatprep.subr.mxu0 0.0
    %359 = vmatpush1.msra.mxu0 0.0
    %360 = vmatprep.subr.mxu0 0.0
    %361 = vmatpush1.msra.mxu0 0.0
    %362 = vmatprep.subr.mxu0 0.0
    %363 = vmatpush1.msra.mxu0 0.0
    %364 = vmatprep.subr.mxu0 0.0
    %365 = vmatpush1.msra.mxu0 0.0
    %366 = vmatprep.subr.mxu0 0.0
    %367 = vmatpush1.msra.mxu0 0.0
    %368 = vmatprep.subr.mxu0 0.0
    %369 = vmatpush1.msra.mxu0 0.0
    %370 = vmatprep.subr.mxu0 0.0
    %371 = vmatpush1.msra.mxu0 0.0
    %372 = vmatprep.subr.mxu0 0.0
    %373 = vmatpush1.msra.mxu0 0.0
    %374 = vmatprep.subr.mxu0 0.0
    %375 = vmatpush1.msra.mxu0 0.0
    %376 = vmatprep.subr.mxu0 0.0
    %377 = vmatpush1.msra.mxu0 0.0
    %378 = vmatprep.subr.mxu0 0.0
    %379 = vmatpush1.msra.mxu0 0.0
    %380 = vmatprep.subr.mxu0 0.0
    %381 = vmatpush1.msra.mxu0 0.0
    %382 = vmatprep.subr.mxu0 0.0
    %383 = vmatpush1.msra.mxu0 0.0
    %384 = vmatprep.subr.mxu0 0.0
    %385 = vmatpush1.msra.mxu0 0.0
    %386 = vmatprep.mubr.f32.mxu0 0.0
    %387 = vmatmul.mubr.f32.gmra.mrb[0].mxu0 %v145
    %v388 = vpop.f32.mrb[0].mxu0
    %v389 = vadd.f32 %v320, %v388
    %v390 = vpop.f32.mrb[0].mxu0
    %391 = vmatprep.mubr.f32.mxu0 0.0
    %392 = vmatmul.mubr.f32.gmra.mrb[0].mxu0 %v148
    %v393 = vpop.f32.mrb[0].mxu0
    %v394 = vadd.f32 %v320, %v393
    %v395 = vpop.f32.mrb[0].mxu0
    %396 = vdwg.mxu0
    %vm397 = vcmask 64512
    %v399 = vsel %vm397, %v217, 0
    %v402 = vsel %vm397, %v303, 0
    %404 = vmatprep.subr.mxu0 0.0
    %405 = vmatpush1.xpose.msra.mxu0 %v402
    %406 = vmatprep.subr.mxu0 0.0
    %407 = vmatpush1.xpose.msra.mxu0 0.0
    %408 = vmatprep.subr.mxu0 0.0
    %409 = vmatpush1.xpose.msra.mxu0 0.0
    %410 = vmatprep.subr.mxu0 0.0
    %411 = vmatpush1.xpose.msra.mxu0 0.0
    %412 = vmatprep.subr.mxu0 0.0
    %413 = vmatpush1.xpose.msra.mxu0 0.0
    %414 = vmatprep.subr.mxu0 0.0
    %415 = vmatpush1.xpose.msra.mxu0 0.0
    %416 = vmatprep.subr.mxu0 0.0
    %417 = vmatpush1.xpose.msra.mxu0 0.0
    %418 = vmatprep.subr.mxu0 0.0
    %419 = vmatpush1.xpose.msra.mxu0 0.0
    %420 = vmatprep.subr.mxu0 0.0
    %421 = vmatpush1.xpose.msra.mxu0 0.0
    %422 = vmatprep.subr.mxu0 0.0
    %423 = vmatpush1.xpose.msra.mxu0 0.0
    %424 = vmatprep.subr.mxu0 0.0
    %425 = vmatpush1.xpose.msra.mxu0 0.0
    %426 = vmatprep.subr.mxu0 0.0
    %427 = vmatpush1.xpose.msra.mxu0 0.0
    %428 = vmatprep.subr.mxu0 0.0
    %429 = vmatpush1.xpose.msra.mxu0 0.0
    %430 = vmatprep.subr.mxu0 0.0
    %431 = vmatpush1.xpose.msra.mxu0 0.0
    %432 = vmatprep.subr.mxu0 0.0
    %433 = vmatpush1.xpose.msra.mxu0 0.0
    %434 = vmatprep.subr.mxu0 0.0
    %435 = vmatpush1.xpose.msra.mxu0 0.0
    %436 = vmatprep.subr.mxu0 0.0
    %437 = vmatpush1.xpose.msra.mxu0 0.0
    %438 = vmatprep.subr.mxu0 0.0
    %439 = vmatpush1.xpose.msra.mxu0 0.0
    %440 = vmatprep.subr.mxu0 0.0
    %441 = vmatpush1.xpose.msra.mxu0 0.0
    %442 = vmatprep.subr.mxu0 0.0
    %443 = vmatpush1.xpose.msra.mxu0 0.0
    %444 = vmatprep.subr.mxu0 0.0
    %445 = vmatpush1.xpose.msra.mxu0 0.0
    %446 = vmatprep.subr.mxu0 0.0
    %447 = vmatpush1.xpose.msra.mxu0 0.0
    %448 = vmatprep.subr.mxu0 0.0
    %449 = vmatpush1.xpose.msra.mxu0 0.0
    %450 = vmatprep.subr.mxu0 0.0
    %451 = vmatpush1.xpose.msra.mxu0 0.0
    %452 = vmatprep.subr.mxu0 0.0
    %453 = vmatpush1.xpose.msra.mxu0 0.0
    %454 = vmatprep.subr.mxu0 0.0
    %455 = vmatpush1.xpose.msra.mxu0 0.0
    %456 = vmatprep.subr.mxu0 0.0
    %457 = vmatpush1.xpose.msra.mxu0 0.0
    %458 = vmatprep.subr.mxu0 0.0
    %459 = vmatpush1.xpose.msra.mxu0 0.0
    %460 = vmatprep.subr.mxu0 0.0
    %461 = vmatpush1.xpose.msra.mxu0 0.0
    %462 = vmatprep.subr.mxu0 0.0
    %463 = vmatpush1.xpose.msra.mxu0 0.0
    %464 = vmatprep.subr.mxu0 0.0
    %465 = vmatpush1.xpose.msra.mxu0 0.0
    %466 = vmatprep.subr.mxu0 0.0
    %467 = vmatpush1.xpose.msra.mxu0 0.0
    %468 = vmatprep.mubr.f32.mxu0 0.0
    %469 = vmatmul.mubr.f32.gmra.mrb[0].mxu0 %v399
    %v470 = vpop.f32.mrb[0].mxu0
    %v471 = vadd.f32 0.0, %v470
    %v472 = vpop.f32.mrb[0].mxu0
    %473 = vdwg.mxu0
    %v474 = vmul.f32 %v471, 0.35355338
    %v475 = vlaneseq
    %v476 = vshrl.u32 %v475, 7
    %v477 = vsub.s32 0, %v476
    %v478 = vrot.slane %v129, %v477
    %v479 = vadd.f32 %v474, %v478
    %v480 = vsel %vm397, %v479, -inf
    %481 = vmax.xlane.f32.xlu0 %v480
    %v482 = vpop.xlane.xlu0 %481
    %v483 = vsub.f32 %v479, %v482
    %v484 = vmul.f32 %v483, 1.442695
    %v485 = vpow.pop %v484
    %v486 = vsel %vm397, %v485, 0.0
    %487 = vadd.xlane.f32.xlu0 %v486
    %v488 = vpop.xlane.xlu0 %487
    %v489 = vrcp.pop %v488
    %v490 = vmul.f32 %v485, %v489
    %v492 = vsel %vm397, %v490, 0
    %494 = vmatprep.subr.mxu0 0.0
    %495 = vmatpush1.msra.mxu0 %v389
    %496 = vmatprep.subr.mxu0 0.0
    %497 = vmatpush1.msra.mxu0 0.0
    %498 = vmatprep.subr.mxu0 0.0
    %499 = vmatpush1.msra.mxu0 0.0
    %500 = vmatprep.subr.mxu0 0.0
    %501 = vmatpush1.msra.mxu0 0.0
    %502 = vmatprep.subr.mxu0 0.0
    %503 = vmatpush1.msra.mxu0 0.0
    %504 = vmatprep.subr.mxu0 0.0
    %505 = vmatpush1.msra.mxu0 0.0
    %506 = vmatprep.subr.mxu0 0.0
    %507 = vmatpush1.msra.mxu0 0.0
    %508 = vmatprep.subr.mxu0 0.0
    %509 = vmatpush1.msra.mxu0 0.0
    %510 = vmatprep.subr.mxu0 0.0
    %511 = vmatpush1.msra.mxu0 0.0
    %512 = vmatprep.subr.mxu0 0.0
    %513 = vmatpush1.msra.mxu0 0.0
    %514 = vmatprep.subr.mxu0 0.0
    %515 = vmatpush1.msra.mxu0 0.0
    %516 = vmatprep.subr.mxu0 0.0
    %517 = vmatpush1.msra.mxu0 0.0
    %518 = vmatprep.subr.mxu0 0.0
    %519 = vmatpush1.msra.mxu0 0.0
    %520 = vmatprep.subr.mxu0 0.0
    %521 = vmatpush1.msra.mxu0 0.0
    %522 = vmatprep.subr.mxu0 0.0
    %523 = vmatpush1.msra.mxu0 0.0
    %524 = vmatprep.subr.mxu0 0.0
    %525 = vmatpush1.msra.mxu0 0.0
    %526 = vmatprep.subr.mxu0 0.0
    %527 = vmatpush1.msra.mxu0 0.0
    %528 = vmatprep.subr.mxu0 0.0
    %529 = vmatpush1.msra.mxu0 0.0
    %530 = vmatprep.subr.mxu0 0.0
    %531 = vmatpush1.msra.mxu0 0.0
    %532 = vmatprep.subr.mxu0 0.0
    %533 = vmatpush1.msra.mxu0 0.0
    %534 = vmatprep.subr.mxu0 0.0
    %535 = vmatpush1.msra.mxu0 0.0
    %536 = vmatprep.subr.mxu0 0.0
    %537 = vmatpush1.msra.mxu0 0.0
    %538 = vmatprep.subr.mxu0 0.0
    %539 = vmatpush1.msra.mxu0 0.0
    %540 = vmatprep.subr.mxu0 0.0
    %541 = vmatpush1.msra.mxu0 0.0
    %542 = vmatprep.subr.mxu0 0.0
    %543 = vmatpush1.msra.mxu0 0.0
    %544 = vmatprep.subr.mxu0 0.0
    %545 = vmatpush1.msra.mxu0 0.0
    %546 = vmatprep.subr.mxu0 0.0
    %547 = vmatpush1.msra.mxu0 0.0
    %548 = vmatprep.subr.mxu0 0.0
    %549 = vmatpush1.msra.mxu0 0.0
    %550 = vmatprep.subr.mxu0 0.0
    %551 = vmatpush1.msra.mxu0 0.0
    %552 = vmatprep.subr.mxu0 0.0
    %553 = vmatpush1.msra.mxu0 0.0
    %554 = vmatprep.subr.mxu0 0.0
    %555 = vmatpush1.msra.mxu0 0.0
    %556 = vmatprep.subr.mxu0 0.0
    %557 = vmatpush1.msra.mxu0 0.0
    %558 = vmatprep.mubr.f32.mxu0 0.0
    %559 = vmatmul.mubr.f32.gmra.mrb[0].mxu0 %v492
    %v560 = vpop.f32.mrb[0].mxu0
    %v561 = vadd.f32 0.0, %v560
    %v562 = vpop.f32.mrb[0].mxu0
    %563 = vdwg.mxu0
    %564 = vst.msk [vmem:[#allocation2] sm:$0xff] %vm397, %v561
    %565 = vrot.lane.b32.xlu0 %v217, 120
    %v566 = vpop.permute.xlu0 %565
    %567 = vrot.lane.b32.xlu0 %v303, 120
    %v568 = vpop.permute.xlu0 %567
    %v569 = vsel %vm397, %v566, 0
    %v571 = vsel %vm397, %v568, 0
    %573 = vmatprep.subr.mxu0 0.0
    %574 = vmatpush1.xpose.msra.mxu0 %v571
    %575 = vmatprep.subr.mxu0 0.0
    %576 = vmatpush1.xpose.msra.mxu0 0.0
    %577 = vmatprep.subr.mxu0 0.0
    %578 = vmatpush1.xpose.msra.mxu0 0.0
    %579 = vmatprep.subr.mxu0 0.0
    %580 = vmatpush1.xpose.msra.mxu0 0.0
    %581 = vmatprep.subr.mxu0 0.0
    %582 = vmatpush1.xpose.msra.mxu0 0.0
    %583 = vmatprep.subr.mxu0 0.0
    %584 = vmatpush1.xpose.msra.mxu0 0.0
    %585 = vmatprep.subr.mxu0 0.0
    %586 = vmatpush1.xpose.msra.mxu0 0.0
    %587 = vmatprep.subr.mxu0 0.0
    %588 = vmatpush1.xpose.msra.mxu0 0.0
    %589 = vmatprep.subr.mxu0 0.0
    %590 = vmatpush1.xpose.msra.mxu0 0.0
    %591 = vmatprep.subr.mxu0 0.0
    %592 = vmatpush1.xpose.msra.mxu0 0.0
    %593 = vmatprep.subr.mxu0 0.0
    %594 = vmatpush1.xpose.msra.mxu0 0.0
    %595 = vmatprep.subr.mxu0 0.0
    %596 = vmatpush1.xpose.msra.mxu0 0.0
    %597 = vmatprep.subr.mxu0 0.0
    %598 = vmatpush1.xpose.msra.mxu0 0.0
    %599 = vmatprep.subr.mxu0 0.0
    %600 = vmatpush1.xpose.msra.mxu0 0.0
    %601 = vmatprep.subr.mxu0 0.0
    %602 = vmatpush1.xpose.msra.mxu0 0.0
    %603 = vmatprep.subr.mxu0 0.0
    %604 = vmatpush1.xpose.msra.mxu0 0.0
    %605 = vmatprep.subr.mxu0 0.0
    %606 = vmatpush1.xpose.msra.mxu0 0.0
    %607 = vmatprep.subr.mxu0 0.0
    %608 = vmatpush1.xpose.msra.mxu0 0.0
    %609 = vmatprep.subr.mxu0 0.0
    %610 = vmatpush1.xpose.msra.mxu0 0.0
    %611 = vmatprep.subr.mxu0 0.0
    %612 = vmatpush1.xpose.msra.mxu0 0.0
    %613 = vmatprep.subr.mxu0 0.0
    %614 = vmatpush1.xpose.msra.mxu0 0.0
    %615 = vmatprep.subr.mxu0 0.0
    %616 = vmatpush1.xpose.msra.mxu0 0.0
    %617 = vmatprep.subr.mxu0 0.0
    %618 = vmatpush1.xpose.msra.mxu0 0.0
    %619 = vmatprep.subr.mxu0 0.0
    %620 = vmatpush1.xpose.msra.mxu0 0.0
    %621 = vmatprep.subr.mxu0 0.0
    %622 = vmatpush1.xpose.msra.mxu0 0.0
    %623 = vmatprep.subr.mxu0 0.0
    %624 = vmatpush1.xpose.msra.mxu0 0.0
    %625 = vmatprep.subr.mxu0 0.0
    %626 = vmatpush1.xpose.msra.mxu0 0.0
    %627 = vmatprep.subr.mxu0 0.0
    %628 = vmatpush1.xpose.msra.mxu0 0.0
    %629 = vmatprep.subr.mxu0 0.0
    %630 = vmatpush1.xpose.msra.mxu0 0.0
    %631 = vmatprep.subr.mxu0 0.0
    %632 = vmatpush1.xpose.msra.mxu0 0.0
    %633 = vmatprep.subr.mxu0 0.0
    %634 = vmatpush1.xpose.msra.mxu0 0.0
    %635 = vmatprep.subr.mxu0 0.0
    %636 = vmatpush1.xpose.msra.mxu0 0.0
    %637 = vmatprep.mubr.f32.mxu0 0.0
    %638 = vmatmul.mubr.f32.gmra.mrb[0].mxu0 %v569
    %v639 = vpop.f32.mrb[0].mxu0
    %v640 = vadd.f32 0.0, %v639
    %v641 = vpop.f32.mrb[0].mxu0
    %642 = vdwg.mxu0
    %v643 = vmul.f32 %v640, 0.35355338
    %v644 = vadd.f32 %v643, %v478
    %v645 = vsel %vm397, %v644, -inf
    %646 = vmax.xlane.f32.xlu0 %v645
    %v647 = vpop.xlane.xlu0 %646
    %v648 = vsub.f32 %v644, %v647
    %v649 = vmul.f32 %v648, 1.442695
    %v650 = vpow.pop %v649
    %v651 = vsel %vm397, %v650, 0.0
    %652 = vadd.xlane.f32.xlu0 %v651
    %v653 = vpop.xlane.xlu0 %652
    %v654 = vrcp.pop %v653
    %v655 = vmul.f32 %v650, %v654
    %657 = vrot.lane.b32.xlu0 %v389, 120
    %v658 = vpop.permute.xlu0 %657
    %v661 = vsel %vm397, %v655, 0
    %663 = vmatprep.subr.mxu0 0.0
    %664 = vmatpush1.msra.mxu0 %v658
    %665 = vmatprep.subr.mxu0 0.0
    %666 = vmatpush1.msra.mxu0 0.0
    %667 = vmatprep.subr.mxu0 0.0
    %668 = vmatpush1.msra.mxu0 0.0
    %669 = vmatprep.subr.mxu0 0.0
    %670 = vmatpush1.msra.mxu0 0.0
    %671 = vmatprep.subr.mxu0 0.0
    %672 = vmatpush1.msra.mxu0 0.0
    %673 = vmatprep.subr.mxu0 0.0
    %674 = vmatpush1.msra.mxu0 0.0
    %675 = vmatprep.subr.mxu0 0.0
    %676 = vmatpush1.msra.mxu0 0.0
    %677 = vmatprep.subr.mxu0 0.0
    %678 = vmatpush1.msra.mxu0 0.0
    %679 = vmatprep.subr.mxu0 0.0
    %680 = vmatpush1.msra.mxu0 0.0
    %681 = vmatprep.subr.mxu0 0.0
    %682 = vmatpush1.msra.mxu0 0.0
    %683 = vmatprep.subr.mxu0 0.0
    %684 = vmatpush1.msra.mxu0 0.0
    %685 = vmatprep.subr.mxu0 0.0
    %686 = vmatpush1.msra.mxu0 0.0
    %687 = vmatprep.subr.mxu0 0.0
    %688 = vmatpush1.msra.mxu0 0.0
    %689 = vmatprep.subr.mxu0 0.0
    %690 = vmatpush1.msra.mxu0 0.0
    %691 = vmatprep.subr.mxu0 0.0
    %692 = vmatpush1.msra.mxu0 0.0
    %693 = vmatprep.subr.mxu0 0.0
    %694 = vmatpush1.msra.mxu0 0.0
    %695 = vmatprep.subr.mxu0 0.0
    %696 = vmatpush1.msra.mxu0 0.0
    %697 = vmatprep.subr.mxu0 0.0
    %698 = vmatpush1.msra.mxu0 0.0
    %699 = vmatprep.subr.mxu0 0.0
    %700 = vmatpush1.msra.mxu0 0.0
    %701 = vmatprep.subr.mxu0 0.0
    %702 = vmatpush1.msra.mxu0 0.0
    %703 = vmatprep.subr.mxu0 0.0
    %704 = vmatpush1.msra.mxu0 0.0
    %705 = vmatprep.subr.mxu0 0.0
    %706 = vmatpush1.msra.mxu0 0.0
    %707 = vmatprep.subr.mxu0 0.0
    %708 = vmatpush1.msra.mxu0 0.0
    %709 = vmatprep.subr.mxu0 0.0
    %710 = vmatpush1.msra.mxu0 0.0
    %711 = vmatprep.subr.mxu0 0.0
    %712 = vmatpush1.msra.mxu0 0.0
    %713 = vmatprep.subr.mxu0 0.0
    %714 = vmatpush1.msra.mxu0 0.0
    %715 = vmatprep.subr.mxu0 0.0
    %716 = vmatpush1.msra.mxu0 0.0
    %717 = vmatprep.subr.mxu0 0.0
    %718 = vmatpush1.msra.mxu0 0.0
    %719 = vmatprep.subr.mxu0 0.0
    %720 = vmatpush1.msra.mxu0 0.0
    %721 = vmatprep.subr.mxu0 0.0
    %722 = vmatpush1.msra.mxu0 0.0
    %723 = vmatprep.subr.mxu0 0.0
    %724 = vmatpush1.msra.mxu0 0.0
    %725 = vmatprep.subr.mxu0 0.0
    %726 = vmatpush1.msra.mxu0 0.0
    %727 = vmatprep.mubr.f32.mxu0 0.0
    %728 = vmatmul.mubr.f32.gmra.mrb[0].mxu0 %v661
    %v729 = vpop.f32.mrb[0].mxu0
    %v730 = vadd.f32 0.0, %v729
    %v731 = vpop.f32.mrb[0].mxu0
    %732 = vdwg.mxu0
    %734 = vrot.lane.b32.xlu0 %v730, 8
    %v735 = vpop.permute.xlu0 %734
    %vm737 = vcmask 130112
    %738 = vst.msk [vmem:[#allocation2] sm:$0xff] %vm737, %v735
    %739 = vrot.lane.b32.xlu0 %v217, 112
    %v740 = vpop.permute.xlu0 %739
    %741 = vrot.lane.b32.xlu0 %v303, 112
    %v742 = vpop.permute.xlu0 %741
    %v743 = vsel %vm397, %v740, 0
    %v745 = vsel %vm397, %v742, 0
    %747 = vmatprep.subr.mxu0 0.0
    %748 = vmatpush1.xpose.msra.mxu0 %v745
    %749 = vmatprep.subr.mxu0 0.0
    %750 = vmatpush1.xpose.msra.mxu0 0.0
    %751 = vmatprep.subr.mxu0 0.0
    %752 = vmatpush1.xpose.msra.mxu0 0.0
    %753 = vmatprep.subr.mxu0 0.0
    %754 = vmatpush1.xpose.msra.mxu0 0.0
    %755 = vmatprep.subr.mxu0 0.0
    %756 = vmatpush1.xpose.msra.mxu0 0.0
    %757 = vmatprep.subr.mxu0 0.0
    %758 = vmatpush1.xpose.msra.mxu0 0.0
    %759 = vmatprep.subr.mxu0 0.0
    %760 = vmatpush1.xpose.msra.mxu0 0.0
    %761 = vmatprep.subr.mxu0 0.0
    %762 = vmatpush1.xpose.msra.mxu0 0.0
    %763 = vmatprep.subr.mxu0 0.0
    %764 = vmatpush1.xpose.msra.mxu0 0.0
    %765 = vmatprep.subr.mxu0 0.0
    %766 = vmatpush1.xpose.msra.mxu0 0.0
    %767 = vmatprep.subr.mxu0 0.0
    %768 = vmatpush1.xpose.msra.mxu0 0.0
    %769 = vmatprep.subr.mxu0 0.0
    %770 = vmatpush1.xpose.msra.mxu0 0.0
    %771 = vmatprep.subr.mxu0 0.0
    %772 = vmatpush1.xpose.msra.mxu0 0.0
    %773 = vmatprep.subr.mxu0 0.0
    %774 = vmatpush1.xpose.msra.mxu0 0.0
    %775 = vmatprep.subr.mxu0 0.0
    %776 = vmatpush1.xpose.msra.mxu0 0.0
    %777 = vmatprep.subr.mxu0 0.0
    %778 = vmatpush1.xpose.msra.mxu0 0.0
    %779 = vmatprep.subr.mxu0 0.0
    %780 = vmatpush1.xpose.msra.mxu0 0.0
    %781 = vmatprep.subr.mxu0 0.0
    %782 = vmatpush1.xpose.msra.mxu0 0.0
    %783 = vmatprep.subr.mxu0 0.0
    %784 = vmatpush1.xpose.msra.mxu0 0.0
    %785 = vmatprep.subr.mxu0 0.0
    %786 = vmatpush1.xpose.msra.mxu0 0.0
    %787 = vmatprep.subr.mxu0 0.0
    %788 = vmatpush1.xpose.msra.mxu0 0.0
    %789 = vmatprep.subr.mxu0 0.0
    %790 = vmatpush1.xpose.msra.mxu0 0.0
    %791 = vmatprep.subr.mxu0 0.0
    %792 = vmatpush1.xpose.msra.mxu0 0.0
    %793 = vmatprep.subr.mxu0 0.0
    %794 = vmatpush1.xpose.msra.mxu0 0.0
    %795 = vmatprep.subr.mxu0 0.0
    %796 = vmatpush1.xpose.msra.mxu0 0.0
    %797 = vmatprep.subr.mxu0 0.0
    %798 = vmatpush1.xpose.msra.mxu0 0.0
    %799 = vmatprep.subr.mxu0 0.0
    %800 = vmatpush1.xpose.msra.mxu0 0.0
    %801 = vmatprep.subr.mxu0 0.0
    %802 = vmatpush1.xpose.msra.mxu0 0.0
    %803 = vmatprep.subr.mxu0 0.0
    %804 = vmatpush1.xpose.msra.mxu0 0.0
    %805 = vmatprep.subr.mxu0 0.0
    %806 = vmatpush1.xpose.msra.mxu0 0.0
    %807 = vmatprep.subr.mxu0 0.0
    %808 = vmatpush1.xpose.msra.mxu0 0.0
    %809 = vmatprep.subr.mxu0 0.0
    %810 = vmatpush1.xpose.msra.mxu0 0.0
    %811 = vmatprep.mubr.f32.mxu0 0.0
    %812 = vmatmul.mubr.f32.gmra.mrb[0].mxu0 %v743
    %v813 = vpop.f32.mrb[0].mxu0
    %v814 = vadd.f32 0.0, %v813
    %v815 = vpop.f32.mrb[0].mxu0
    %816 = vdwg.mxu0
    %v817 = vmul.f32 %v814, 0.35355338
    %v818 = vadd.f32 %v817, %v478
    %v819 = vsel %vm397, %v818, -inf
    %820 = vmax.xlane.f32.xlu0 %v819
    %v821 = vpop.xlane.xlu0 %820
    %v822 = vsub.f32 %v818, %v821
    %v823 = vmul.f32 %v822, 1.442695
    %v824 = vpow.pop %v823
    %v825 = vsel %vm397, %v824, 0.0
    %826 = vadd.xlane.f32.xlu0 %v825
    %v827 = vpop.xlane.xlu0 %826
    %v828 = vrcp.pop %v827
    %v829 = vmul.f32 %v824, %v828
    %830 = vrot.lane.b32.xlu0 %v389, 112
    %v831 = vpop.permute.xlu0 %830
    %v834 = vsel %vm397, %v829, 0
    %836 = vmatprep.subr.mxu0 0.0
    %837 = vmatpush1.msra.mxu0 %v831
    %838 = vmatprep.subr.mxu0 0.0
    %839 = vmatpush1.msra.mxu0 0.0
    %840 = vmatprep.subr.mxu0 0.0
    %841 = vmatpush1.msra.mxu0 0.0
    %842 = vmatprep.subr.mxu0 0.0
    %843 = vmatpush1.msra.mxu0 0.0
    %844 = vmatprep.subr.mxu0 0.0
    %845 = vmatpush1.msra.mxu0 0.0
    %846 = vmatprep.subr.mxu0 0.0
    %847 = vmatpush1.msra.mxu0 0.0
    %848 = vmatprep.subr.mxu0 0.0
    %849 = vmatpush1.msra.mxu0 0.0
    %850 = vmatprep.subr.mxu0 0.0
    %851 = vmatpush1.msra.mxu0 0.0
    %852 = vmatprep.subr.mxu0 0.0
    %853 = vmatpush1.msra.mxu0 0.0
    %854 = vmatprep.subr.mxu0 0.0
    %855 = vmatpush1.msra.mxu0 0.0
    %856 = vmatprep.subr.mxu0 0.0
    %857 = vmatpush1.msra.mxu0 0.0
    %858 = vmatprep.subr.mxu0 0.0
    %859 = vmatpush1.msra.mxu0 0.0
    %860 = vmatprep.subr.mxu0 0.0
    %861 = vmatpush1.msra.mxu0 0.0
    %862 = vmatprep.subr.mxu0 0.0
    %863 = vmatpush1.msra.mxu0 0.0
    %864 = vmatprep.subr.mxu0 0.0
    %865 = vmatpush1.msra.mxu0 0.0
    %866 = vmatprep.subr.mxu0 0.0
    %867 = vmatpush1.msra.mxu0 0.0
    %868 = vmatprep.subr.mxu0 0.0
    %869 = vmatpush1.msra.mxu0 0.0
    %870 = vmatprep.subr.mxu0 0.0
    %871 = vmatpush1.msra.mxu0 0.0
    %872 = vmatprep.subr.mxu0 0.0
    %873 = vmatpush1.msra.mxu0 0.0
    %874 = vmatprep.subr.mxu0 0.0
    %875 = vmatpush1.msra.mxu0 0.0
    %876 = vmatprep.subr.mxu0 0.0
    %877 = vmatpush1.msra.mxu0 0.0
    %878 = vmatprep.subr.mxu0 0.0
    %879 = vmatpush1.msra.mxu0 0.0
    %880 = vmatprep.subr.mxu0 0.0
    %881 = vmatpush1.msra.mxu0 0.0
    %882 = vmatprep.subr.mxu0 0.0
    %883 = vmatpush1.msra.mxu0 0.0
    %884 = vmatprep.subr.mxu0 0.0
    %885 = vmatpush1.msra.mxu0 0.0
    %886 = vmatprep.subr.mxu0 0.0
    %887 = vmatpush1.msra.mxu0 0.0
    %888 = vmatprep.subr.mxu0 0.0
    %889 = vmatpush1.msra.mxu0 0.0
    %890 = vmatprep.subr.mxu0 0.0
    %891 = vmatpush1.msra.mxu0 0.0
    %892 = vmatprep.subr.mxu0 0.0
    %893 = vmatpush1.msra.mxu0 0.0
    %894 = vmatprep.subr.mxu0 0.0
    %895 = vmatpush1.msra.mxu0 0.0
    %896 = vmatprep.subr.mxu0 0.0
    %897 = vmatpush1.msra.mxu0 0.0
    %898 = vmatprep.subr.mxu0 0.0
    %899 = vmatpush1.msra.mxu0 0.0
    %900 = vmatprep.mubr.f32.mxu0 0.0
    %901 = vmatmul.mubr.f32.gmra.mrb[0].mxu0 %v834
    %v902 = vpop.f32.mrb[0].mxu0
    %v903 = vadd.f32 0.0, %v902
    %v904 = vpop.f32.mrb[0].mxu0
    %905 = vdwg.mxu0
    %907 = vrot.lane.b32.xlu0 %v903, 16
    %v908 = vpop.permute.xlu0 %907
    %vm910 = vcmask 195712
    %911 = vst.msk [vmem:[#allocation2] sm:$0xff] %vm910, %v908
    %912 = vrot.lane.b32.xlu0 %v217, 104
    %v913 = vpop.permute.xlu0 %912
    %914 = vrot.lane.b32.xlu0 %v303, 104
    %v915 = vpop.permute.xlu0 %914
    %v916 = vsel %vm397, %v913, 0
    %v918 = vsel %vm397, %v915, 0
    %920 = vmatprep.subr.mxu0 0.0
    %921 = vmatpush1.xpose.msra.mxu0 %v918
    %922 = vmatprep.subr.mxu0 0.0
    %923 = vmatpush1.xpose.msra.mxu0 0.0
    %924 = vmatprep.subr.mxu0 0.0
    %925 = vmatpush1.xpose.msra.mxu0 0.0
    %926 = vmatprep.subr.mxu0 0.0
    %927 = vmatpush1.xpose.msra.mxu0 0.0
    %928 = vmatprep.subr.mxu0 0.0
    %929 = vmatpush1.xpose.msra.mxu0 0.0
    %930 = vmatprep.subr.mxu0 0.0
    %931 = vmatpush1.xpose.msra.mxu0 0.0
    %932 = vmatprep.subr.mxu0 0.0
    %933 = vmatpush1.xpose.msra.mxu0 0.0
    %934 = vmatprep.subr.mxu0 0.0
    %935 = vmatpush1.xpose.msra.mxu0 0.0
    %936 = vmatprep.subr.mxu0 0.0
    %937 = vmatpush1.xpose.msra.mxu0 0.0
    %938 = vmatprep.subr.mxu0 0.0
    %939 = vmatpush1.xpose.msra.mxu0 0.0
    %940 = vmatprep.subr.mxu0 0.0
    %941 = vmatpush1.xpose.msra.mxu0 0.0
    %942 = vmatprep.subr.mxu0 0.0
    %943 = vmatpush1.xpose.msra.mxu0 0.0
    %944 = vmatprep.subr.mxu0 0.0
    %945 = vmatpush1.xpose.msra.mxu0 0.0
    %946 = vmatprep.subr.mxu0 0.0
    %947 = vmatpush1.xpose.msra.mxu0 0.0
    %948 = vmatprep.subr.mxu0 0.0
    %949 = vmatpush1.xpose.msra.mxu0 0.0
    %950 = vmatprep.subr.mxu0 0.0
    %951 = vmatpush1.xpose.msra.mxu0 0.0
    %952 = vmatprep.subr.mxu0 0.0
    %953 = vmatpush1.xpose.msra.mxu0 0.0
    %954 = vmatprep.subr.mxu0 0.0
    %955 = vmatpush1.xpose.msra.mxu0 0.0
    %956 = vmatprep.subr.mxu0 0.0
    %957 = vmatpush1.xpose.msra.mxu0 0.0
    %958 = vmatprep.subr.mxu0 0.0
    %959 = vmatpush1.xpose.msra.mxu0 0.0
    %960 = vmatprep.subr.mxu0 0.0
    %961 = vmatpush1.xpose.msra.mxu0 0.0
    %962 = vmatprep.subr.mxu0 0.0
    %963 = vmatpush1.xpose.msra.mxu0 0.0
    %964 = vmatprep.subr.mxu0 0.0
    %965 = vmatpush1.xpose.msra.mxu0 0.0
    %966 = vmatprep.subr.mxu0 0.0
    %967 = vmatpush1.xpose.msra.mxu0 0.0
    %968 = vmatprep.subr.mxu0 0.0
    %969 = vmatpush1.xpose.msra.mxu0 0.0
    %970 = vmatprep.subr.mxu0 0.0
    %971 = vmatpush1.xpose.msra.mxu0 0.0
    %972 = vmatprep.subr.mxu0 0.0
    %973 = vmatpush1.xpose.msra.mxu0 0.0
    %974 = vmatprep.subr.mxu0 0.0
    %975 = vmatpush1.xpose.msra.mxu0 0.0
    %976 = vmatprep.subr.mxu0 0.0
    %977 = vmatpush1.xpose.msra.mxu0 0.0
    %978 = vmatprep.subr.mxu0 0.0
    %979 = vmatpush1.xpose.msra.mxu0 0.0
    %980 = vmatprep.subr.mxu0 0.0
    %981 = vmatpush1.xpose.msra.mxu0 0.0
    %982 = vmatprep.subr.mxu0 0.0
    %983 = vmatpush1.xpose.msra.mxu0 0.0
    %984 = vmatprep.mubr.f32.mxu0 0.0
    %985 = vmatmul.mubr.f32.gmra.mrb[0].mxu0 %v916
    %v986 = vpop.f32.mrb[0].mxu0
    %v987 = vadd.f32 0.0, %v986
    %v988 = vpop.f32.mrb[0].mxu0
    %989 = vdwg.mxu0
    %v990 = vmul.f32 %v987, 0.35355338
    %v991 = vadd.f32 %v990, %v478
    %v992 = vsel %vm397, %v991, -inf
    %993 = vmax.xlane.f32.xlu0 %v992
    %v994 = vpop.xlane.xlu0 %993
    %v995 = vsub.f32 %v991, %v994
    %v996 = vmul.f32 %v995, 1.442695
    %v997 = vpow.pop %v996
    %v998 = vsel %vm397, %v997, 0.0
    %999 = vadd.xlane.f32.xlu0 %v998
    %v1000 = vpop.xlane.xlu0 %999
    %v1001 = vrcp.pop %v1000
    %v1002 = vmul.f32 %v997, %v1001
    %1003 = vrot.lane.b32.xlu0 %v389, 104
    %v1004 = vpop.permute.xlu0 %1003
    %v1007 = vsel %vm397, %v1002, 0
    %1009 = vmatprep.subr.mxu0 0.0
    %1010 = vmatpush1.msra.mxu0 %v1004
    %1011 = vmatprep.subr.mxu0 0.0
    %1012 = vmatpush1.msra.mxu0 0.0
    %1013 = vmatprep.subr.mxu0 0.0
    %1014 = vmatpush1.msra.mxu0 0.0
    %1015 = vmatprep.subr.mxu0 0.0
    %1016 = vmatpush1.msra.mxu0 0.0
    %1017 = vmatprep.subr.mxu0 0.0
    %1018 = vmatpush1.msra.mxu0 0.0
    %1019 = vmatprep.subr.mxu0 0.0
    %1020 = vmatpush1.msra.mxu0 0.0
    %1021 = vmatprep.subr.mxu0 0.0
    %1022 = vmatpush1.msra.mxu0 0.0
    %1023 = vmatprep.subr.mxu0 0.0
    %1024 = vmatpush1.msra.mxu0 0.0
    %1025 = vmatprep.subr.mxu0 0.0
    %1026 = vmatpush1.msra.mxu0 0.0
    %1027 = vmatprep.subr.mxu0 0.0
    %1028 = vmatpush1.msra.mxu0 0.0
    %1029 = vmatprep.subr.mxu0 0.0
    %1030 = vmatpush1.msra.mxu0 0.0
    %1031 = vmatprep.subr.mxu0 0.0
    %1032 = vmatpush1.msra.mxu0 0.0
    %1033 = vmatprep.subr.mxu0 0.0
    %1034 = vmatpush1.msra.mxu0 0.0
    %1035 = vmatprep.subr.mxu0 0.0
    %1036 = vmatpush1.msra.mxu0 0.0
    %1037 = vmatprep.subr.mxu0 0.0
    %1038 = vmatpush1.msra.mxu0 0.0
    %1039 = vmatprep.subr.mxu0 0.0
    %1040 = vmatpush1.msra.mxu0 0.0
    %1041 = vmatprep.subr.mxu0 0.0
    %1042 = vmatpush1.msra.mxu0 0.0
    %1043 = vmatprep.subr.mxu0 0.0
    %1044 = vmatpush1.msra.mxu0 0.0
    %1045 = vmatprep.subr.mxu0 0.0
    %1046 = vmatpush1.msra.mxu0 0.0
    %1047 = vmatprep.subr.mxu0 0.0
    %1048 = vmatpush1.msra.mxu0 0.0
    %1049 = vmatprep.subr.mxu0 0.0
    %1050 = vmatpush1.msra.mxu0 0.0
    %1051 = vmatprep.subr.mxu0 0.0
    %1052 = vmatpush1.msra.mxu0 0.0
    %1053 = vmatprep.subr.mxu0 0.0
    %1054 = vmatpush1.msra.mxu0 0.0
    %1055 = vmatprep.subr.mxu0 0.0
    %1056 = vmatpush1.msra.mxu0 0.0
    %1057 = vmatprep.subr.mxu0 0.0
    %1058 = vmatpush1.msra.mxu0 0.0
    %1059 = vmatprep.subr.mxu0 0.0
    %1060 = vmatpush1.msra.mxu0 0.0
    %1061 = vmatprep.subr.mxu0 0.0
    %1062 = vmatpush1.msra.mxu0 0.0
    %1063 = vmatprep.subr.mxu0 0.0
    %1064 = vmatpush1.msra.mxu0 0.0
    %1065 = vmatprep.subr.mxu0 0.0
    %1066 = vmatpush1.msra.mxu0 0.0
    %1067 = vmatprep.subr.mxu0 0.0
    %1068 = vmatpush1.msra.mxu0 0.0
    %1069 = vmatprep.subr.mxu0 0.0
    %1070 = vmatpush1.msra.mxu0 0.0
    %1071 = vmatprep.subr.mxu0 0.0
    %1072 = vmatpush1.msra.mxu0 0.0
    %1073 = vmatprep.mubr.f32.mxu0 0.0
    %1074 = vmatmul.mubr.f32.gmra.mrb[0].mxu0 %v1007
    %v1075 = vpop.f32.mrb[0].mxu0
    %v1076 = vadd.f32 0.0, %v1075
    %v1077 = vpop.f32.mrb[0].mxu0
    %1078 = vdwg.mxu0
    %1080 = vrot.lane.b32.xlu0 %v1076, 24
    %v1081 = vpop.permute.xlu0 %1080
    %vm1083 = vcmask 261312
    %1084 = vst.msk [vmem:[#allocation2] sm:$0xff] %vm1083, %v1081
    %v1086 = vsel %vm397, %v222, 0
    %v1089 = vsel %vm397, %v308, 0
    %1091 = vmatprep.subr.mxu0 0.0
    %1092 = vmatpush1.xpose.msra.mxu0 %v1089
    %1093 = vmatprep.subr.mxu0 0.0
    %1094 = vmatpush1.xpose.msra.mxu0 0.0
    %1095 = vmatprep.subr.mxu0 0.0
    %1096 = vmatpush1.xpose.msra.mxu0 0.0
    %1097 = vmatprep.subr.mxu0 0.0
    %1098 = vmatpush1.xpose.msra.mxu0 0.0
    %1099 = vmatprep.subr.mxu0 0.0
    %1100 = vmatpush1.xpose.msra.mxu0 0.0
    %1101 = vmatprep.subr.mxu0 0.0
    %1102 = vmatpush1.xpose.msra.mxu0 0.0
    %1103 = vmatprep.subr.mxu0 0.0
    %1104 = vmatpush1.xpose.msra.mxu0 0.0
    %1105 = vmatprep.subr.mxu0 0.0
    %1106 = vmatpush1.xpose.msra.mxu0 0.0
    %1107 = vmatprep.subr.mxu0 0.0
    %1108 = vmatpush1.xpose.msra.mxu0 0.0
    %1109 = vmatprep.subr.mxu0 0.0
    %1110 = vmatpush1.xpose.msra.mxu0 0.0
    %1111 = vmatprep.subr.mxu0 0.0
    %1112 = vmatpush1.xpose.msra.mxu0 0.0
    %1113 = vmatprep.subr.mxu0 0.0
    %1114 = vmatpush1.xpose.msra.mxu0 0.0
    %1115 = vmatprep.subr.mxu0 0.0
    %1116 = vmatpush1.xpose.msra.mxu0 0.0
    %1117 = vmatprep.subr.mxu0 0.0
    %1118 = vmatpush1.xpose.msra.mxu0 0.0
    %1119 = vmatprep.subr.mxu0 0.0
    %1120 = vmatpush1.xpose.msra.mxu0 0.0
    %1121 = vmatprep.subr.mxu0 0.0
    %1122 = vmatpush1.xpose.msra.mxu0 0.0
    %1123 = vmatprep.subr.mxu0 0.0
    %1124 = vmatpush1.xpose.msra.mxu0 0.0
    %1125 = vmatprep.subr.mxu0 0.0
    %1126 = vmatpush1.xpose.msra.mxu0 0.0
    %1127 = vmatprep.subr.mxu0 0.0
    %1128 = vmatpush1.xpose.msra.mxu0 0.0
    %1129 = vmatprep.subr.mxu0 0.0
    %1130 = vmatpush1.xpose.msra.mxu0 0.0
    %1131 = vmatprep.subr.mxu0 0.0
    %1132 = vmatpush1.xpose.msra.mxu0 0.0
    %1133 = vmatprep.subr.mxu0 0.0
    %1134 = vmatpush1.xpose.msra.mxu0 0.0
    %1135 = vmatprep.subr.mxu0 0.0
    %1136 = vmatpush1.xpose.msra.mxu0 0.0
    %1137 = vmatprep.subr.mxu0 0.0
    %1138 = vmatpush1.xpose.msra.mxu0 0.0
    %1139 = vmatprep.subr.mxu0 0.0
    %1140 = vmatpush1.xpose.msra.mxu0 0.0
    %1141 = vmatprep.subr.mxu0 0.0
    %1142 = vmatpush1.xpose.msra.mxu0 0.0
    %1143 = vmatprep.subr.mxu0 0.0
    %1144 = vmatpush1.xpose.msra.mxu0 0.0
    %1145 = vmatprep.subr.mxu0 0.0
    %1146 = vmatpush1.xpose.msra.mxu0 0.0
    %1147 = vmatprep.subr.mxu0 0.0
    %1148 = vmatpush1.xpose.msra.mxu0 0.0
    %1149 = vmatprep.subr.mxu0 0.0
    %1150 = vmatpush1.xpose.msra.mxu0 0.0
    %1151 = vmatprep.subr.mxu0 0.0
    %1152 = vmatpush1.xpose.msra.mxu0 0.0
    %1153 = vmatprep.subr.mxu0 0.0
    %1154 = vmatpush1.xpose.msra.mxu0 0.0
    %1155 = vmatprep.mubr.f32.mxu0 0.0
    %1156 = vmatmul.mubr.f32.gmra.mrb[0].mxu0 %v1086
    %v1157 = vpop.f32.mrb[0].mxu0
    %v1158 = vadd.f32 0.0, %v1157
    %v1159 = vpop.f32.mrb[0].mxu0
    %1160 = vdwg.mxu0
    %v1161 = vmul.f32 %v1158, 0.35355338
    %v1162 = vlaneseq
    %v1163 = vshrl.u32 %v1162, 7
    %v1164 = vsub.s32 1, %v1163
    %v1165 = vrot.slane %v129, %v1164
    %v1166 = vadd.f32 %v1161, %v1165
    %v1167 = vsel %vm397, %v1166, -inf
    %1168 = vmax.xlane.f32.xlu0 %v1167
    %v1169 = vpop.xlane.xlu0 %1168
    %v1170 = vsub.f32 %v1166, %v1169
    %v1171 = vmul.f32 %v1170, 1.442695
    %v1172 = vpow.pop %v1171
    %v1173 = vsel %vm397, %v1172, 0.0
    %1174 = vadd.xlane.f32.xlu0 %v1173
    %v1175 = vpop.xlane.xlu0 %1174
    %v1176 = vrcp.pop %v1175
    %v1177 = vmul.f32 %v1172, %v1176
    %v1179 = vsel %vm397, %v1177, 0
    %1181 = vmatprep.subr.mxu0 0.0
    %1182 = vmatpush1.msra.mxu0 %v394
    %1183 = vmatprep.subr.mxu0 0.0
    %1184 = vmatpush1.msra.mxu0 0.0
    %1185 = vmatprep.subr.mxu0 0.0
    %1186 = vmatpush1.msra.mxu0 0.0
    %1187 = vmatprep.subr.mxu0 0.0
    %1188 = vmatpush1.msra.mxu0 0.0
    %1189 = vmatprep.subr.mxu0 0.0
    %1190 = vmatpush1.msra.mxu0 0.0
    %1191 = vmatprep.subr.mxu0 0.0
    %1192 = vmatpush1.msra.mxu0 0.0
    %1193 = vmatprep.subr.mxu0 0.0
    %1194 = vmatpush1.msra.mxu0 0.0
    %1195 = vmatprep.subr.mxu0 0.0
    %1196 = vmatpush1.msra.mxu0 0.0
    %1197 = vmatprep.subr.mxu0 0.0
    %1198 = vmatpush1.msra.mxu0 0.0
    %1199 = vmatprep.subr.mxu0 0.0
    %1200 = vmatpush1.msra.mxu0 0.0
    %1201 = vmatprep.subr.mxu0 0.0
    %1202 = vmatpush1.msra.mxu0 0.0
    %1203 = vmatprep.subr.mxu0 0.0
    %1204 = vmatpush1.msra.mxu0 0.0
    %1205 = vmatprep.subr.mxu0 0.0
    %1206 = vmatpush1.msra.mxu0 0.0
    %1207 = vmatprep.subr.mxu0 0.0
    %1208 = vmatpush1.msra.mxu0 0.0
    %1209 = vmatprep.subr.mxu0 0.0
    %1210 = vmatpush1.msra.mxu0 0.0
    %1211 = vmatprep.subr.mxu0 0.0
    %1212 = vmatpush1.msra.mxu0 0.0
    %1213 = vmatprep.subr.mxu0 0.0
    %1214 = vmatpush1.msra.mxu0 0.0
    %1215 = vmatprep.subr.mxu0 0.0
    %1216 = vmatpush1.msra.mxu0 0.0
    %1217 = vmatprep.subr.mxu0 0.0
    %1218 = vmatpush1.msra.mxu0 0.0
    %1219 = vmatprep.subr.mxu0 0.0
    %1220 = vmatpush1.msra.mxu0 0.0
    %1221 = vmatprep.subr.mxu0 0.0
    %1222 = vmatpush1.msra.mxu0 0.0
    %1223 = vmatprep.subr.mxu0 0.0
    %1224 = vmatpush1.msra.mxu0 0.0
    %1225 = vmatprep.subr.mxu0 0.0
    %1226 = vmatpush1.msra.mxu0 0.0
    %1227 = vmatprep.subr.mxu0 0.0
    %1228 = vmatpush1.msra.mxu0 0.0
    %1229 = vmatprep.subr.mxu0 0.0
    %1230 = vmatpush1.msra.mxu0 0.0
    %1231 = vmatprep.subr.mxu0 0.0
    %1232 = vmatpush1.msra.mxu0 0.0
    %1233 = vmatprep.subr.mxu0 0.0
    %1234 = vmatpush1.msra.mxu0 0.0
    %1235 = vmatprep.subr.mxu0 0.0
    %1236 = vmatpush1.msra.mxu0 0.0
    %1237 = vmatprep.subr.mxu0 0.0
    %1238 = vmatpush1.msra.mxu0 0.0
    %1239 = vmatprep.subr.mxu0 0.0
    %1240 = vmatpush1.msra.mxu0 0.0
    %1241 = vmatprep.subr.mxu0 0.0
    %1242 = vmatpush1.msra.mxu0 0.0
    %1243 = vmatprep.subr.mxu0 0.0
    %1244 = vmatpush1.msra.mxu0 0.0
    %1245 = vmatprep.mubr.f32.mxu0 0.0
    %1246 = vmatmul.mubr.f32.gmra.mrb[0].mxu0 %v1179
    %v1247 = vpop.f32.mrb[0].mxu0
    %v1248 = vadd.f32 0.0, %v1247
    %v1249 = vpop.f32.mrb[0].mxu0
    %1250 = vdwg.mxu0
    %1251 = vst.msk [vmem:[#allocation2 + $0x8] sm:$0xff] %vm397, %v1248
    %1252 = vrot.lane.b32.xlu0 %v222, 120
    %v1253 = vpop.permute.xlu0 %1252
    %1254 = vrot.lane.b32.xlu0 %v308, 120
    %v1255 = vpop.permute.xlu0 %1254
    %v1256 = vsel %vm397, %v1253, 0
    %v1258 = vsel %vm397, %v1255, 0
    %1260 = vmatprep.subr.mxu0 0.0
    %1261 = vmatpush1.xpose.msra.mxu0 %v1258
    %1262 = vmatprep.subr.mxu0 0.0
    %1263 = vmatpush1.xpose.msra.mxu0 0.0
    %1264 = vmatprep.subr.mxu0 0.0
    %1265 = vmatpush1.xpose.msra.mxu0 0.0
    %1266 = vmatprep.subr.mxu0 0.0
    %1267 = vmatpush1.xpose.msra.mxu0 0.0
    %1268 = vmatprep.subr.mxu0 0.0
    %1269 = vmatpush1.xpose.msra.mxu0 0.0
    %1270 = vmatprep.subr.mxu0 0.0
    %1271 = vmatpush1.xpose.msra.mxu0 0.0
    %1272 = vmatprep.subr.mxu0 0.0
    %1273 = vmatpush1.xpose.msra.mxu0 0.0
    %1274 = vmatprep.subr.mxu0 0.0
    %1275 = vmatpush1.xpose.msra.mxu0 0.0
    %1276 = vmatprep.subr.mxu0 0.0
    %1277 = vmatpush1.xpose.msra.mxu0 0.0
    %1278 = vmatprep.subr.mxu0 0.0
    %1279 = vmatpush1.xpose.msra.mxu0 0.0
    %1280 = vmatprep.subr.mxu0 0.0
    %1281 = vmatpush1.xpose.msra.mxu0 0.0
    %1282 = vmatprep.subr.mxu0 0.0
    %1283 = vmatpush1.xpose.msra.mxu0 0.0
    %1284 = vmatprep.subr.mxu0 0.0
    %1285 = vmatpush1.xpose.msra.mxu0 0.0
    %1286 = vmatprep.subr.mxu0 0.0
    %1287 = vmatpush1.xpose.msra.mxu0 0.0
    %1288 = vmatprep.subr.mxu0 0.0
    %1289 = vmatpush1.xpose.msra.mxu0 0.0
    %1290 = vmatprep.subr.mxu0 0.0
    %1291 = vmatpush1.xpose.msra.mxu0 0.0
    %1292 = vmatprep.subr.mxu0 0.0
    %1293 = vmatpush1.xpose.msra.mxu0 0.0
    %1294 = vmatprep.subr.mxu0 0.0
    %1295 = vmatpush1.xpose.msra.mxu0 0.0
    %1296 = vmatprep.subr.mxu0 0.0
    %1297 = vmatpush1.xpose.msra.mxu0 0.0
    %1298 = vmatprep.subr.mxu0 0.0
    %1299 = vmatpush1.xpose.msra.mxu0 0.0
    %1300 = vmatprep.subr.mxu0 0.0
    %1301 = vmatpush1.xpose.msra.mxu0 0.0
    %1302 = vmatprep.subr.mxu0 0.0
    %1303 = vmatpush1.xpose.msra.mxu0 0.0
    %1304 = vmatprep.subr.mxu0 0.0
    %1305 = vmatpush1.xpose.msra.mxu0 0.0
    %1306 = vmatprep.subr.mxu0 0.0
    %1307 = vmatpush1.xpose.msra.mxu0 0.0
    %1308 = vmatprep.subr.mxu0 0.0
    %1309 = vmatpush1.xpose.msra.mxu0 0.0
    %1310 = vmatprep.subr.mxu0 0.0
    %1311 = vmatpush1.xpose.msra.mxu0 0.0
    %1312 = vmatprep.subr.mxu0 0.0
    %1313 = vmatpush1.xpose.msra.mxu0 0.0
    %1314 = vmatprep.subr.mxu0 0.0
    %1315 = vmatpush1.xpose.msra.mxu0 0.0
    %1316 = vmatprep.subr.mxu0 0.0
    %1317 = vmatpush1.xpose.msra.mxu0 0.0
    %1318 = vmatprep.subr.mxu0 0.0
    %1319 = vmatpush1.xpose.msra.mxu0 0.0
    %1320 = vmatprep.subr.mxu0 0.0
    %1321 = vmatpush1.xpose.msra.mxu0 0.0
    %1322 = vmatprep.subr.mxu0 0.0
    %1323 = vmatpush1.xpose.msra.mxu0 0.0
    %1324 = vmatprep.mubr.f32.mxu0 0.0
    %1325 = vmatmul.mubr.f32.gmra.mrb[0].mxu0 %v1256
    %v1326 = vpop.f32.mrb[0].mxu0
    %v1327 = vadd.f32 0.0, %v1326
    %v1328 = vpop.f32.mrb[0].mxu0
    %1329 = vdwg.mxu0
    %v1330 = vmul.f32 %v1327, 0.35355338
    %v1331 = vadd.f32 %v1330, %v1165
    %v1332 = vsel %vm397, %v1331, -inf
    %1333 = vmax.xlane.f32.xlu0 %v1332
    %v1334 = vpop.xlane.xlu0 %1333
    %v1335 = vsub.f32 %v1331, %v1334
    %v1336 = vmul.f32 %v1335, 1.442695
    %v1337 = vpow.pop %v1336
    %v1338 = vsel %vm397, %v1337, 0.0
    %1339 = vadd.xlane.f32.xlu0 %v1338
    %v1340 = vpop.xlane.xlu0 %1339
    %v1341 = vrcp.pop %v1340
    %v1342 = vmul.f32 %v1337, %v1341
    %1344 = vrot.lane.b32.xlu0 %v394, 120
    %v1345 = vpop.permute.xlu0 %1344
    %v1348 = vsel %vm397, %v1342, 0
    %1350 = vmatprep.subr.mxu0 0.0
    %1351 = vmatpush1.msra.mxu0 %v1345
    %1352 = vmatprep.subr.mxu0 0.0
    %1353 = vmatpush1.msra.mxu0 0.0
    %1354 = vmatprep.subr.mxu0 0.0
    %1355 = vmatpush1.msra.mxu0 0.0
    %1356 = vmatprep.subr.mxu0 0.0
    %1357 = vmatpush1.msra.mxu0 0.0
    %1358 = vmatprep.subr.mxu0 0.0
    %1359 = vmatpush1.msra.mxu0 0.0
    %1360 = vmatprep.subr.mxu0 0.0
    %1361 = vmatpush1.msra.mxu0 0.0
    %1362 = vmatprep.subr.mxu0 0.0
    %1363 = vmatpush1.msra.mxu0 0.0
    %1364 = vmatprep.subr.mxu0 0.0
    %1365 = vmatpush1.msra.mxu0 0.0
    %1366 = vmatprep.subr.mxu0 0.0
    %1367 = vmatpush1.msra.mxu0 0.0
    %1368 = vmatprep.subr.mxu0 0.0
    %1369 = vmatpush1.msra.mxu0 0.0
    %1370 = vmatprep.subr.mxu0 0.0
    %1371 = vmatpush1.msra.mxu0 0.0
    %1372 = vmatprep.subr.mxu0 0.0
    %1373 = vmatpush1.msra.mxu0 0.0
    %1374 = vmatprep.subr.mxu0 0.0
    %1375 = vmatpush1.msra.mxu0 0.0
    %1376 = vmatprep.subr.mxu0 0.0
    %1377 = vmatpush1.msra.mxu0 0.0
    %1378 = vmatprep.subr.mxu0 0.0
    %1379 = vmatpush1.msra.mxu0 0.0
    %1380 = vmatprep.subr.mxu0 0.0
    %1381 = vmatpush1.msra.mxu0 0.0
    %1382 = vmatprep.subr.mxu0 0.0
    %1383 = vmatpush1.msra.mxu0 0.0
    %1384 = vmatprep.subr.mxu0 0.0
    %1385 = vmatpush1.msra.mxu0 0.0
    %1386 = vmatprep.subr.mxu0 0.0
    %1387 = vmatpush1.msra.mxu0 0.0
    %1388 = vmatprep.subr.mxu0 0.0
    %1389 = vmatpush1.msra.mxu0 0.0
    %1390 = vmatprep.subr.mxu0 0.0
    %1391 = vmatpush1.msra.mxu0 0.0
    %1392 = vmatprep.subr.mxu0 0.0
    %1393 = vmatpush1.msra.mxu0 0.0
    %1394 = vmatprep.subr.mxu0 0.0
    %1395 = vmatpush1.msra.mxu0 0.0
    %1396 = vmatprep.subr.mxu0 0.0
    %1397 = vmatpush1.msra.mxu0 0.0
    %1398 = vmatprep.subr.mxu0 0.0
    %1399 = vmatpush1.msra.mxu0 0.0
    %1400 = vmatprep.subr.mxu0 0.0
    %1401 = vmatpush1.msra.mxu0 0.0
    %1402 = vmatprep.subr.mxu0 0.0
    %1403 = vmatpush1.msra.mxu0 0.0
    %1404 = vmatprep.subr.mxu0 0.0
    %1405 = vmatpush1.msra.mxu0 0.0
    %1406 = vmatprep.subr.mxu0 0.0
    %1407 = vmatpush1.msra.mxu0 0.0
    %1408 = vmatprep.subr.mxu0 0.0
    %1409 = vmatpush1.msra.mxu0 0.0
    %1410 = vmatprep.subr.mxu0 0.0
    %1411 = vmatpush1.msra.mxu0 0.0
    %1412 = vmatprep.subr.mxu0 0.0
    %1413 = vmatpush1.msra.mxu0 0.0
    %1414 = vmatprep.mubr.f32.mxu0 0.0
    %1415 = vmatmul.mubr.f32.gmra.mrb[0].mxu0 %v1348
    %v1416 = vpop.f32.mrb[0].mxu0
    %v1417 = vadd.f32 0.0, %v1416
    %v1418 = vpop.f32.mrb[0].mxu0
    %1419 = vdwg.mxu0
    %1421 = vrot.lane.b32.xlu0 %v1417, 8
    %v1422 = vpop.permute.xlu0 %1421
    %1424 = vst.msk [vmem:[#allocation2 + $0x8] sm:$0xff] %vm737, %v1422
    %1425 = vrot.lane.b32.xlu0 %v222, 112
    %v1426 = vpop.permute.xlu0 %1425
    %1427 = vrot.lane.b32.xlu0 %v308, 112
    %v1428 = vpop.permute.xlu0 %1427
    %v1429 = vsel %vm397, %v1426, 0
    %v1431 = vsel %vm397, %v1428, 0
    %1433 = vmatprep.subr.mxu0 0.0
    %1434 = vmatpush1.xpose.msra.mxu0 %v1431
    %1435 = vmatprep.subr.mxu0 0.0
    %1436 = vmatpush1.xpose.msra.mxu0 0.0
    %1437 = vmatprep.subr.mxu0 0.0
    %1438 = vmatpush1.xpose.msra.mxu0 0.0
    %1439 = vmatprep.subr.mxu0 0.0
    %1440 = vmatpush1.xpose.msra.mxu0 0.0
    %1441 = vmatprep.subr.mxu0 0.0
    %1442 = vmatpush1.xpose.msra.mxu0 0.0
    %1443 = vmatprep.subr.mxu0 0.0
    %1444 = vmatpush1.xpose.msra.mxu0 0.0
    %1445 = vmatprep.subr.mxu0 0.0
    %1446 = vmatpush1.xpose.msra.mxu0 0.0
    %1447 = vmatprep.subr.mxu0 0.0
    %1448 = vmatpush1.xpose.msra.mxu0 0.0
    %1449 = vmatprep.subr.mxu0 0.0
    %1450 = vmatpush1.xpose.msra.mxu0 0.0
    %1451 = vmatprep.subr.mxu0 0.0
    %1452 = vmatpush1.xpose.msra.mxu0 0.0
    %1453 = vmatprep.subr.mxu0 0.0
    %1454 = vmatpush1.xpose.msra.mxu0 0.0
    %1455 = vmatprep.subr.mxu0 0.0
    %1456 = vmatpush1.xpose.msra.mxu0 0.0
    %1457 = vmatprep.subr.mxu0 0.0
    %1458 = vmatpush1.xpose.msra.mxu0 0.0
    %1459 = vmatprep.subr.mxu0 0.0
    %1460 = vmatpush1.xpose.msra.mxu0 0.0
    %1461 = vmatprep.subr.mxu0 0.0
    %1462 = vmatpush1.xpose.msra.mxu0 0.0
    %1463 = vmatprep.subr.mxu0 0.0
    %1464 = vmatpush1.xpose.msra.mxu0 0.0
    %1465 = vmatprep.subr.mxu0 0.0
    %1466 = vmatpush1.xpose.msra.mxu0 0.0
    %1467 = vmatprep.subr.mxu0 0.0
    %1468 = vmatpush1.xpose.msra.mxu0 0.0
    %1469 = vmatprep.subr.mxu0 0.0
    %1470 = vmatpush1.xpose.msra.mxu0 0.0
    %1471 = vmatprep.subr.mxu0 0.0
    %1472 = vmatpush1.xpose.msra.mxu0 0.0
    %1473 = vmatprep.subr.mxu0 0.0
    %1474 = vmatpush1.xpose.msra.mxu0 0.0
    %1475 = vmatprep.subr.mxu0 0.0
    %1476 = vmatpush1.xpose.msra.mxu0 0.0
    %1477 = vmatprep.subr.mxu0 0.0
    %1478 = vmatpush1.xpose.msra.mxu0 0.0
    %1479 = vmatprep.subr.mxu0 0.0
    %1480 = vmatpush1.xpose.msra.mxu0 0.0
    %1481 = vmatprep.subr.mxu0 0.0
    %1482 = vmatpush1.xpose.msra.mxu0 0.0
    %1483 = vmatprep.subr.mxu0 0.0
    %1484 = vmatpush1.xpose.msra.mxu0 0.0
    %1485 = vmatprep.subr.mxu0 0.0
    %1486 = vmatpush1.xpose.msra.mxu0 0.0
    %1487 = vmatprep.subr.mxu0 0.0
    %1488 = vmatpush1.xpose.msra.mxu0 0.0
    %1489 = vmatprep.subr.mxu0 0.0
    %1490 = vmatpush1.xpose.msra.mxu0 0.0
    %1491 = vmatprep.subr.mxu0 0.0
    %1492 = vmatpush1.xpose.msra.mxu0 0.0
    %1493 = vmatprep.subr.mxu0 0.0
    %1494 = vmatpush1.xpose.msra.mxu0 0.0
    %1495 = vmatprep.subr.mxu0 0.0
    %1496 = vmatpush1.xpose.msra.mxu0 0.0
    %1497 = vmatprep.mubr.f32.mxu0 0.0
    %1498 = vmatmul.mubr.f32.gmra.mrb[0].mxu0 %v1429
    %v1499 = vpop.f32.mrb[0].mxu0
    %v1500 = vadd.f32 0.0, %v1499
    %v1501 = vpop.f32.mrb[0].mxu0
    %1502 = vdwg.mxu0
    %v1503 = vmul.f32 %v1500, 0.35355338
    %v1504 = vadd.f32 %v1503, %v1165
    %v1505 = vsel %vm397, %v1504, -inf
    %1506 = vmax.xlane.f32.xlu0 %v1505
    %v1507 = vpop.xlane.xlu0 %1506
    %v1508 = vsub.f32 %v1504, %v1507
    %v1509 = vmul.f32 %v1508, 1.442695
    %v1510 = vpow.pop %v1509
    %v1511 = vsel %vm397, %v1510, 0.0
    %1512 = vadd.xlane.f32.xlu0 %v1511
    %v1513 = vpop.xlane.xlu0 %1512
    %v1514 = vrcp.pop %v1513
    %v1515 = vmul.f32 %v1510, %v1514
    %1516 = vrot.lane.b32.xlu0 %v394, 112
    %v1517 = vpop.permute.xlu0 %1516
    %v1520 = vsel %vm397, %v1515, 0
    %1522 = vmatprep.subr.mxu0 0.0
    %1523 = vmatpush1.msra.mxu0 %v1517
    %1524 = vmatprep.subr.mxu0 0.0
    %1525 = vmatpush1.msra.mxu0 0.0
    %1526 = vmatprep.subr.mxu0 0.0
    %1527 = vmatpush1.msra.mxu0 0.0
    %1528 = vmatprep.subr.mxu0 0.0
    %1529 = vmatpush1.msra.mxu0 0.0
    %1530 = vmatprep.subr.mxu0 0.0
    %1531 = vmatpush1.msra.mxu0 0.0
    %1532 = vmatprep.subr.mxu0 0.0
    %1533 = vmatpush1.msra.mxu0 0.0
    %1534 = vmatprep.subr.mxu0 0.0
    %1535 = vmatpush1.msra.mxu0 0.0
    %1536 = vmatprep.subr.mxu0 0.0
    %1537 = vmatpush1.msra.mxu0 0.0
    %1538 = vmatprep.subr.mxu0 0.0
    %1539 = vmatpush1.msra.mxu0 0.0
    %1540 = vmatprep.subr.mxu0 0.0
    %1541 = vmatpush1.msra.mxu0 0.0
    %1542 = vmatprep.subr.mxu0 0.0
    %1543 = vmatpush1.msra.mxu0 0.0
    %1544 = vmatprep.subr.mxu0 0.0
    %1545 = vmatpush1.msra.mxu0 0.0
    %1546 = vmatprep.subr.mxu0 0.0
    %1547 = vmatpush1.msra.mxu0 0.0
    %1548 = vmatprep.subr.mxu0 0.0
    %1549 = vmatpush1.msra.mxu0 0.0
    %1550 = vmatprep.subr.mxu0 0.0
    %1551 = vmatpush1.msra.mxu0 0.0
    %1552 = vmatprep.subr.mxu0 0.0
    %1553 = vmatpush1.msra.mxu0 0.0
    %1554 = vmatprep.subr.mxu0 0.0
    %1555 = vmatpush1.msra.mxu0 0.0
    %1556 = vmatprep.subr.mxu0 0.0
    %1557 = vmatpush1.msra.mxu0 0.0
    %1558 = vmatprep.subr.mxu0 0.0
    %1559 = vmatpush1.msra.mxu0 0.0
    %1560 = vmatprep.subr.mxu0 0.0
    %1561 = vmatpush1.msra.mxu0 0.0
    %1562 = vmatprep.subr.mxu0 0.0
    %1563 = vmatpush1.msra.mxu0 0.0
    %1564 = vmatprep.subr.mxu0 0.0
    %1565 = vmatpush1.msra.mxu0 0.0
    %1566 = vmatprep.subr.mxu0 0.0
    %1567 = vmatpush1.msra.mxu0 0.0
    %1568 = vmatprep.subr.mxu0 0.0
    %1569 = vmatpush1.msra.mxu0 0.0
    %1570 = vmatprep.subr.mxu0 0.0
    %1571 = vmatpush1.msra.mxu0 0.0
    %1572 = vmatprep.subr.mxu0 0.0
    %1573 = vmatpush1.msra.mxu0 0.0
    %1574 = vmatprep.subr.mxu0 0.0
    %1575 = vmatpush1.msra.mxu0 0.0
    %1576 = vmatprep.subr.mxu0 0.0
    %1577 = vmatpush1.msra.mxu0 0.0
    %1578 = vmatprep.subr.mxu0 0.0
    %1579 = vmatpush1.msra.mxu0 0.0
    %1580 = vmatprep.subr.mxu0 0.0
    %1581 = vmatpush1.msra.mxu0 0.0
    %1582 = vmatprep.subr.mxu0 0.0
    %1583 = vmatpush1.msra.mxu0 0.0
    %1584 = vmatprep.subr.mxu0 0.0
    %1585 = vmatpush1.msra.mxu0 0.0
    %1586 = vmatprep.mubr.f32.mxu0 0.0
    %1587 = vmatmul.mubr.f32.gmra.mrb[0].mxu0 %v1520
    %v1588 = vpop.f32.mrb[0].mxu0
    %v1589 = vadd.f32 0.0, %v1588
    %v1590 = vpop.f32.mrb[0].mxu0
    %1591 = vdwg.mxu0
    %1593 = vrot.lane.b32.xlu0 %v1589, 16
    %v1594 = vpop.permute.xlu0 %1593
    %1596 = vst.msk [vmem:[#allocation2 + $0x8] sm:$0xff] %vm910, %v1594
    %1597 = vrot.lane.b32.xlu0 %v222, 104
    %v1598 = vpop.permute.xlu0 %1597
    %1599 = vrot.lane.b32.xlu0 %v308, 104
    %v1600 = vpop.permute.xlu0 %1599
    %v1601 = vsel %vm397, %v1598, 0
    %v1603 = vsel %vm397, %v1600, 0
    %1605 = vmatprep.subr.mxu0 0.0
    %1606 = vmatpush1.xpose.msra.mxu0 %v1603
    %1607 = vmatprep.subr.mxu0 0.0
    %1608 = vmatpush1.xpose.msra.mxu0 0.0
    %1609 = vmatprep.subr.mxu0 0.0
    %1610 = vmatpush1.xpose.msra.mxu0 0.0
    %1611 = vmatprep.subr.mxu0 0.0
    %1612 = vmatpush1.xpose.msra.mxu0 0.0
    %1613 = vmatprep.subr.mxu0 0.0
    %1614 = vmatpush1.xpose.msra.mxu0 0.0
    %1615 = vmatprep.subr.mxu0 0.0
    %1616 = vmatpush1.xpose.msra.mxu0 0.0
    %1617 = vmatprep.subr.mxu0 0.0
    %1618 = vmatpush1.xpose.msra.mxu0 0.0
    %1619 = vmatprep.subr.mxu0 0.0
    %1620 = vmatpush1.xpose.msra.mxu0 0.0
    %1621 = vmatprep.subr.mxu0 0.0
    %1622 = vmatpush1.xpose.msra.mxu0 0.0
    %1623 = vmatprep.subr.mxu0 0.0
    %1624 = vmatpush1.xpose.msra.mxu0 0.0
    %1625 = vmatprep.subr.mxu0 0.0
    %1626 = vmatpush1.xpose.msra.mxu0 0.0
    %1627 = vmatprep.subr.mxu0 0.0
    %1628 = vmatpush1.xpose.msra.mxu0 0.0
    %1629 = vmatprep.subr.mxu0 0.0
    %1630 = vmatpush1.xpose.msra.mxu0 0.0
    %1631 = vmatprep.subr.mxu0 0.0
    %1632 = vmatpush1.xpose.msra.mxu0 0.0
    %1633 = vmatprep.subr.mxu0 0.0
    %1634 = vmatpush1.xpose.msra.mxu0 0.0
    %1635 = vmatprep.subr.mxu0 0.0
    %1636 = vmatpush1.xpose.msra.mxu0 0.0
    %1637 = vmatprep.subr.mxu0 0.0
    %1638 = vmatpush1.xpose.msra.mxu0 0.0
    %1639 = vmatprep.subr.mxu0 0.0
    %1640 = vmatpush1.xpose.msra.mxu0 0.0
    %1641 = vmatprep.subr.mxu0 0.0
    %1642 = vmatpush1.xpose.msra.mxu0 0.0
    %1643 = vmatprep.subr.mxu0 0.0
    %1644 = vmatpush1.xpose.msra.mxu0 0.0
    %1645 = vmatprep.subr.mxu0 0.0
    %1646 = vmatpush1.xpose.msra.mxu0 0.0
    %1647 = vmatprep.subr.mxu0 0.0
    %1648 = vmatpush1.xpose.msra.mxu0 0.0
    %1649 = vmatprep.subr.mxu0 0.0
    %1650 = vmatpush1.xpose.msra.mxu0 0.0
    %1651 = vmatprep.subr.mxu0 0.0
    %1652 = vmatpush1.xpose.msra.mxu0 0.0
    %1653 = vmatprep.subr.mxu0 0.0
    %1654 = vmatpush1.xpose.msra.mxu0 0.0
    %1655 = vmatprep.subr.mxu0 0.0
    %1656 = vmatpush1.xpose.msra.mxu0 0.0
    %1657 = vmatprep.subr.mxu0 0.0
    %1658 = vmatpush1.xpose.msra.mxu0 0.0
    %1659 = vmatprep.subr.mxu0 0.0
    %1660 = vmatpush1.xpose.msra.mxu0 0.0
    %1661 = vmatprep.subr.mxu0 0.0
    %1662 = vmatpush1.xpose.msra.mxu0 0.0
    %1663 = vmatprep.subr.mxu0 0.0
    %1664 = vmatpush1.xpose.msra.mxu0 0.0
    %1665 = vmatprep.subr.mxu0 0.0
    %1666 = vmatpush1.xpose.msra.mxu0 0.0
    %1667 = vmatprep.subr.mxu0 0.0
    %1668 = vmatpush1.xpose.msra.mxu0 0.0
    %1669 = vmatprep.mubr.f32.mxu0 0.0
    %1670 = vmatmul.mubr.f32.gmra.mrb[0].mxu0 %v1601
    %v1671 = vpop.f32.mrb[0].mxu0
    %v1672 = vadd.f32 0.0, %v1671
    %v1673 = vpop.f32.mrb[0].mxu0
    %1674 = vdwg.mxu0
    %v1675 = vmul.f32 %v1672, 0.35355338
    %v1676 = vadd.f32 %v1675, %v1165
    %v1677 = vsel %vm397, %v1676, -inf
    %1678 = vmax.xlane.f32.xlu0 %v1677
    %v1679 = vpop.xlane.xlu0 %1678
    %v1680 = vsub.f32 %v1676, %v1679
    %v1681 = vmul.f32 %v1680, 1.442695
    %v1682 = vpow.pop %v1681
    %v1683 = vsel %vm397, %v1682, 0.0
    %1684 = vadd.xlane.f32.xlu0 %v1683
    %v1685 = vpop.xlane.xlu0 %1684
    %v1686 = vrcp.pop %v1685
    %v1687 = vmul.f32 %v1682, %v1686
    %1688 = vrot.lane.b32.xlu0 %v394, 104
    %v1689 = vpop.permute.xlu0 %1688
    %v1692 = vsel %vm397, %v1687, 0
    %1694 = vmatprep.subr.mxu0 0.0
    %1695 = vmatpush1.msra.mxu0 %v1689
    %1696 = vmatprep.subr.mxu0 0.0
    %1697 = vmatpush1.msra.mxu0 0.0
    %1698 = vmatprep.subr.mxu0 0.0
    %1699 = vmatpush1.msra.mxu0 0.0
    %1700 = vmatprep.subr.mxu0 0.0
    %1701 = vmatpush1.msra.mxu0 0.0
    %1702 = vmatprep.subr.mxu0 0.0
    %1703 = vmatpush1.msra.mxu0 0.0
    %1704 = vmatprep.subr.mxu0 0.0
    %1705 = vmatpush1.msra.mxu0 0.0
    %1706 = vmatprep.subr.mxu0 0.0
    %1707 = vmatpush1.msra.mxu0 0.0
    %1708 = vmatprep.subr.mxu0 0.0
    %1709 = vmatpush1.msra.mxu0 0.0
    %1710 = vmatprep.subr.mxu0 0.0
    %1711 = vmatpush1.msra.mxu0 0.0
    %1712 = vmatprep.subr.mxu0 0.0
    %1713 = vmatpush1.msra.mxu0 0.0
    %1714 = vmatprep.subr.mxu0 0.0
    %1715 = vmatpush1.msra.mxu0 0.0
    %1716 = vmatprep.subr.mxu0 0.0
    %1717 = vmatpush1.msra.mxu0 0.0
    %1718 = vmatprep.subr.mxu0 0.0
    %1719 = vmatpush1.msra.mxu0 0.0
    %1720 = vmatprep.subr.mxu0 0.0
    %1721 = vmatpush1.msra.mxu0 0.0
    %1722 = vmatprep.subr.mxu0 0.0
    %1723 = vmatpush1.msra.mxu0 0.0
    %1724 = vmatprep.subr.mxu0 0.0
    %1725 = vmatpush1.msra.mxu0 0.0
    %1726 = vmatprep.subr.mxu0 0.0
    %1727 = vmatpush1.msra.mxu0 0.0
    %1728 = vmatprep.subr.mxu0 0.0
    %1729 = vmatpush1.msra.mxu0 0.0
    %1730 = vmatprep.subr.mxu0 0.0
    %1731 = vmatpush1.msra.mxu0 0.0
    %1732 = vmatprep.subr.mxu0 0.0
    %1733 = vmatpush1.msra.mxu0 0.0
    %1734 = vmatprep.subr.mxu0 0.0
    %1735 = vmatpush1.msra.mxu0 0.0
    %1736 = vmatprep.subr.mxu0 0.0
    %1737 = vmatpush1.msra.mxu0 0.0
    %1738 = vmatprep.subr.mxu0 0.0
    %1739 = vmatpush1.msra.mxu0 0.0
    %1740 = vmatprep.subr.mxu0 0.0
    %1741 = vmatpush1.msra.mxu0 0.0
    %1742 = vmatprep.subr.mxu0 0.0
    %1743 = vmatpush1.msra.mxu0 0.0
    %1744 = vmatprep.subr.mxu0 0.0
    %1745 = vmatpush1.msra.mxu0 0.0
    %1746 = vmatprep.subr.mxu0 0.0
    %1747 = vmatpush1.msra.mxu0 0.0
    %1748 = vmatprep.subr.mxu0 0.0
    %1749 = vmatpush1.msra.mxu0 0.0
    %1750 = vmatprep.subr.mxu0 0.0
    %1751 = vmatpush1.msra.mxu0 0.0
    %1752 = vmatprep.subr.mxu0 0.0
    %1753 = vmatpush1.msra.mxu0 0.0
    %1754 = vmatprep.subr.mxu0 0.0
    %1755 = vmatpush1.msra.mxu0 0.0
    %1756 = vmatprep.subr.mxu0 0.0
    %1757 = vmatpush1.msra.mxu0 0.0
    %1758 = vmatprep.mubr.f32.mxu0 0.0
    %1759 = vmatmul.mubr.f32.gmra.mrb[0].mxu0 %v1692
    %v1760 = vpop.f32.mrb[0].mxu0
    %v1761 = vadd.f32 0.0, %v1760
    %v1762 = vpop.f32.mrb[0].mxu0
    %1763 = vdwg.mxu0
    %1765 = vrot.lane.b32.xlu0 %v1761, 24
    %v1766 = vpop.permute.xlu0 %1765
    %1768 = vst.msk [vmem:[#allocation2 + $0x8] sm:$0xff] %vm1083, %v1766
    %v1769 = vld [vmem:[#allocation2] sm:$0xff]
    %v1770 = vld [vmem:[#allocation2 + $0x8] sm:$0xff]
    %v1771 = vld [vmem:[%s9] sm:$0xff]
    %v1772 = vld [vmem:[%s9 + $0x8] sm:$0xff]
    %v1773 = vld [vmem:[%s9 + $0x10] sm:$0xff]
    %v1774 = vld [vmem:[%s9 + $0x18] sm:$0xff]
    %v1775 = vld [vmem:[%s10] sm:$0x1]
    %v1777 = vlaneseq
    %v1778 = vshrl.u32 %v1777, 7
    %v1779 = vsub.s32 0, %v1778
    %v1780 = vrot.slane %v1775, %v1779
    %v1783 = vsel %vm143, %v1769, 0
    %v1786 = vsel %vm143, %v1770, 0
    %1788 = vmatprep.subr.mxu0 0.0
    %1789 = vmatpush1.msra.mxu0 %v1771
    %1790 = vmatprep.subr.mxu0 0.0
    %1791 = vmatpush1.msra.mxu0 %v1772
    %1792 = vmatprep.subr.mxu0 0.0
    %1793 = vmatpush1.msra.mxu0 %v1773
    %1794 = vmatprep.subr.mxu0 0.0
    %1795 = vmatpush1.msra.mxu0 %v1774
    %1796 = vmatprep.subr.mxu0 0.0
    %1797 = vmatpush1.msra.mxu0 0.0
    %1798 = vmatprep.subr.mxu0 0.0
    %1799 = vmatpush1.msra.mxu0 0.0
    %1800 = vmatprep.subr.mxu0 0.0
    %1801 = vmatpush1.msra.mxu0 0.0
    %1802 = vmatprep.subr.mxu0 0.0
    %1803 = vmatpush1.msra.mxu0 0.0
    %1804 = vmatprep.subr.mxu0 0.0
    %1805 = vmatpush1.msra.mxu0 0.0
    %1806 = vmatprep.subr.mxu0 0.0
    %1807 = vmatpush1.msra.mxu0 0.0
    %1808 = vmatprep.subr.mxu0 0.0
    %1809 = vmatpush1.msra.mxu0 0.0
    %1810 = vmatprep.subr.mxu0 0.0
    %1811 = vmatpush1.msra.mxu0 0.0
    %1812 = vmatprep.subr.mxu0 0.0
    %1813 = vmatpush1.msra.mxu0 0.0
    %1814 = vmatprep.subr.mxu0 0.0
    %1815 = vmatpush1.msra.mxu0 0.0
    %1816 = vmatprep.subr.mxu0 0.0
    %1817 = vmatpush1.msra.mxu0 0.0
    %1818 = vmatprep.subr.mxu0 0.0
    %1819 = vmatpush1.msra.mxu0 0.0
    %1820 = vmatprep.subr.mxu0 0.0
    %1821 = vmatpush1.msra.mxu0 0.0
    %1822 = vmatprep.subr.mxu0 0.0
    %1823 = vmatpush1.msra.mxu0 0.0
    %1824 = vmatprep.subr.mxu0 0.0
    %1825 = vmatpush1.msra.mxu0 0.0
    %1826 = vmatprep.subr.mxu0 0.0
    %1827 = vmatpush1.msra.mxu0 0.0
    %1828 = vmatprep.subr.mxu0 0.0
    %1829 = vmatpush1.msra.mxu0 0.0
    %1830 = vmatprep.subr.mxu0 0.0
    %1831 = vmatpush1.msra.mxu0 0.0
    %1832 = vmatprep.subr.mxu0 0.0
    %1833 = vmatpush1.msra.mxu0 0.0
    %1834 = vmatprep.subr.mxu0 0.0
    %1835 = vmatpush1.msra.mxu0 0.0
    %1836 = vmatprep.subr.mxu0 0.0
    %1837 = vmatpush1.msra.mxu0 0.0
    %1838 = vmatprep.subr.mxu0 0.0
    %1839 = vmatpush1.msra.mxu0 0.0
    %1840 = vmatprep.subr.mxu0 0.0
    %1841 = vmatpush1.msra.mxu0 0.0
    %1842 = vmatprep.subr.mxu0 0.0
    %1843 = vmatpush1.msra.mxu0 0.0
    %1844 = vmatprep.subr.mxu0 0.0
    %1845 = vmatpush1.msra.mxu0 0.0
    %1846 = vmatprep.subr.mxu0 0.0
    %1847 = vmatpush1.msra.mxu0 0.0
    %1848 = vmatprep.subr.mxu0 0.0
    %1849 = vmatpush1.msra.mxu0 0.0
    %1850 = vmatprep.subr.mxu0 0.0
    %1851 = vmatpush1.msra.mxu0 0.0
    %1852 = vmatprep.mubr.f32.mxu0 0.0
    %1853 = vmatmul.mubr.f32.gmra.mrb[0].mxu0 %v1783
    %v1854 = vpop.f32.mrb[0].mxu0
    %v1855 = vadd.f32 %v1780, %v1854
    %v1856 = vpop.f32.mrb[0].mxu0
    %1857 = vmatprep.mubr.f32.mxu0 0.0
    %1858 = vmatmul.mubr.f32.gmra.mrb[0].mxu0 %v1786
    %v1859 = vpop.f32.mrb[0].mxu0
    %v1860 = vadd.f32 %v1780, %v1859
    %v1861 = vpop.f32.mrb[0].mxu0
    %1862 = vdwg.mxu0
    %v1863 = vadd.f32 %v1855, %v127
    %v1864 = vadd.f32 %v1860, %v128
    %v1865 = vsel %vm143, %v1863, 0.0
    %1866 = vadd.xlane.f32.xlu0 %v1865
    %v1867 = vpop.xlane.xlu0 %1866
    %v1868 = vsel %vm143, %v1864, 0.0
    %1869 = vadd.xlane.f32.xlu0 %v1868
    %v1870 = vpop.xlane.xlu0 %1869
    %v1871 = vrcp.pop 32.0
    %v1872 = vmul.f32 %v1867, %v1871
    %v1873 = vmul.f32 %v1870, %v1871
    %v1874 = vsub.f32 %v1863, %v1872
    %v1875 = vsub.f32 %v1864, %v1873
    %v1876 = vmul.f32 %v1874, %v1874
    %v1877 = vmul.f32 %v1875, %v1875
    %v1878 = vsel %vm143, %v1876, 0.0
    %1879 = vadd.xlane.f32.xlu0 %v1878
    %v1880 = vpop.xlane.xlu0 %1879
    %v1881 = vsel %vm143, %v1877, 0.0
    %1882 = vadd.xlane.f32.xlu0 %v1881
    %v1883 = vpop.xlane.xlu0 %1882
    %v1884 = vmul.f32 %v1880, %v1871
    %v1885 = vmul.f32 %v1883, %v1871
    %v1886 = vadd.f32 %v1884, 1e-12
    %v1887 = vadd.f32 %v1885, 1e-12
    %v1888 = vrsqrt.pop %v1886
    %v1889 = vrsqrt.pop %v1887
    %v1890 = vmul.f32 %v1874, %v1888
    %v1891 = vmul.f32 %v1875, %v1889
    %v1892 = vld [vmem:[%s11] sm:$0x1]
    %v1894 = vlaneseq
    %v1895 = vshrl.u32 %v1894, 7
    %v1896 = vsub.s32 0, %v1895
    %v1897 = vrot.slane %v1892, %v1896
    %v1899 = vmul.f32 %v1890, %v1897
    %v1900 = vmul.f32 %v1891, %v1897
    %v1901 = vld [vmem:[%s12] sm:$0x1]
    %v1903 = vlaneseq
    %v1904 = vshrl.u32 %v1903, 7
    %v1905 = vsub.s32 0, %v1904
    %v1906 = vrot.slane %v1901, %v1905
    %v1908 = vadd.f32 %v1899, %v1906
    %v1909 = vadd.f32 %v1900, %v1906
    %v1910 = vadd.f32 %v1908, %v127
    %v1911 = vadd.f32 %v1909, %v128
    %v1912 = vmul.f32 %v1910, %v1910
    %v1913 = vmul.f32 %v1911, %v1911
    %v1914 = vsel %vm143, %v1912, 0.0
    %1915 = vadd.xlane.f32.xlu0 %v1914
    %v1916 = vpop.xlane.xlu0 %1915
    %v1917 = vsel %vm143, %v1913, 0.0
    %1918 = vadd.xlane.f32.xlu0 %v1917
    %v1919 = vpop.xlane.xlu0 %1918
    %v1920 = vmul.f32 %v1916, %v1871
    %v1921 = vmul.f32 %v1919, %v1871
    %v1922 = vadd.f32 %v1920, 1e-05
    %v1923 = vadd.f32 %v1921, 1e-05
    %v1924 = vrsqrt.pop %v1922
    %v1925 = vrsqrt.pop %v1923
    %v1926 = vmul.f32 %v1910, %v1924
    %v1927 = vmul.f32 %v1911, %v1925
    %v1928 = vld [vmem:[%s13] sm:$0x1]
    %v1930 = vlaneseq
    %v1931 = vshrl.u32 %v1930, 7
    %v1932 = vsub.s32 0, %v1931
    %v1933 = vrot.slane %v1928, %v1932
    %v1935 = vmul.f32 %v1926, %v1933
    %v1936 = vmul.f32 %v1927, %v1933
    %v1937 = vld [vmem:[%s14] sm:$0xff]
    %v1938 = vld [vmem:[%s14 + $0x8] sm:$0xff]
    %v1939 = vld [vmem:[%s14 + $0x10] sm:$0xff]
    %v1940 = vld [vmem:[%s14 + $0x18] sm:$0xff]
    %v1942 = vsel %vm143, %v1935, 0
    %v1945 = vsel %vm143, %v1936, 0
    %1947 = vmatprep.subr.mxu0 0.0
    %1948 = vmatpush1.msra.mxu0 %v1937
    %1949 = vmatprep.subr.mxu0 0.0
    %1950 = vmatpush1.msra.mxu0 %v1938
    %1951 = vmatprep.subr.mxu0 0.0
    %1952 = vmatpush1.msra.mxu0 %v1939
    %1953 = vmatprep.subr.mxu0 0.0
    %1954 = vmatpush1.msra.mxu0 %v1940
    %1955 = vmatprep.subr.mxu0 0.0
    %1956 = vmatpush1.msra.mxu0 0.0
    %1957 = vmatprep.subr.mxu0 0.0
    %1958 = vmatpush1.msra.mxu0 0.0
    %1959 = vmatprep.subr.mxu0 0.0
    %1960 = vmatpush1.msra.mxu0 0.0
    %1961 = vmatprep.subr.mxu0 0.0
    %1962 = vmatpush1.msra.mxu0 0.0
    %1963 = vmatprep.subr.mxu0 0.0
    %1964 = vmatpush1.msra.mxu0 0.0
    %1965 = vmatprep.subr.mxu0 0.0
    %1966 = vmatpush1.msra.mxu0 0.0
    %1967 = vmatprep.subr.mxu0 0.0
    %1968 = vmatpush1.msra.mxu0 0.0
    %1969 = vmatprep.subr.mxu0 0.0
    %1970 = vmatpush1.msra.mxu0 0.0
    %1971 = vmatprep.subr.mxu0 0.0
    %1972 = vmatpush1.msra.mxu0 0.0
    %1973 = vmatprep.subr.mxu0 0.0
    %1974 = vmatpush1.msra.mxu0 0.0
    %1975 = vmatprep.subr.mxu0 0.0
    %1976 = vmatpush1.msra.mxu0 0.0
    %1977 = vmatprep.subr.mxu0 0.0
    %1978 = vmatpush1.msra.mxu0 0.0
    %1979 = vmatprep.subr.mxu0 0.0
    %1980 = vmatpush1.msra.mxu0 0.0
    %1981 = vmatprep.subr.mxu0 0.0
    %1982 = vmatpush1.msra.mxu0 0.0
    %1983 = vmatprep.subr.mxu0 0.0
    %1984 = vmatpush1.msra.mxu0 0.0
    %1985 = vmatprep.subr.mxu0 0.0
    %1986 = vmatpush1.msra.mxu0 0.0
    %1987 = vmatprep.subr.mxu0 0.0
    %1988 = vmatpush1.msra.mxu0 0.0
    %1989 = vmatprep.subr.mxu0 0.0
    %1990 = vmatpush1.msra.mxu0 0.0
    %1991 = vmatprep.subr.mxu0 0.0
    %1992 = vmatpush1.msra.mxu0 0.0
    %1993 = vmatprep.subr.mxu0 0.0
    %1994 = vmatpush1.msra.mxu0 0.0
    %1995 = vmatprep.subr.mxu0 0.0
    %1996 = vmatpush1.msra.mxu0 0.0
    %1997 = vmatprep.subr.mxu0 0.0
    %1998 = vmatpush1.msra.mxu0 0.0
    %1999 = vmatprep.subr.mxu0 0.0
    %2000 = vmatpush1.msra.mxu0 0.0
    %2001 = vmatprep.subr.mxu0 0.0
    %2002 = vmatpush1.msra.mxu0 0.0
    %2003 = vmatprep.subr.mxu0 0.0
    %2004 = vmatpush1.msra.mxu0 0.0
    %2005 = vmatprep.subr.mxu0 0.0
    %2006 = vmatpush1.msra.mxu0 0.0
    %2007 = vmatprep.subr.mxu0 0.0
    %2008 = vmatpush1.msra.mxu0 0.0
    %2009 = vmatprep.subr.mxu0 0.0
    %2010 = vmatpush1.msra.mxu0 0.0
    %2011 = vmatprep.mubr.f32.mxu0 0.0
    %2012 = vmatmul.mubr.f32.gmra.mrb[0].mxu0 %v1942
    %v2013 = vpop.f32.mrb[0].mxu0
    %v2014 = vadd.f32 0.0, %v2013
    %v2015 = vpop.f32.mrb[0].mxu0
    %2016 = vmatprep.mubr.f32.mxu0 0.0
    %2017 = vmatmul.mubr.f32.gmra.mrb[0].mxu0 %v1945
    %v2018 = vpop.f32.mrb[0].mxu0
    %v2019 = vadd.f32 0.0, %v2018
    %v2020 = vpop.f32.mrb[0].mxu0
    %2021 = vdwg.mxu0
    %2023 = vset.pattern.permute.xlu0 0
    %2024 = vperm.xlu0 %2023, %v130
    %v2025 = vpop.permute.xlu0 %2024
    %2028 = vset.pattern.permute.xlu0 0
    %2029 = vperm.xlu0 %2028, %v131
    %v2030 = vpop.permute.xlu0 %2029
    %v2032 = vmul.f32 %v2014, %v2025
    %v2033 = vmul.f32 %v2019, %v2030
    %v2034 = vlaneseq
    %v2035 = vshrl.u32 %v2034, 7
    %v2036 = vadd.s32 %v2035, 8
    %vm2037 = vcmp.lt.s32.totalorder %v2035, 0
    %v2038 = vsub.s32 0, %v2035
    %v2039 = vsel %vm2037, %v2038, %v2035
    %v2040 = vshrl.u32 %v2039, 3
    %v2041 = vand.u32 %v2039, 7
    %v2042 = vsub.s32 0, %v2041
    %v2043 = vsel %vm2037, %v2042, %v2041
    %vm2044 = vcmp.lt.s32.totalorder %v2036, 0
    %v2045 = vsub.s32 0, %v2036
    %v2046 = vsel %vm2044, %v2045, %v2036
    %v2047 = vshrl.u32 %v2046, 3
    %v2048 = vand.u32 %v2046, 7
    %v2049 = vsub.s32 0, %v2048
    %v2050 = vsel %vm2044, %v2049, %v2048
    %vm2051 = vcmp.ne.s32.totalorder %v2043, 0
    %vm2052 = vcmp.ne.s32.totalorder %v2050, 0
    %vm2053 = vcmp.lt.s32.totalorder %v2043, 0
    %vm2054 = vcmp.lt.s32.totalorder %v2050, 0
    %vm2055 = vmand %vm2053, %vm2051
    %vm2056 = vmand %vm2054, %vm2052
    %v2057 = vadd.s32 %v2043, 8
    %v2058 = vadd.s32 %v2050, 8
    %v2059 = vsel %vm2055, %v2057, %v2043
    %v2060 = vsel %vm2056, %v2058, %v2050
    %v2061 = vld [vmem:[%s15 + $0x3] sm:$0x1]
    %v2062 = vlaneseq
    %v2063 = vshrl.u32 %v2062, 7
    %v2064 = vsub.s32 0, %v2063
    %v2065 = vrot.slane %v2061, %v2064
    %v2066 = vmul.f32 %v2032, %v2065
    %v2067 = vmul.f32 %v2033, %v2065
    %vm2068 = vcmp.ge.s32.totalorder %v2059, 1
    %vm2069 = vcmp.ge.s32.totalorder %v2060, 1
    %v2070 = vrot.slane %v2032, 7
    %v2071 = vrot.slane %v2033, 7
    %vm2072 = vcmp.lt.s32.totalorder %v2035, 1
    %v2073 = vsel %vm2072, %v2070, %v2071
    %v2074 = vsel %vm2072, %v2071, %v2070
    %v2075 = vsel %vm2068, %v2074, 0.0
    %v2076 = vsel %vm2069, %v2073, 0.0
    %v2077 = vld [vmem:[%s15 + $0x2] sm:$0x1]
    %v2078 = vlaneseq
    %v2079 = vshrl.u32 %v2078, 7
    %v2080 = vsub.s32 0, %v2079
    %v2081 = vrot.slane %v2077, %v2080
    %v2082 = vmul.f32 %v2075, %v2081
    %v2083 = vmul.f32 %v2076, %v2081
    %v2084 = vadd.f32 %v2066, %v2082
    %v2085 = vadd.f32 %v2067, %v2083
    %vm2086 = vcmp.ge.s32.totalorder %v2059, 2
    %vm2087 = vcmp.ge.s32.totalorder %v2060, 2
    %v2088 = vrot.slane %v2032, 6
    %v2089 = vrot.slane %v2033, 6
    %vm2090 = vcmp.lt.s32.totalorder %v2035, 2
    %v2091 = vsel %vm2090, %v2088, %v2089
    %v2092 = vsel %vm2090, %v2089, %v2088
    %v2093 = vsel %vm2086, %v2092, 0.0
    %v2094 = vsel %vm2087, %v2091, 0.0
    %v2095 = vld [vmem:[%s15 + $0x1] sm:$0x1]
    %v2096 = vlaneseq
    %v2097 = vshrl.u32 %v2096, 7
    %v2098 = vsub.s32 0, %v2097
    %v2099 = vrot.slane %v2095, %v2098
    %v2100 = vmul.f32 %v2093, %v2099
    %v2101 = vmul.f32 %v2094, %v2099
    %v2102 = vadd.f32 %v2084, %v2100
    %v2103 = vadd.f32 %v2085, %v2101
    %vm2104 = vcmp.ge.s32.totalorder %v2059, 3
    %vm2105 = vcmp.ge.s32.totalorder %v2060, 3
    %v2106 = vrot.slane %v2032, 5
    %v2107 = vrot.slane %v2033, 5
    %vm2108 = vcmp.lt.s32.totalorder %v2035, 3
    %v2109 = vsel %vm2108, %v2106, %v2107
    %v2110 = vsel %vm2108, %v2107, %v2106
    %v2111 = vsel %vm2104, %v2110, 0.0
    %v2112 = vsel %vm2105, %v2109, 0.0
    %v2113 = vld [vmem:[%s15] sm:$0x1]
    %v2114 = vlaneseq
    %v2115 = vshrl.u32 %v2114, 7
    %v2116 = vsub.s32 0, %v2115
    %v2117 = vrot.slane %v2113, %v2116
    %v2118 = vmul.f32 %v2111, %v2117
    %v2119 = vmul.f32 %v2112, %v2117
    %v2120 = vadd.f32 %v2102, %v2118
    %v2121 = vadd.f32 %v2103, %v2119
    %v2122 = vld [vmem:[%s16] sm:$0x1]
    %v2124 = vlaneseq
    %v2125 = vshrl.u32 %v2124, 7
    %v2126 = vsub.s32 0, %v2125
    %v2127 = vrot.slane %v2122, %v2126
    %v2129 = vadd.f32 %v2120, %v2127
    %v2130 = vadd.f32 %v2121, %v2127
    %v2131 = vsub.f32 0.0, %v2129
    %v2132 = vsub.f32 0.0, %v2130
    %v2133 = vmul.f32 %v2131, 1.442695
    %v2134 = vpow.pop %v2133
    %v2135 = vmul.f32 %v2132, 1.442695
    %v2136 = vpow.pop %v2135
    %v2137 = vadd.f32 %v2134, 1.0
    %v2138 = vadd.f32 %v2136, 1.0
    %v2139 = vrcp.pop %v2137
    %v2140 = vmul.f32 1.0, %v2139
    %v2141 = vrcp.pop %v2138
    %v2142 = vmul.f32 1.0, %v2141
    %v2143 = vmul.f32 %v2129, %v2140
    %v2144 = vmul.f32 %v2130, %v2142
    %v2145 = vmul.f32 %v2143, %v2025
    %v2146 = vmul.f32 %v2144, %v2030
    %v2147 = vld [vmem:[%s17] sm:$0xff]
    %v2148 = vld [vmem:[%s17 + $0x8] sm:$0xff]
    %v2149 = vld [vmem:[%s17 + $0x10] sm:$0xff]
    %v2150 = vld [vmem:[%s17 + $0x18] sm:$0xff]
    %v2151 = vld [vmem:[%s17 + $0x20] sm:$0xff]
    %v2152 = vld [vmem:[%s17 + $0x28] sm:$0xff]
    %v2153 = vld [vmem:[%s17 + $0x30] sm:$0xff]
    %v2154 = vld [vmem:[%s17 + $0x38] sm:$0xff]
    %vm2155 = vcmask 523264
    %v2157 = vsel %vm2155, %v2145, 0
    %v2160 = vsel %vm2155, %v2146, 0
    %2162 = vmatprep.subr.mxu0 0.0
    %2163 = vmatpush1.msra.mxu0 %v2147
    %2164 = vmatprep.subr.mxu0 0.0
    %2165 = vmatpush1.msra.mxu0 %v2148
    %2166 = vmatprep.subr.mxu0 0.0
    %2167 = vmatpush1.msra.mxu0 %v2149
    %2168 = vmatprep.subr.mxu0 0.0
    %2169 = vmatpush1.msra.mxu0 %v2150
    %2170 = vmatprep.subr.mxu0 0.0
    %2171 = vmatpush1.msra.mxu0 %v2151
    %2172 = vmatprep.subr.mxu0 0.0
    %2173 = vmatpush1.msra.mxu0 %v2152
    %2174 = vmatprep.subr.mxu0 0.0
    %2175 = vmatpush1.msra.mxu0 %v2153
    %2176 = vmatprep.subr.mxu0 0.0
    %2177 = vmatpush1.msra.mxu0 %v2154
    %2178 = vmatprep.subr.mxu0 0.0
    %2179 = vmatpush1.msra.mxu0 0.0
    %2180 = vmatprep.subr.mxu0 0.0
    %2181 = vmatpush1.msra.mxu0 0.0
    %2182 = vmatprep.subr.mxu0 0.0
    %2183 = vmatpush1.msra.mxu0 0.0
    %2184 = vmatprep.subr.mxu0 0.0
    %2185 = vmatpush1.msra.mxu0 0.0
    %2186 = vmatprep.subr.mxu0 0.0
    %2187 = vmatpush1.msra.mxu0 0.0
    %2188 = vmatprep.subr.mxu0 0.0
    %2189 = vmatpush1.msra.mxu0 0.0
    %2190 = vmatprep.subr.mxu0 0.0
    %2191 = vmatpush1.msra.mxu0 0.0
    %2192 = vmatprep.subr.mxu0 0.0
    %2193 = vmatpush1.msra.mxu0 0.0
    %2194 = vmatprep.subr.mxu0 0.0
    %2195 = vmatpush1.msra.mxu0 0.0
    %2196 = vmatprep.subr.mxu0 0.0
    %2197 = vmatpush1.msra.mxu0 0.0
    %2198 = vmatprep.subr.mxu0 0.0
    %2199 = vmatpush1.msra.mxu0 0.0
    %2200 = vmatprep.subr.mxu0 0.0
    %2201 = vmatpush1.msra.mxu0 0.0
    %2202 = vmatprep.subr.mxu0 0.0
    %2203 = vmatpush1.msra.mxu0 0.0
    %2204 = vmatprep.subr.mxu0 0.0
    %2205 = vmatpush1.msra.mxu0 0.0
    %2206 = vmatprep.subr.mxu0 0.0
    %2207 = vmatpush1.msra.mxu0 0.0
    %2208 = vmatprep.subr.mxu0 0.0
    %2209 = vmatpush1.msra.mxu0 0.0
    %2210 = vmatprep.subr.mxu0 0.0
    %2211 = vmatpush1.msra.mxu0 0.0
    %2212 = vmatprep.subr.mxu0 0.0
    %2213 = vmatpush1.msra.mxu0 0.0
    %2214 = vmatprep.subr.mxu0 0.0
    %2215 = vmatpush1.msra.mxu0 0.0
    %2216 = vmatprep.subr.mxu0 0.0
    %2217 = vmatpush1.msra.mxu0 0.0
    %2218 = vmatprep.subr.mxu0 0.0
    %2219 = vmatpush1.msra.mxu0 0.0
    %2220 = vmatprep.subr.mxu0 0.0
    %2221 = vmatpush1.msra.mxu0 0.0
    %2222 = vmatprep.subr.mxu0 0.0
    %2223 = vmatpush1.msra.mxu0 0.0
    %2224 = vmatprep.subr.mxu0 0.0
    %2225 = vmatpush1.msra.mxu0 0.0
    %2226 = vmatprep.mubr.f32.mxu0 0.0
    %2227 = vmatmul.mubr.f32.gmra.mrb[0].mxu0 %v2157
    %v2228 = vpop.f32.mrb[0].mxu0
    %v2229 = vadd.f32 0.0, %v2228
    %v2230 = vpop.f32.mrb[0].mxu0
    %2231 = vmatprep.mubr.f32.mxu0 0.0
    %2232 = vmatmul.mubr.f32.gmra.mrb[0].mxu0 %v2160
    %v2233 = vpop.f32.mrb[0].mxu0
    %v2234 = vadd.f32 0.0, %v2233
    %v2235 = vpop.f32.mrb[0].mxu0
    %2236 = vdwg.mxu0
    %v2237 = vld [vmem:[%s18] sm:$0x3]
    %v2238 = vld [vmem:[%s19] sm:$0x1]
    %v2240 = vlaneseq
    %v2241 = vshrl.u32 %v2240, 7
    %v2242 = vsub.s32 0, %v2241
    %v2243 = vrot.slane %v2238, %v2242
    %vm2245 = vcmask 15360
    %v2247 = vsel %vm2245, %v2229, 0
    %v2250 = vsel %vm2245, %v2234, 0
    %vm2252 = vcmask 1041408
    %v2254 = vsel %vm2252, %v2237, 0
    %2256 = vmatprep.subr.mxu0 0.0
    %2257 = vmatpush1.msra.mxu0 %v2254
    %2258 = vmatprep.subr.mxu0 0.0
    %2259 = vmatpush1.msra.mxu0 0.0
    %2260 = vmatprep.subr.mxu0 0.0
    %2261 = vmatpush1.msra.mxu0 0.0
    %2262 = vmatprep.subr.mxu0 0.0
    %2263 = vmatpush1.msra.mxu0 0.0
    %2264 = vmatprep.subr.mxu0 0.0
    %2265 = vmatpush1.msra.mxu0 0.0
    %2266 = vmatprep.subr.mxu0 0.0
    %2267 = vmatpush1.msra.mxu0 0.0
    %2268 = vmatprep.subr.mxu0 0.0
    %2269 = vmatpush1.msra.mxu0 0.0
    %2270 = vmatprep.subr.mxu0 0.0
    %2271 = vmatpush1.msra.mxu0 0.0
    %2272 = vmatprep.subr.mxu0 0.0
    %2273 = vmatpush1.msra.mxu0 0.0
    %2274 = vmatprep.subr.mxu0 0.0
    %2275 = vmatpush1.msra.mxu0 0.0
    %2276 = vmatprep.subr.mxu0 0.0
    %2277 = vmatpush1.msra.mxu0 0.0
    %2278 = vmatprep.subr.mxu0 0.0
    %2279 = vmatpush1.msra.mxu0 0.0
    %2280 = vmatprep.subr.mxu0 0.0
    %2281 = vmatpush1.msra.mxu0 0.0
    %2282 = vmatprep.subr.mxu0 0.0
    %2283 = vmatpush1.msra.mxu0 0.0
    %2284 = vmatprep.subr.mxu0 0.0
    %2285 = vmatpush1.msra.mxu0 0.0
    %2286 = vmatprep.subr.mxu0 0.0
    %2287 = vmatpush1.msra.mxu0 0.0
    %2288 = vmatprep.subr.mxu0 0.0
    %2289 = vmatpush1.msra.mxu0 0.0
    %2290 = vmatprep.subr.mxu0 0.0
    %2291 = vmatpush1.msra.mxu0 0.0
    %2292 = vmatprep.subr.mxu0 0.0
    %2293 = vmatpush1.msra.mxu0 0.0
    %2294 = vmatprep.subr.mxu0 0.0
    %2295 = vmatpush1.msra.mxu0 0.0
    %2296 = vmatprep.subr.mxu0 0.0
    %2297 = vmatpush1.msra.mxu0 0.0
    %2298 = vmatprep.subr.mxu0 0.0
    %2299 = vmatpush1.msra.mxu0 0.0
    %2300 = vmatprep.subr.mxu0 0.0
    %2301 = vmatpush1.msra.mxu0 0.0
    %2302 = vmatprep.subr.mxu0 0.0
    %2303 = vmatpush1.msra.mxu0 0.0
    %2304 = vmatprep.subr.mxu0 0.0
    %2305 = vmatpush1.msra.mxu0 0.0
    %2306 = vmatprep.subr.mxu0 0.0
    %2307 = vmatpush1.msra.mxu0 0.0
    %2308 = vmatprep.subr.mxu0 0.0
    %2309 = vmatpush1.msra.mxu0 0.0
    %2310 = vmatprep.subr.mxu0 0.0
    %2311 = vmatpush1.msra.mxu0 0.0
    %2312 = vmatprep.subr.mxu0 0.0
    %2313 = vmatpush1.msra.mxu0 0.0
    %2314 = vmatprep.subr.mxu0 0.0
    %2315 = vmatpush1.msra.mxu0 0.0
    %2316 = vmatprep.subr.mxu0 0.0
    %2317 = vmatpush1.msra.mxu0 0.0
    %2318 = vmatprep.subr.mxu0 0.0
    %2319 = vmatpush1.msra.mxu0 0.0
    %2320 = vmatprep.mubr.f32.mxu0 0.0
    %2321 = vmatmul.mubr.f32.gmra.mrb[0].mxu0 %v2247
    %v2322 = vpop.f32.mrb[0].mxu0
    %v2323 = vadd.f32 %v2243, %v2322
    %v2324 = vpop.f32.mrb[0].mxu0
    %2325 = vmatprep.mubr.f32.mxu0 0.0
    %2326 = vmatmul.mubr.f32.gmra.mrb[0].mxu0 %v2250
    %v2327 = vpop.f32.mrb[0].mxu0
    %v2328 = vadd.f32 %v2243, %v2327
    %v2329 = vpop.f32.mrb[0].mxu0
    %2330 = vdwg.mxu0
    %v2331 = vmax.f32 %v2323, 0.0
    %v2332 = vmax.f32 %v2328, 0.0
    %v2333 = vand.u32 2147483647, %v2323
    %v2334 = vand.u32 2147483647, %v2328
    %v2335 = vsub.f32 0.0, %v2333
    %v2336 = vsub.f32 0.0, %v2334
    %v2337 = vmul.f32 %v2335, 1.442695
    %v2338 = vpow.pop %v2337
    %v2339 = vmul.f32 %v2336, 1.442695
    %v2340 = vpow.pop %v2339
    %v2341 = vadd.f32 %v2338, 1.0
    %v2342 = vadd.f32 %v2340, 1.0
    %v2343 = vlog2.pop %v2341
    %v2344 = vmul.f32 %v2343, 0.6931472
    %v2345 = vlog2.pop %v2342
    %v2346 = vmul.f32 %v2345, 0.6931472
    %v2347 = vadd.f32 %v2331, %v2344
    %v2348 = vadd.f32 %v2332, %v2346
    %v2349 = vld [vmem:[%s20] sm:$0xff]
    %v2350 = vmul.f32 %v2349, 1.442695
    %v2351 = vpow.pop %v2350
    %v2352 = vsub.f32 0.0, %v2351
    %2353 = vrot.lane.b32.xlu0 %v2229, 126
    %v2354 = vpop.permute.xlu0 %2353
    %2355 = vrot.lane.b32.xlu0 %v2234, 126
    %v2356 = vpop.permute.xlu0 %2355
    %2359 = vxpose.xlu0.b32.start [1/16] %v2354, 128
    %2360 = vxpose.xlu0.b32.cont [2/16] %v2356, 128
    %2361 = vxpose.xlu0.b32.cont [3/16] 0.0, 128
    %2362 = vxpose.xlu0.b32.cont [4/16] 0.0, 128
    %2363 = vxpose.xlu0.b32.cont [5/16] 0.0, 128
    %2364 = vxpose.xlu0.b32.cont [6/16] 0.0, 128
    %2365 = vxpose.xlu0.b32.cont [7/16] 0.0, 128
    %2366 = vxpose.xlu0.b32.cont [8/16] 0.0, 128
    %2367 = vxpose.xlu0.b32.cont [9/16] 0.0, 128
    %2368 = vxpose.xlu0.b32.cont [10/16] 0.0, 128
    %2369 = vxpose.xlu0.b32.cont [11/16] 0.0, 128
    %2370 = vxpose.xlu0.b32.cont [12/16] 0.0, 128
    %2371 = vxpose.xlu0.b32.cont [13/16] 0.0, 128
    %2372 = vxpose.xlu0.b32.cont [14/16] 0.0, 128
    %2373 = vxpose.xlu0.b32.cont [15/16] 0.0, 128
    %2374 = vxpose.xlu0.b32.end [16/16] 0.0, 128
    %v2375 = vpop.trf.xlu0
    %v2376 = vpop.trf.xlu0
    %v2377 = vpop.trf.xlu0
    %v2378 = vpop.trf.xlu0
    %v2379 = vpop.trf.xlu0
    %v2380 = vpop.trf.xlu0
    %v2381 = vpop.trf.xlu0
    %v2382 = vpop.trf.xlu0
    %v2383 = vpop.trf.xlu0
    %v2384 = vpop.trf.xlu0
    %v2385 = vpop.trf.xlu0
    %v2386 = vpop.trf.xlu0
    %v2387 = vpop.trf.xlu0
    %v2388 = vpop.trf.xlu0
    %v2389 = vpop.trf.xlu0
    %v2390 = vpop.trf.xlu0
    %2391 = vrot.lane.b32.xlu0 %v2229, 118
    %v2392 = vpop.permute.xlu0 %2391
    %2393 = vrot.lane.b32.xlu0 %v2234, 118
    %v2394 = vpop.permute.xlu0 %2393
    %2397 = vxpose.xlu0.b32.start [1/16] %v2392, 128
    %2398 = vxpose.xlu0.b32.cont [2/16] %v2394, 128
    %2399 = vxpose.xlu0.b32.cont [3/16] 0.0, 128
    %2400 = vxpose.xlu0.b32.cont [4/16] 0.0, 128
    %2401 = vxpose.xlu0.b32.cont [5/16] 0.0, 128
    %2402 = vxpose.xlu0.b32.cont [6/16] 0.0, 128
    %2403 = vxpose.xlu0.b32.cont [7/16] 0.0, 128
    %2404 = vxpose.xlu0.b32.cont [8/16] 0.0, 128
    %2405 = vxpose.xlu0.b32.cont [9/16] 0.0, 128
    %2406 = vxpose.xlu0.b32.cont [10/16] 0.0, 128
    %2407 = vxpose.xlu0.b32.cont [11/16] 0.0, 128
    %2408 = vxpose.xlu0.b32.cont [12/16] 0.0, 128
    %2409 = vxpose.xlu0.b32.cont [13/16] 0.0, 128
    %2410 = vxpose.xlu0.b32.cont [14/16] 0.0, 128
    %2411 = vxpose.xlu0.b32.cont [15/16] 0.0, 128
    %2412 = vxpose.xlu0.b32.end [16/16] 0.0, 128
    %v2413 = vpop.trf.xlu0
    %v2414 = vpop.trf.xlu0
    %v2415 = vpop.trf.xlu0
    %v2416 = vpop.trf.xlu0
    %v2417 = vpop.trf.xlu0
    %v2418 = vpop.trf.xlu0
    %v2419 = vpop.trf.xlu0
    %v2420 = vpop.trf.xlu0
    %v2421 = vpop.trf.xlu0
    %v2422 = vpop.trf.xlu0
    %v2423 = vpop.trf.xlu0
    %v2424 = vpop.trf.xlu0
    %v2425 = vpop.trf.xlu0
    %v2426 = vpop.trf.xlu0
    %v2427 = vpop.trf.xlu0
    %v2428 = vpop.trf.xlu0
    %v2429 = vmul.f32 %v2347, %v2145
    %v2430 = vmul.f32 %v2348, %v2146
    %v2432 = vcombine.high %v2347, %v2347
    %v2434 = vunpack.c.l.s4 1966171168
    %v2435 = vunpack.c.0.s8 %v2434
    %v2436 = vlaneseq
    %v2437 = vshrl.u32 %v2436, 7
    %v2438 = vsub.s32 %v2435, %v2437
    %v2439 = vrot.slane %v2347, %v2438
    %v2441 = vunpack.c.l.s4 1966171168
    %v2442 = vunpack.c.0.s8 %v2441
    %v2443 = vlaneseq
    %v2444 = vshrl.u32 %v2443, 7
    %v2445 = vsub.s32 %v2442, %v2444
    %v2446 = vrot.slane %v2432, %v2445
    %v2447 = vcombine.high %v2439, %v2439
    %v2448 = vcombine.high %v2446, %v2446
    %v2450 = vunpack.c.l.s4 1966171168
    %v2451 = vunpack.c.0.s8 %v2450
    %v2452 = vlaneseq
    %v2453 = vshrl.u32 %v2452, 7
    %v2454 = vsub.s32 %v2451, %v2453
    %v2455 = vrot.slane %v2439, %v2454
    %v2457 = vunpack.c.l.s4 1966171168
    %v2458 = vunpack.c.0.s8 %v2457
    %v2459 = vlaneseq
    %v2460 = vshrl.u32 %v2459, 7
    %v2461 = vsub.s32 %v2458, %v2460
    %v2462 = vrot.slane %v2446, %v2461
    %v2464 = vunpack.c.l.s4 1966171168
    %v2465 = vunpack.c.0.s8 %v2464
    %v2466 = vlaneseq
    %v2467 = vshrl.u32 %v2466, 7
    %v2468 = vsub.s32 %v2465, %v2467
    %v2469 = vrot.slane %v2447, %v2468
    %v2471 = vunpack.c.l.s4 1966171168
    %v2472 = vunpack.c.0.s8 %v2471
    %v2473 = vlaneseq
    %v2474 = vshrl.u32 %v2473, 7
    %v2475 = vsub.s32 %v2472, %v2474
    %v2476 = vrot.slane %v2448, %v2475
    %v2477 = vcombine.high %v2455, %v2455
    %v2478 = vcombine.high %v2462, %v2462
    %v2479 = vcombine.high %v2469, %v2469
    %v2480 = vcombine.high %v2476, %v2476
    %v2481 = vlaneseq
    %v2482 = vshrl.u32 %v2481, 7
    %v2483 = vsub.s32 0, %v2482
    %v2484 = vrot.slane %v2455, %v2483
    %v2485 = vlaneseq
    %v2486 = vshrl.u32 %v2485, 7
    %v2487 = vsub.s32 0, %v2486
    %v2488 = vrot.slane %v2469, %v2487
    %v2489 = vlaneseq
    %v2490 = vshrl.u32 %v2489, 7
    %v2491 = vsub.s32 0, %v2490
    %v2492 = vrot.slane %v2477, %v2491
    %v2493 = vlaneseq
    %v2494 = vshrl.u32 %v2493, 7
    %v2495 = vsub.s32 0, %v2494
    %v2496 = vrot.slane %v2479, %v2495
    %v2497 = vlaneseq
    %v2498 = vshrl.u32 %v2497, 7
    %v2499 = vsub.s32 0, %v2498
    %v2500 = vrot.slane %v2462, %v2499
    %v2501 = vlaneseq
    %v2502 = vshrl.u32 %v2501, 7
    %v2503 = vsub.s32 0, %v2502
    %v2504 = vrot.slane %v2476, %v2503
    %v2505 = vlaneseq
    %v2506 = vshrl.u32 %v2505, 7
    %v2507 = vsub.s32 0, %v2506
    %v2508 = vrot.slane %v2478, %v2507
    %v2509 = vlaneseq
    %v2510 = vshrl.u32 %v2509, 7
    %v2511 = vsub.s32 0, %v2510
    %v2512 = vrot.slane %v2480, %v2511
    %v2521 = vmul.f32 %v2484, %v2352
    %v2522 = vmul.f32 %v2488, %v2352
    %v2523 = vmul.f32 %v2492, %v2352
    %v2524 = vmul.f32 %v2496, %v2352
    %v2525 = vmul.f32 %v2500, %v2352
    %v2526 = vmul.f32 %v2504, %v2352
    %v2527 = vmul.f32 %v2508, %v2352
    %v2528 = vmul.f32 %v2512, %v2352
    %v2529 = vmul.f32 %v2521, 1.442695
    %v2530 = vpow.pop %v2529
    %v2531 = vmul.f32 %v2522, 1.442695
    %v2532 = vpow.pop %v2531
    %v2533 = vmul.f32 %v2523, 1.442695
    %v2534 = vpow.pop %v2533
    %v2535 = vmul.f32 %v2524, 1.442695
    %v2536 = vpow.pop %v2535
    %v2537 = vmul.f32 %v2525, 1.442695
    %v2538 = vpow.pop %v2537
    %v2539 = vmul.f32 %v2526, 1.442695
    %v2540 = vpow.pop %v2539
    %v2541 = vmul.f32 %v2527, 1.442695
    %v2542 = vpow.pop %v2541
    %v2543 = vmul.f32 %v2528, 1.442695
    %v2544 = vpow.pop %v2543
    %2546 = vset.pattern.permute.xlu0 0
    %2547 = vperm.xlu0 %2546, %v2375
    %v2548 = vpop.permute.xlu0 %2547
    %v2550 = vlaneseq
    %v2551 = vshrl.u32 %v2550, 7
    %v2552 = vsub.s32 0, %v2551
    %v2553 = vrot.slane %v2429, %v2552
    %v2554 = vmul.f32 %v2548, %v2553
    %v2555 = vmul.f32 %v2530, 0.0
    %v2556 = vadd.f32 %v2555, %v2554
    %2558 = vset.pattern.permute.xlu0 0
    %2559 = vperm.xlu0 %2558, %v2413
    %v2560 = vpop.permute.xlu0 %2559
    %v2562 = vmul.f32 %v2556, %v2560
    %v2563 = vsel %vm2155, %v2562, 0.0
    %v2564 = vrot.slane %v2563, 4
    %v2565 = vadd.f32 %v2563, %v2564
    %v2566 = vrot.slane %v2565, 2
    %v2567 = vadd.f32 %v2565, %v2566
    %v2568 = vrot.slane %v2567, 1
    %v2569 = vadd.f32 %v2567, %v2568
    %vm2570 = vcmask 516096
    %2571 = vst.msk [vmem:[#allocation3] sm:$0x1] %vm2570, %v2569
    %2572 = vset.pattern.permute.xlu0 1
    %2573 = vperm.xlu0 %2572, %v2375
    %v2574 = vpop.permute.xlu0 %2573
    %v2576 = vlaneseq
    %v2577 = vshrl.u32 %v2576, 7
    %v2578 = vsub.s32 1, %v2577
    %v2579 = vrot.slane %v2429, %v2578
    %v2580 = vmul.f32 %v2574, %v2579
    %v2581 = vmul.f32 %v2532, %v2556
    %v2582 = vadd.f32 %v2581, %v2580
    %2583 = vset.pattern.permute.xlu0 1
    %2584 = vperm.xlu0 %2583, %v2413
    %v2585 = vpop.permute.xlu0 %2584
    %v2587 = vmul.f32 %v2582, %v2585
    %v2588 = vsel %vm2155, %v2587, 0.0
    %v2589 = vrot.slane %v2588, 4
    %v2590 = vadd.f32 %v2588, %v2589
    %v2591 = vrot.slane %v2590, 2
    %v2592 = vadd.f32 %v2590, %v2591
    %v2593 = vrot.slane %v2592, 1
    %v2594 = vadd.f32 %v2592, %v2593
    %2595 = vst.msk [vmem:[#allocation3 + $0x1] sm:$0x1] %vm2570, %v2594
    %2596 = vset.pattern.permute.xlu0 2
    %2597 = vperm.xlu0 %2596, %v2375
    %v2598 = vpop.permute.xlu0 %2597
    %v2600 = vlaneseq
    %v2601 = vshrl.u32 %v2600, 7
    %v2602 = vsub.s32 2, %v2601
    %v2603 = vrot.slane %v2429, %v2602
    %v2604 = vmul.f32 %v2598, %v2603
    %v2605 = vmul.f32 %v2534, %v2582
    %v2606 = vadd.f32 %v2605, %v2604
    %2607 = vset.pattern.permute.xlu0 2
    %2608 = vperm.xlu0 %2607, %v2413
    %v2609 = vpop.permute.xlu0 %2608
    %v2611 = vmul.f32 %v2606, %v2609
    %v2612 = vsel %vm2155, %v2611, 0.0
    %v2613 = vrot.slane %v2612, 4
    %v2614 = vadd.f32 %v2612, %v2613
    %v2615 = vrot.slane %v2614, 2
    %v2616 = vadd.f32 %v2614, %v2615
    %v2617 = vrot.slane %v2616, 1
    %v2618 = vadd.f32 %v2616, %v2617
    %2619 = vst.msk [vmem:[#allocation3 + $0x2] sm:$0x1] %vm2570, %v2618
    %2620 = vset.pattern.permute.xlu0 3
    %2621 = vperm.xlu0 %2620, %v2375
    %v2622 = vpop.permute.xlu0 %2621
    %v2624 = vlaneseq
    %v2625 = vshrl.u32 %v2624, 7
    %v2626 = vsub.s32 3, %v2625
    %v2627 = vrot.slane %v2429, %v2626
    %v2628 = vmul.f32 %v2622, %v2627
    %v2629 = vmul.f32 %v2536, %v2606
    %v2630 = vadd.f32 %v2629, %v2628
    %2631 = vset.pattern.permute.xlu0 3
    %2632 = vperm.xlu0 %2631, %v2413
    %v2633 = vpop.permute.xlu0 %2632
    %v2635 = vmul.f32 %v2630, %v2633
    %v2636 = vsel %vm2155, %v2635, 0.0
    %v2637 = vrot.slane %v2636, 4
    %v2638 = vadd.f32 %v2636, %v2637
    %v2639 = vrot.slane %v2638, 2
    %v2640 = vadd.f32 %v2638, %v2639
    %v2641 = vrot.slane %v2640, 1
    %v2642 = vadd.f32 %v2640, %v2641
    %2643 = vst.msk [vmem:[#allocation3 + $0x3] sm:$0x1] %vm2570, %v2642
    %2644 = vset.pattern.permute.xlu0 4
    %2645 = vperm.xlu0 %2644, %v2375
    %v2646 = vpop.permute.xlu0 %2645
    %v2648 = vlaneseq
    %v2649 = vshrl.u32 %v2648, 7
    %v2650 = vsub.s32 4, %v2649
    %v2651 = vrot.slane %v2429, %v2650
    %v2652 = vmul.f32 %v2646, %v2651
    %v2653 = vmul.f32 %v2538, %v2630
    %v2654 = vadd.f32 %v2653, %v2652
    %2655 = vset.pattern.permute.xlu0 4
    %2656 = vperm.xlu0 %2655, %v2413
    %v2657 = vpop.permute.xlu0 %2656
    %v2659 = vmul.f32 %v2654, %v2657
    %v2660 = vsel %vm2155, %v2659, 0.0
    %v2661 = vrot.slane %v2660, 4
    %v2662 = vadd.f32 %v2660, %v2661
    %v2663 = vrot.slane %v2662, 2
    %v2664 = vadd.f32 %v2662, %v2663
    %v2665 = vrot.slane %v2664, 1
    %v2666 = vadd.f32 %v2664, %v2665
    %2667 = vst.msk [vmem:[#allocation3 + $0x4] sm:$0x1] %vm2570, %v2666
    %2668 = vset.pattern.permute.xlu0 5
    %2669 = vperm.xlu0 %2668, %v2375
    %v2670 = vpop.permute.xlu0 %2669
    %v2672 = vlaneseq
    %v2673 = vshrl.u32 %v2672, 7
    %v2674 = vsub.s32 5, %v2673
    %v2675 = vrot.slane %v2429, %v2674
    %v2676 = vmul.f32 %v2670, %v2675
    %v2677 = vmul.f32 %v2540, %v2654
    %v2678 = vadd.f32 %v2677, %v2676
    %2679 = vset.pattern.permute.xlu0 5
    %2680 = vperm.xlu0 %2679, %v2413
    %v2681 = vpop.permute.xlu0 %2680
    %v2683 = vmul.f32 %v2678, %v2681
    %v2684 = vsel %vm2155, %v2683, 0.0
    %v2685 = vrot.slane %v2684, 4
    %v2686 = vadd.f32 %v2684, %v2685
    %v2687 = vrot.slane %v2686, 2
    %v2688 = vadd.f32 %v2686, %v2687
    %v2689 = vrot.slane %v2688, 1
    %v2690 = vadd.f32 %v2688, %v2689
    %2691 = vst.msk [vmem:[#allocation3 + $0x5] sm:$0x1] %vm2570, %v2690
    %2692 = vset.pattern.permute.xlu0 6
    %2693 = vperm.xlu0 %2692, %v2375
    %v2694 = vpop.permute.xlu0 %2693
    %v2696 = vlaneseq
    %v2697 = vshrl.u32 %v2696, 7
    %v2698 = vsub.s32 6, %v2697
    %v2699 = vrot.slane %v2429, %v2698
    %v2700 = vmul.f32 %v2694, %v2699
    %v2701 = vmul.f32 %v2542, %v2678
    %v2702 = vadd.f32 %v2701, %v2700
    %2703 = vset.pattern.permute.xlu0 6
    %2704 = vperm.xlu0 %2703, %v2413
    %v2705 = vpop.permute.xlu0 %2704
    %v2707 = vmul.f32 %v2702, %v2705
    %v2708 = vsel %vm2155, %v2707, 0.0
    %v2709 = vrot.slane %v2708, 4
    %v2710 = vadd.f32 %v2708, %v2709
    %v2711 = vrot.slane %v2710, 2
    %v2712 = vadd.f32 %v2710, %v2711
    %v2713 = vrot.slane %v2712, 1
    %v2714 = vadd.f32 %v2712, %v2713
    %2715 = vst.msk [vmem:[#allocation3 + $0x6] sm:$0x1] %vm2570, %v2714
    %2716 = vset.pattern.permute.xlu0 7
    %2717 = vperm.xlu0 %2716, %v2375
    %v2718 = vpop.permute.xlu0 %2717
    %v2720 = vlaneseq
    %v2721 = vshrl.u32 %v2720, 7
    %v2722 = vsub.s32 7, %v2721
    %v2723 = vrot.slane %v2429, %v2722
    %v2724 = vmul.f32 %v2718, %v2723
    %v2725 = vmul.f32 %v2544, %v2702
    %v2726 = vadd.f32 %v2725, %v2724
    %2727 = vset.pattern.permute.xlu0 7
    %2728 = vperm.xlu0 %2727, %v2413
    %v2729 = vpop.permute.xlu0 %2728
    %v2731 = vmul.f32 %v2726, %v2729
    %v2732 = vsel %vm2155, %v2731, 0.0
    %v2733 = vrot.slane %v2732, 4
    %v2734 = vadd.f32 %v2732, %v2733
    %v2735 = vrot.slane %v2734, 2
    %v2736 = vadd.f32 %v2734, %v2735
    %v2737 = vrot.slane %v2736, 1
    %v2738 = vadd.f32 %v2736, %v2737
    %2739 = vst.msk [vmem:[#allocation3 + $0x7] sm:$0x1] %vm2570, %v2738
    %v2741 = vcombine.high %v2348, %v2348
    %v2743 = vunpack.c.l.s4 1966171168
    %v2744 = vunpack.c.0.s8 %v2743
    %v2745 = vlaneseq
    %v2746 = vshrl.u32 %v2745, 7
    %v2747 = vsub.s32 %v2744, %v2746
    %v2748 = vrot.slane %v2348, %v2747
    %v2750 = vunpack.c.l.s4 1966171168
    %v2751 = vunpack.c.0.s8 %v2750
    %v2752 = vlaneseq
    %v2753 = vshrl.u32 %v2752, 7
    %v2754 = vsub.s32 %v2751, %v2753
    %v2755 = vrot.slane %v2741, %v2754
    %v2756 = vcombine.high %v2748, %v2748
    %v2757 = vcombine.high %v2755, %v2755
    %v2759 = vunpack.c.l.s4 1966171168
    %v2760 = vunpack.c.0.s8 %v2759
    %v2761 = vlaneseq
    %v2762 = vshrl.u32 %v2761, 7
    %v2763 = vsub.s32 %v2760, %v2762
    %v2764 = vrot.slane %v2748, %v2763
    %v2766 = vunpack.c.l.s4 1966171168
    %v2767 = vunpack.c.0.s8 %v2766
    %v2768 = vlaneseq
    %v2769 = vshrl.u32 %v2768, 7
    %v2770 = vsub.s32 %v2767, %v2769
    %v2771 = vrot.slane %v2755, %v2770
    %v2773 = vunpack.c.l.s4 1966171168
    %v2774 = vunpack.c.0.s8 %v2773
    %v2775 = vlaneseq
    %v2776 = vshrl.u32 %v2775, 7
    %v2777 = vsub.s32 %v2774, %v2776
    %v2778 = vrot.slane %v2756, %v2777
    %v2780 = vunpack.c.l.s4 1966171168
    %v2781 = vunpack.c.0.s8 %v2780
    %v2782 = vlaneseq
    %v2783 = vshrl.u32 %v2782, 7
    %v2784 = vsub.s32 %v2781, %v2783
    %v2785 = vrot.slane %v2757, %v2784
    %v2786 = vcombine.high %v2764, %v2764
    %v2787 = vcombine.high %v2771, %v2771
    %v2788 = vcombine.high %v2778, %v2778
    %v2789 = vcombine.high %v2785, %v2785
    %v2790 = vlaneseq
    %v2791 = vshrl.u32 %v2790, 7
    %v2792 = vsub.s32 0, %v2791
    %v2793 = vrot.slane %v2764, %v2792
    %v2794 = vlaneseq
    %v2795 = vshrl.u32 %v2794, 7
    %v2796 = vsub.s32 0, %v2795
    %v2797 = vrot.slane %v2778, %v2796
    %v2798 = vlaneseq
    %v2799 = vshrl.u32 %v2798, 7
    %v2800 = vsub.s32 0, %v2799
    %v2801 = vrot.slane %v2786, %v2800
    %v2802 = vlaneseq
    %v2803 = vshrl.u32 %v2802, 7
    %v2804 = vsub.s32 0, %v2803
    %v2805 = vrot.slane %v2788, %v2804
    %v2806 = vlaneseq
    %v2807 = vshrl.u32 %v2806, 7
    %v2808 = vsub.s32 0, %v2807
    %v2809 = vrot.slane %v2771, %v2808
    %v2810 = vlaneseq
    %v2811 = vshrl.u32 %v2810, 7
    %v2812 = vsub.s32 0, %v2811
    %v2813 = vrot.slane %v2785, %v2812
    %v2814 = vlaneseq
    %v2815 = vshrl.u32 %v2814, 7
    %v2816 = vsub.s32 0, %v2815
    %v2817 = vrot.slane %v2787, %v2816
    %v2818 = vlaneseq
    %v2819 = vshrl.u32 %v2818, 7
    %v2820 = vsub.s32 0, %v2819
    %v2821 = vrot.slane %v2789, %v2820
    %v2830 = vmul.f32 %v2793, %v2352
    %v2831 = vmul.f32 %v2797, %v2352
    %v2832 = vmul.f32 %v2801, %v2352
    %v2833 = vmul.f32 %v2805, %v2352
    %v2834 = vmul.f32 %v2809, %v2352
    %v2835 = vmul.f32 %v2813, %v2352
    %v2836 = vmul.f32 %v2817, %v2352
    %v2837 = vmul.f32 %v2821, %v2352
    %v2838 = vmul.f32 %v2830, 1.442695
    %v2839 = vpow.pop %v2838
    %v2840 = vmul.f32 %v2831, 1.442695
    %v2841 = vpow.pop %v2840
    %v2842 = vmul.f32 %v2832, 1.442695
    %v2843 = vpow.pop %v2842
    %v2844 = vmul.f32 %v2833, 1.442695
    %v2845 = vpow.pop %v2844
    %v2846 = vmul.f32 %v2834, 1.442695
    %v2847 = vpow.pop %v2846
    %v2848 = vmul.f32 %v2835, 1.442695
    %v2849 = vpow.pop %v2848
    %v2850 = vmul.f32 %v2836, 1.442695
    %v2851 = vpow.pop %v2850
    %v2852 = vmul.f32 %v2837, 1.442695
    %v2853 = vpow.pop %v2852
    %2854 = vset.pattern.permute.xlu0 8
    %2855 = vperm.xlu0 %2854, %v2375
    %v2856 = vpop.permute.xlu0 %2855
    %v2858 = vlaneseq
    %v2859 = vshrl.u32 %v2858, 7
    %v2860 = vsub.s32 0, %v2859
    %v2861 = vrot.slane %v2430, %v2860
    %v2862 = vmul.f32 %v2856, %v2861
    %v2863 = vmul.f32 %v2839, 0.0
    %v2864 = vadd.f32 %v2863, %v2862
    %2865 = vset.pattern.permute.xlu0 8
    %2866 = vperm.xlu0 %2865, %v2413
    %v2867 = vpop.permute.xlu0 %2866
    %v2869 = vmul.f32 %v2864, %v2867
    %v2870 = vsel %vm2155, %v2869, 0.0
    %v2871 = vrot.slane %v2870, 4
    %v2872 = vadd.f32 %v2870, %v2871
    %v2873 = vrot.slane %v2872, 2
    %v2874 = vadd.f32 %v2872, %v2873
    %v2875 = vrot.slane %v2874, 1
    %v2876 = vadd.f32 %v2874, %v2875
    %2877 = vst.msk [vmem:[#allocation3 + $0x8] sm:$0x1] %vm2570, %v2876
    %2878 = vset.pattern.permute.xlu0 9
    %2879 = vperm.xlu0 %2878, %v2375
    %v2880 = vpop.permute.xlu0 %2879
    %v2882 = vlaneseq
    %v2883 = vshrl.u32 %v2882, 7
    %v2884 = vsub.s32 1, %v2883
    %v2885 = vrot.slane %v2430, %v2884
    %v2886 = vmul.f32 %v2880, %v2885
    %v2887 = vmul.f32 %v2841, %v2864
    %v2888 = vadd.f32 %v2887, %v2886
    %2889 = vset.pattern.permute.xlu0 9
    %2890 = vperm.xlu0 %2889, %v2413
    %v2891 = vpop.permute.xlu0 %2890
    %v2893 = vmul.f32 %v2888, %v2891
    %v2894 = vsel %vm2155, %v2893, 0.0
    %v2895 = vrot.slane %v2894, 4
    %v2896 = vadd.f32 %v2894, %v2895
    %v2897 = vrot.slane %v2896, 2
    %v2898 = vadd.f32 %v2896, %v2897
    %v2899 = vrot.slane %v2898, 1
    %v2900 = vadd.f32 %v2898, %v2899
    %2901 = vst.msk [vmem:[#allocation3 + $0x9] sm:$0x1] %vm2570, %v2900
    %2902 = vset.pattern.permute.xlu0 10
    %2903 = vperm.xlu0 %2902, %v2375
    %v2904 = vpop.permute.xlu0 %2903
    %v2906 = vlaneseq
    %v2907 = vshrl.u32 %v2906, 7
    %v2908 = vsub.s32 2, %v2907
    %v2909 = vrot.slane %v2430, %v2908
    %v2910 = vmul.f32 %v2904, %v2909
    %v2911 = vmul.f32 %v2843, %v2888
    %v2912 = vadd.f32 %v2911, %v2910
    %2913 = vset.pattern.permute.xlu0 10
    %2914 = vperm.xlu0 %2913, %v2413
    %v2915 = vpop.permute.xlu0 %2914
    %v2917 = vmul.f32 %v2912, %v2915
    %v2918 = vsel %vm2155, %v2917, 0.0
    %v2919 = vrot.slane %v2918, 4
    %v2920 = vadd.f32 %v2918, %v2919
    %v2921 = vrot.slane %v2920, 2
    %v2922 = vadd.f32 %v2920, %v2921
    %v2923 = vrot.slane %v2922, 1
    %v2924 = vadd.f32 %v2922, %v2923
    %2925 = vst.msk [vmem:[#allocation3 + $0xa] sm:$0x1] %vm2570, %v2924
    %2926 = vset.pattern.permute.xlu0 11
    %2927 = vperm.xlu0 %2926, %v2375
    %v2928 = vpop.permute.xlu0 %2927
    %v2930 = vlaneseq
    %v2931 = vshrl.u32 %v2930, 7
    %v2932 = vsub.s32 3, %v2931
    %v2933 = vrot.slane %v2430, %v2932
    %v2934 = vmul.f32 %v2928, %v2933
    %v2935 = vmul.f32 %v2845, %v2912
    %v2936 = vadd.f32 %v2935, %v2934
    %2937 = vset.pattern.permute.xlu0 11
    %2938 = vperm.xlu0 %2937, %v2413
    %v2939 = vpop.permute.xlu0 %2938
    %v2941 = vmul.f32 %v2936, %v2939
    %v2942 = vsel %vm2155, %v2941, 0.0
    %v2943 = vrot.slane %v2942, 4
    %v2944 = vadd.f32 %v2942, %v2943
    %v2945 = vrot.slane %v2944, 2
    %v2946 = vadd.f32 %v2944, %v2945
    %v2947 = vrot.slane %v2946, 1
    %v2948 = vadd.f32 %v2946, %v2947
    %2949 = vst.msk [vmem:[#allocation3 + $0xb] sm:$0x1] %vm2570, %v2948
    %2950 = vset.pattern.permute.xlu0 12
    %2951 = vperm.xlu0 %2950, %v2375
    %v2952 = vpop.permute.xlu0 %2951
    %v2954 = vlaneseq
    %v2955 = vshrl.u32 %v2954, 7
    %v2956 = vsub.s32 4, %v2955
    %v2957 = vrot.slane %v2430, %v2956
    %v2958 = vmul.f32 %v2952, %v2957
    %v2959 = vmul.f32 %v2847, %v2936
    %v2960 = vadd.f32 %v2959, %v2958
    %2961 = vset.pattern.permute.xlu0 12
    %2962 = vperm.xlu0 %2961, %v2413
    %v2963 = vpop.permute.xlu0 %2962
    %v2965 = vmul.f32 %v2960, %v2963
    %v2966 = vsel %vm2155, %v2965, 0.0
    %v2967 = vrot.slane %v2966, 4
    %v2968 = vadd.f32 %v2966, %v2967
    %v2969 = vrot.slane %v2968, 2
    %v2970 = vadd.f32 %v2968, %v2969
    %v2971 = vrot.slane %v2970, 1
    %v2972 = vadd.f32 %v2970, %v2971
    %2973 = vst.msk [vmem:[#allocation3 + $0xc] sm:$0x1] %vm2570, %v2972
    %2974 = vset.pattern.permute.xlu0 13
    %2975 = vperm.xlu0 %2974, %v2375
    %v2976 = vpop.permute.xlu0 %2975
    %v2978 = vlaneseq
    %v2979 = vshrl.u32 %v2978, 7
    %v2980 = vsub.s32 5, %v2979
    %v2981 = vrot.slane %v2430, %v2980
    %v2982 = vmul.f32 %v2976, %v2981
    %v2983 = vmul.f32 %v2849, %v2960
    %v2984 = vadd.f32 %v2983, %v2982
    %2985 = vset.pattern.permute.xlu0 13
    %2986 = vperm.xlu0 %2985, %v2413
    %v2987 = vpop.permute.xlu0 %2986
    %v2989 = vmul.f32 %v2984, %v2987
    %v2990 = vsel %vm2155, %v2989, 0.0
    %v2991 = vrot.slane %v2990, 4
    %v2992 = vadd.f32 %v2990, %v2991
    %v2993 = vrot.slane %v2992, 2
    %v2994 = vadd.f32 %v2992, %v2993
    %v2995 = vrot.slane %v2994, 1
    %v2996 = vadd.f32 %v2994, %v2995
    %2997 = vst.msk [vmem:[#allocation3 + $0xd] sm:$0x1] %vm2570, %v2996
    %2998 = vset.pattern.permute.xlu0 14
    %2999 = vperm.xlu0 %2998, %v2375
    %v3000 = vpop.permute.xlu0 %2999
    %v3002 = vlaneseq
    %v3003 = vshrl.u32 %v3002, 7
    %v3004 = vsub.s32 6, %v3003
    %v3005 = vrot.slane %v2430, %v3004
    %v3006 = vmul.f32 %v3000, %v3005
    %v3007 = vmul.f32 %v2851, %v2984
    %v3008 = vadd.f32 %v3007, %v3006
    %3009 = vset.pattern.permute.xlu0 14
    %3010 = vperm.xlu0 %3009, %v2413
    %v3011 = vpop.permute.xlu0 %3010
    %v3013 = vmul.f32 %v3008, %v3011
    %v3014 = vsel %vm2155, %v3013, 0.0
    %v3015 = vrot.slane %v3014, 4
    %v3016 = vadd.f32 %v3014, %v3015
    %v3017 = vrot.slane %v3016, 2
    %v3018 = vadd.f32 %v3016, %v3017
    %v3019 = vrot.slane %v3018, 1
    %v3020 = vadd.f32 %v3018, %v3019
    %3021 = vst.msk [vmem:[#allocation3 + $0xe] sm:$0x1] %vm2570, %v3020
    %3022 = vset.pattern.permute.xlu0 15
    %3023 = vperm.xlu0 %3022, %v2375
    %v3024 = vpop.permute.xlu0 %3023
    %v3026 = vlaneseq
    %v3027 = vshrl.u32 %v3026, 7
    %v3028 = vsub.s32 7, %v3027
    %v3029 = vrot.slane %v2430, %v3028
    %v3030 = vmul.f32 %v3024, %v3029
    %v3031 = vmul.f32 %v2853, %v3008
    %v3032 = vadd.f32 %v3031, %v3030
    %3033 = vset.pattern.permute.xlu0 15
    %3034 = vperm.xlu0 %3033, %v2413
    %v3035 = vpop.permute.xlu0 %3034
    %v3037 = vmul.f32 %v3032, %v3035
    %v3038 = vsel %vm2155, %v3037, 0.0
    %v3039 = vrot.slane %v3038, 4
    %v3040 = vadd.f32 %v3038, %v3039
    %v3041 = vrot.slane %v3040, 2
    %v3042 = vadd.f32 %v3040, %v3041
    %v3043 = vrot.slane %v3042, 1
    %v3044 = vadd.f32 %v3042, %v3043
    %3045 = vst.msk [vmem:[#allocation3 + $0xf] sm:$0x1] %vm2570, %v3044
    %v3046 = vld [vmem:[#allocation3] sm:$0xff]
    %v3047 = vld [vmem:[#allocation3 + $0x8] sm:$0xff]
    %v3048 = vld [vmem:[%s21] sm:$0x1]
    %v3050 = vlaneseq
    %v3051 = vshrl.u32 %v3050, 7
    %v3052 = vsub.s32 0, %v3051
    %v3053 = vrot.slane %v3048, %v3052
    %v3055 = vmul.f32 %v2145, %v3053
    %v3056 = vmul.f32 %v2146, %v3053
    %v3057 = vadd.f32 %v3046, %v3055
    %v3058 = vadd.f32 %v3047, %v3056
    %v3059 = vsub.f32 0.0, %v2014
    %v3060 = vsub.f32 0.0, %v2019
    %v3061 = vmul.f32 %v3059, 1.442695
    %v3062 = vpow.pop %v3061
    %v3063 = vmul.f32 %v3060, 1.442695
    %v3064 = vpow.pop %v3063
    %v3065 = vadd.f32 %v3062, 1.0
    %v3066 = vadd.f32 %v3064, 1.0
    %v3067 = vrcp.pop %v3065
    %v3068 = vmul.f32 1.0, %v3067
    %v3069 = vrcp.pop %v3066
    %v3070 = vmul.f32 1.0, %v3069
    %v3071 = vmul.f32 %v2014, %v3068
    %v3072 = vmul.f32 %v2019, %v3070
    %3075 = vrot.lane.b32.xlu0 %v3071, 64
    %v3076 = vpop.permute.xlu0 %3075
    %3077 = vrot.lane.b32.xlu0 %v3072, 64
    %v3078 = vpop.permute.xlu0 %3077
    %v3081 = vmul.f32 %v3057, %v3076
    %v3082 = vmul.f32 %v3058, %v3078
    %v3083 = vld [vmem:[%s22] sm:$0xff]
    %v3084 = vld [vmem:[%s22 + $0x8] sm:$0xff]
    %v3085 = vld [vmem:[%s22 + $0x10] sm:$0xff]
    %v3086 = vld [vmem:[%s22 + $0x18] sm:$0xff]
    %v3087 = vld [vmem:[%s22 + $0x20] sm:$0xff]
    %v3088 = vld [vmem:[%s22 + $0x28] sm:$0xff]
    %v3089 = vld [vmem:[%s22 + $0x30] sm:$0xff]
    %v3090 = vld [vmem:[%s22 + $0x38] sm:$0xff]
    %v3092 = vsel %vm2155, %v3081, 0
    %v3095 = vsel %vm2155, %v3082, 0
    %3097 = vmatprep.subr.mxu0 0.0
    %3098 = vmatpush1.msra.mxu0 %v3083
    %3099 = vmatprep.subr.mxu0 0.0
    %3100 = vmatpush1.msra.mxu0 %v3084
    %3101 = vmatprep.subr.mxu0 0.0
    %3102 = vmatpush1.msra.mxu0 %v3085
    %3103 = vmatprep.subr.mxu0 0.0
    %3104 = vmatpush1.msra.mxu0 %v3086
    %3105 = vmatprep.subr.mxu0 0.0
    %3106 = vmatpush1.msra.mxu0 %v3087
    %3107 = vmatprep.subr.mxu0 0.0
    %3108 = vmatpush1.msra.mxu0 %v3088
    %3109 = vmatprep.subr.mxu0 0.0
    %3110 = vmatpush1.msra.mxu0 %v3089
    %3111 = vmatprep.subr.mxu0 0.0
    %3112 = vmatpush1.msra.mxu0 %v3090
    %3113 = vmatprep.subr.mxu0 0.0
    %3114 = vmatpush1.msra.mxu0 0.0
    %3115 = vmatprep.subr.mxu0 0.0
    %3116 = vmatpush1.msra.mxu0 0.0
    %3117 = vmatprep.subr.mxu0 0.0
    %3118 = vmatpush1.msra.mxu0 0.0
    %3119 = vmatprep.subr.mxu0 0.0
    %3120 = vmatpush1.msra.mxu0 0.0
    %3121 = vmatprep.subr.mxu0 0.0
    %3122 = vmatpush1.msra.mxu0 0.0
    %3123 = vmatprep.subr.mxu0 0.0
    %3124 = vmatpush1.msra.mxu0 0.0
    %3125 = vmatprep.subr.mxu0 0.0
    %3126 = vmatpush1.msra.mxu0 0.0
    %3127 = vmatprep.subr.mxu0 0.0
    %3128 = vmatpush1.msra.mxu0 0.0
    %3129 = vmatprep.subr.mxu0 0.0
    %3130 = vmatpush1.msra.mxu0 0.0
    %3131 = vmatprep.subr.mxu0 0.0
    %3132 = vmatpush1.msra.mxu0 0.0
    %3133 = vmatprep.subr.mxu0 0.0
    %3134 = vmatpush1.msra.mxu0 0.0
    %3135 = vmatprep.subr.mxu0 0.0
    %3136 = vmatpush1.msra.mxu0 0.0
    %3137 = vmatprep.subr.mxu0 0.0
    %3138 = vmatpush1.msra.mxu0 0.0
    %3139 = vmatprep.subr.mxu0 0.0
    %3140 = vmatpush1.msra.mxu0 0.0
    %3141 = vmatprep.subr.mxu0 0.0
    %3142 = vmatpush1.msra.mxu0 0.0
    %3143 = vmatprep.subr.mxu0 0.0
    %3144 = vmatpush1.msra.mxu0 0.0
    %3145 = vmatprep.subr.mxu0 0.0
    %3146 = vmatpush1.msra.mxu0 0.0
    %3147 = vmatprep.subr.mxu0 0.0
    %3148 = vmatpush1.msra.mxu0 0.0
    %3149 = vmatprep.subr.mxu0 0.0
    %3150 = vmatpush1.msra.mxu0 0.0
    %3151 = vmatprep.subr.mxu0 0.0
    %3152 = vmatpush1.msra.mxu0 0.0
    %3153 = vmatprep.subr.mxu0 0.0
    %3154 = vmatpush1.msra.mxu0 0.0
    %3155 = vmatprep.subr.mxu0 0.0
    %3156 = vmatpush1.msra.mxu0 0.0
    %3157 = vmatprep.subr.mxu0 0.0
    %3158 = vmatpush1.msra.mxu0 0.0
    %3159 = vmatprep.subr.mxu0 0.0
    %3160 = vmatpush1.msra.mxu0 0.0
    %3161 = vmatprep.mubr.f32.mxu0 0.0
    %3162 = vmatmul.mubr.f32.gmra.mrb[0].mxu0 %v3092
    %v3163 = vpop.f32.mrb[0].mxu0
    %v3164 = vadd.f32 0.0, %v3163
    %v3165 = vpop.f32.mrb[0].mxu0
    %3166 = vmatprep.mubr.f32.mxu0 0.0
    %3167 = vmatmul.mubr.f32.gmra.mrb[0].mxu0 %v3095
    %v3168 = vpop.f32.mrb[0].mxu0
    %v3169 = vadd.f32 0.0, %v3168
    %v3170 = vpop.f32.mrb[0].mxu0
    %3171 = vdwg.mxu0
    %v3172 = vadd.f32 %v1910, %v3164
    %v3173 = vadd.f32 %v1911, %v3169
    %v3174 = vmul.f32 %v3172, %v3172
    %v3175 = vmul.f32 %v3173, %v3173
    %v3176 = vsel %vm143, %v3174, 0.0
    %3177 = vadd.xlane.f32.xlu0 %v3176
    %v3178 = vpop.xlane.xlu0 %3177
    %v3179 = vsel %vm143, %v3175, 0.0
    %3180 = vadd.xlane.f32.xlu0 %v3179
    %v3181 = vpop.xlane.xlu0 %3180
    %v3182 = vmul.f32 %v3178, %v1871
    %v3183 = vmul.f32 %v3181, %v1871
    %v3184 = vadd.f32 %v3182, 1e-06
    %v3185 = vadd.f32 %v3183, 1e-06
    %v3186 = vrsqrt.pop %v3184
    %v3187 = vrsqrt.pop %v3185
    %v3188 = vmul.f32 %v3172, %v3186
    %v3189 = vmul.f32 %v3173, %v3187
    %v3190 = vld [vmem:[%s23] sm:$0x1]
    %v3192 = vlaneseq
    %v3193 = vshrl.u32 %v3192, 7
    %v3194 = vsub.s32 0, %v3193
    %v3195 = vrot.slane %v3190, %v3194
    %v3197 = vmul.f32 %v3188, %v3195
    %v3198 = vmul.f32 %v3189, %v3195
    %3199 = vst.msk [vmem:[#allocation12] sm:$0xff] %vm143, %v3197
    %3200 = vst.msk [vmem:[#allocation12 + $0x8] sm:$0xff] %vm143, %v3198
    // Predicated region
    $region114: #{tpu_custom_call.1} parent=1 // pred_check
      _
    $region115: #{tpu_custom_call.1} parent=1 // pred_check_branch
      %3202 = sbr.rel (0) target = $region117
    $region116: #{tpu_custom_call.1} parent=1 // pred_region
      %s3204 = ssub.s32 256, 256
      %3205 = vsyncadd [#allocation6], %s3204
      %s3206 = sshll.u32 [#allocation12], 4
      %s3207 = int_to_ptr.vmem [resolvable:$true] %s3206
      %3212 = dma.vmem_to_hbm [thread:$0]  %s3207, 256, %s24, [#allocation6], 128, 128, 8
    $region117: #{tpu_custom_call.1} parent=1 // pred_fallthru
      _
    // Predicated region
    $region118: #{tpu_custom_call.1} parent=1 // pred_check
      _
    $region119: #{tpu_custom_call.1} parent=1 // pred_check_branch
      %3214 = sbr.rel (0) target = $region121
    $region120: #{tpu_custom_call.1} parent=1 // pred_region
      %3215 = dma.done [#allocation6], 256
    $region121: #{tpu_custom_call.1} parent=1 // pred_fallthru
      _
    %3216 = vsyncpa [#allocation5], 1
    %3217 = vsyncpa [#allocation8], 1
    %3218 = vsyncpa [#allocation11], 1
    %3219 = vsyncpa [#allocation6], 1

</llo_original>
